<compile_context>
chip_gen: v7x
topology: tpu7x:2x2x1
jax: 0.10.0
libtpu: 0.0.40
codegen_flags: <defaults>
</compile_context>

<pallas_src>
import functools

import jax
import jax.numpy as jnp
import numpy as np
from jax import lax
from jax.experimental import pallas as pl
from jax.experimental.pallas import tpu as pltpu


def _round_up(x, m):
    return ((x + m - 1) // m) * m


def _conv_out_sizes(h, w, kernel_size, stride, num_layers):
    sizes = []
    for _ in range(num_layers):
        h = (h - kernel_size) // stride + 1
        w = (w - kernel_size) // stride + 1
        sizes.append((h, w))
    return sizes


def _encoder_kernel(x_ref, w1, b1, w2, b2, w3, b3, w4, b4, out_ref, *,
                    kernel_size, stride, spatial, pad_spatial, tb):
    """Fused 4-layer strided-conv + ReLU stack for one batch tile.

    Activation layout is (H, W, TB, C): the batch tile rides the sublane axis,
    channels ride the lane axis, spatial dims are leading (untiled), so every
    slice / reshape below only touches whole (TB, C) tile planes.
    """
    K, s = kernel_size, stride
    (oh1, ow1), (oh2, ow2), (oh3, ow3), (oh4, ow4) = spatial

    def dense_relu(lhs, w_ref, b_ref):
        # One MXU matmul per layer: bf16 operands, f32 accumulation; bias + ReLU in f32.
        acc = jnp.dot(lhs, w_ref[...], preferred_element_type=jnp.float32)
        return jnp.maximum(acc + b_ref[...], 0.0)

    def pad_hw(y, ph, pw):
        # Zero-pad H/W so the next layer's decimation reshape is shape-valid.
        # The padded planes are never read by any tap (max tap row/col < real extent).
        oh, ow, _, c = y.shape
        if ph > oh:
            y = jnp.concatenate(
                [y, jnp.zeros((ph - oh, ow, tb, c), y.dtype)], axis=0)
        if pw > ow:
            y = jnp.concatenate(
                [y, jnp.zeros((ph, pw - ow, tb, c), y.dtype)], axis=1)
        return y

    def fold_taps(h, oh, ow):
        # Hoisted decimation: one leading-dim reshape exposes the stride-parity
        # planes; each of the K*K taps is a static whole-tile-plane slice and the
        # taps are concatenated on the lane axis -> im2col LHS for a single dot.
        ih, iw, _, cin = h.shape
        hh = h.reshape(ih // s, s, iw // s, s, tb, cin)
        pieces = []
        for kh in range(K):
            for kw in range(K):
                pieces.append(hh[kh // s:kh // s + oh, kh % s,
                                 kw // s:kw // s + ow, kw % s])
        return jnp.concatenate(pieces, axis=-1).reshape(oh * ow * tb, K * K * cin)

    # Layer 1: input was im2col'ed wrapper-side -> already (OH1, OW1, TB, K*K*Cin).
    kkc = x_ref.shape[-1]
    y1 = dense_relu(x_ref[...].reshape(oh1 * ow1 * tb, kkc), w1, b1)
    h1 = pad_hw(y1.reshape(oh1, ow1, tb, -1).astype(jnp.bfloat16), *pad_spatial[0])

    # Layers 2-4: single folded matmul each (contraction = K*K*Cin).
    y2 = dense_relu(fold_taps(h1, oh2, ow2), w2, b2)
    h2 = pad_hw(y2.reshape(oh2, ow2, tb, -1).astype(jnp.bfloat16), *pad_spatial[1])

    y3 = dense_relu(fold_taps(h2, oh3, ow3), w3, b3)
    h3 = pad_hw(y3.reshape(oh3, ow3, tb, -1).astype(jnp.bfloat16), *pad_spatial[2])

    y4 = dense_relu(fold_taps(h3, oh4, ow4), w4, b4)
    out_ref[...] = y4.reshape(oh4, ow4, tb, -1).astype(out_ref.dtype)


def _estimate_vmem_bytes(tb, spatial, pad_spatial, cins_fold, couts):
    """Pipelined blocks + resident weights + in-kernel temporaries (bytes)."""
    BF, F32 = 2, 4
    ms = [oh * ow * tb for (oh, ow) in spatial]
    est = 0
    est += 2 * ms[0] * cins_fold[0] * BF                        # input block (double buf)
    est += 2 * ms[-1] * couts[-1] * F32                         # output block (double buf)
    est += 2 * sum(ci * co * BF + co * F32
                   for ci, co in zip(cins_fold, couts))         # weights + biases
    for l in range(4):
        est += ms[l] * cins_fold[l] * BF                        # folded im2col LHS
        est += 2 * ms[l] * couts[l] * F32                       # f32 acc + bias/ReLU
        ph, pw = pad_spatial[l] if l < 3 else spatial[-1]
        est += ph * pw * tb * couts[l] * BF                     # next layer's bf16 input
    return est


def encoder_forward(x, weights_oihw, biases, *, kernel_size, stride,
                    batch_tile=128):
    """Pallas port of Encoder.forward (Conv2d+ReLU x4 + horizontal_forward flatten).

    x            : (..., C, H, W) float32 observations.
    weights_oihw : list of 4 conv weights in torch (Cout, Cin, K, K) layout.
    biases       : list of 4 (Cout,) biases.
    returns      : (..., Cout4 * OH4 * OW4) float32 (NCHW flatten order).
    """
    K, s = kernel_size, stride
    obs_c, obs_h, obs_w = x.shape[-3:]
    lead = x.shape[:-3]
    xb = x.reshape((-1, obs_c, obs_h, obs_w)).astype(jnp.float32)
    batch = xb.shape[0]

    spatial = _conv_out_sizes(obs_h, obs_w, K, s, 4)
    (oh1, ow1), _, _, (oh4, ow4) = spatial

    # Padded H/W each intermediate activation is produced at, so that the next
    # layer's reshape into stride-parity planes is shape-valid (pads unused).
    npad = (K - 1) // s
    pad_spatial = tuple((s * (oh + npad), s * (ow + npad)) for (oh, ow) in spatial[1:])

    couts = [int(w.shape[0]) for w in weights_oihw]
    cins_fold = [K * K * obs_c] + [K * K * c for c in couts[:-1]]
    c4 = couts[-1]

    # Batch tile rides the sublane axis -> multiple of 8. Prefer a big tile (fills
    # the MXU M dim, amortizes per-grid-step overhead); if that leaves a single
    # grid step and halving is free, halve so the "parallel" batch axis has >= 2
    # steps and v7x's two TensorCores can both work.
    tb = max(8, min(_round_up(batch_tile, 8), _round_up(batch, 8)))
    b_pad = _round_up(batch, tb)
    if b_pad // tb < 2 and tb >= 16 and tb % 16 == 0:
        tb //= 2
        b_pad = _round_up(batch, tb)

    # ---- wrapper-side im2col for layer 1 (lane density C -> K*K*C) ----
    xhw = jnp.transpose(xb, (2, 3, 0, 1))                       # (H, W, B, C)
    cols = []
    for kh in range(K):
        for kw in range(K):
            cols.append(xhw[kh:kh + s * (oh1 - 1) + 1:s,
                            kw:kw + s * (ow1 - 1) + 1:s])
    x_im2col = jnp.concatenate(cols, axis=-1)                   # (OH1, OW1, B, K*K*C)
    x_im2col = jnp.pad(x_im2col, ((0, 0), (0, 0), (0, b_pad - batch), (0, 0)))
    x_im2col = x_im2col.astype(jnp.bfloat16)

    # ---- fold conv weights to (K*K*Cin, Cout); bf16 feeds the MXU ----
    w_fold = [jnp.transpose(w, (2, 3, 1, 0)).reshape(-1, int(w.shape[0]))
                 .astype(jnp.bfloat16) for w in weights_oihw]
    b_row = [jnp.asarray(b, jnp.float32).reshape(1, -1) for b in biases]

    vmem_est = _estimate_vmem_bytes(tb, spatial, pad_spatial, cins_fold, couts)
    vmem_limit = int(min(max(2 * vmem_est, 32 << 20), 56 << 20))

    kernel = functools.partial(
        _encoder_kernel, kernel_size=K, stride=s, spatial=tuple(spatial),
        pad_spatial=pad_spatial, tb=tb)

    def _const2d(a):
        # Whole array, constant index_map -> stays VMEM-resident across the grid.
        return pl.BlockSpec(a.shape, lambda i: (0, 0))

    out = pl.pallas_call(
        kernel,
        out_shape=jax.ShapeDtypeStruct((oh4, ow4, b_pad, c4), jnp.float32),
        grid=(b_pad // tb,),
        in_specs=[
            pl.BlockSpec((oh1, ow1, tb, cins_fold[0]), lambda i: (0, 0, i, 0)),
            _const2d(w_fold[0]), _const2d(b_row[0]),
            _const2d(w_fold[1]), _const2d(b_row[1]),
            _const2d(w_fold[2]), _const2d(b_row[2]),
            _const2d(w_fold[3]), _const2d(b_row[3]),
        ],
        out_specs=pl.BlockSpec((oh4, ow4, tb, c4), lambda i: (0, 0, i, 0)),
        compiler_params=pltpu.CompilerParams(
            dimension_semantics=("parallel",),
            vmem_limit_bytes=vmem_limit,
        ),
    )(x_im2col, w_fold[0], b_row[0], w_fold[1], b_row[1],
      w_fold[2], b_row[2], w_fold[3], b_row[3])

    # horizontal_forward tail: (OH, OW, B, C) -> (B, C, OH, OW) -> flatten features.
    y = jnp.transpose(out[:, :, :batch, :], (2, 3, 0, 1))
    return y.reshape(lead + (c4 * oh4 * ow4,))


if __name__ == "__main__":
    OBS_C, OBS_H, OBS_W = 3, 32, 32           # observationShape
    DEPTH, KSIZE, STRIDE = 32, 3, 2           # config.depth / kernel_size / stride
    BATCH = 2                                  # config.activation == "ReLU"

    key = jax.random.PRNGKey(0)
    keys = jax.random.split(key, 9)
    k_x, k_params = keys[0], keys[1:]

    x = jax.random.normal(k_x, (BATCH, OBS_C, OBS_H, OBS_W), jnp.float32)

    cins = [OBS_C, DEPTH, DEPTH * 2, DEPTH * 4]
    couts = [DEPTH, DEPTH * 2, DEPTH * 4, DEPTH * 8]
    weights_oihw, biases = [], []
    for l in range(4):
        cin, cout = cins[l], couts[l]
        w = jax.random.normal(k_params[2 * l], (cout, cin, KSIZE, KSIZE),
                              jnp.float32) / np.sqrt(cin * KSIZE * KSIZE)
        b = 0.1 * jax.random.normal(k_params[2 * l + 1], (cout,), jnp.float32)
        weights_oihw.append(w)                 # torch OIHW layout
        biases.append(b)

    fwd = jax.jit(functools.partial(encoder_forward,
                                    kernel_size=KSIZE, stride=STRIDE))
    out = jax.block_until_ready(fwd(x, weights_oihw, biases))

    # Pure-JAX reference == PyTorch Encoder.forward (Conv2d + ReLU x4, then the
    # horizontal_forward flatten).  It mirrors the kernel's MXU numerics (bf16
    # operands, f32 accumulation) so the tolerance can stay tight.
    h = x
    for l in range(4):
        h = lax.conv_general_dilated(
            h.astype(jnp.bfloat16), weights_oihw[l].astype(jnp.bfloat16),
            (STRIDE, STRIDE), "VALID",
            dimension_numbers=("NCHW", "OIHW", "NCHW"),
            preferred_element_type=jnp.float32)
        h = jnp.maximum(h + biases[l].reshape(1, -1, 1, 1), 0.0)
    ref = h.reshape(BATCH, -1)

    np.testing.assert_allclose(np.asarray(out), np.asarray(ref),
                               rtol=2e-3, atol=2e-3)
    print("KERNEL_OK")
</pallas_src>

<mosaic_0001>
module attributes {stable_mosaic.version = 11 : i64} {
  func.func @_encoder_kernel(%arg0: i32, %arg1: memref<15x15x8x27xbf16, #tpu.memory_space<vmem>>, %arg2: memref<27x32xbf16, #tpu.memory_space<vmem>>, %arg3: memref<1x32xf32, #tpu.memory_space<vmem>>, %arg4: memref<288x64xbf16, #tpu.memory_space<vmem>>, %arg5: memref<1x64xf32, #tpu.memory_space<vmem>>, %arg6: memref<576x128xbf16, #tpu.memory_space<vmem>>, %arg7: memref<1x128xf32, #tpu.memory_space<vmem>>, %arg8: memref<1152x256xbf16, #tpu.memory_space<vmem>>, %arg9: memref<1x256xf32, #tpu.memory_space<vmem>>, %arg10: memref<1x1x8x256xf32, #tpu.memory_space<vmem>>) attributes {dimension_semantics = [#tpu.dimension_semantics<parallel>], iteration_bounds = array<i64: 1>, scalar_prefetch = 0 : i64, scratch_operands = 0 : i64, tpu.core_type = #tpu.core_type<tc>, window_params = [{transform_indices = @transform_0, window_bounds = array<i64: 15, 15, 8, 27>}, {pipeline_mode = #tpu.pipeline_mode<synchronous>, transform_indices = @transform_1, window_bounds = array<i64: 27, 32>}, {pipeline_mode = #tpu.pipeline_mode<synchronous>, transform_indices = @transform_2, window_bounds = array<i64: 1, 32>}, {pipeline_mode = #tpu.pipeline_mode<synchronous>, transform_indices = @transform_3, window_bounds = array<i64: 288, 64>}, {pipeline_mode = #tpu.pipeline_mode<synchronous>, transform_indices = @transform_4, window_bounds = array<i64: 1, 64>}, {pipeline_mode = #tpu.pipeline_mode<synchronous>, transform_indices = @transform_5, window_bounds = array<i64: 576, 128>}, {pipeline_mode = #tpu.pipeline_mode<synchronous>, transform_indices = @transform_6, window_bounds = array<i64: 1, 128>}, {pipeline_mode = #tpu.pipeline_mode<synchronous>, transform_indices = @transform_7, window_bounds = array<i64: 1152, 256>}, {pipeline_mode = #tpu.pipeline_mode<synchronous>, transform_indices = @transform_8, window_bounds = array<i64: 1, 256>}, {transform_indices = @transform_9, window_bounds = array<i64: 1, 1, 8, 256>}]} {
    %c0 = arith.constant 0 : index
    %c0_0 = arith.constant 0 : index
    %c0_1 = arith.constant 0 : index
    %c0_2 = arith.constant 0 : index
    %0 = vector.load %arg1[%c0, %c0_0, %c0_1, %c0_2] : memref<15x15x8x27xbf16, #tpu.memory_space<vmem>>, vector<15x15x8x27xbf16>
    %1 = vector.shape_cast %0 : vector<15x15x8x27xbf16> to vector<1800x27xbf16>
    %c0_3 = arith.constant 0 : index
    %c0_4 = arith.constant 0 : index
    %2 = vector.load %arg2[%c0_3, %c0_4] : memref<27x32xbf16, #tpu.memory_space<vmem>>, vector<27x32xbf16>
    %cst = arith.constant dense<0.000000e+00> : vector<1800x32xf32>
    %3 = tpu.matmul %1, %2, %cst {dimension_numbers = #tpu.dot_dimension_numbers<[1], [0], [0], [1], [0, 0, 1, 1], [], []>} : vector<1800x27xbf16>, vector<27x32xbf16>, vector<1800x32xf32> -> vector<1800x32xf32>
    %c0_5 = arith.constant 0 : index
    %c0_6 = arith.constant 0 : index
    %4 = vector.load %arg3[%c0_5, %c0_6] : memref<1x32xf32, #tpu.memory_space<vmem>>, vector<1x32xf32>
    %5 = vector.broadcast %4 : vector<1x32xf32> to vector<1800x32xf32>
    %6 = arith.addf %3, %5 : vector<1800x32xf32>
    %cst_7 = arith.constant 0.000000e+00 : f32
    %7 = vector.broadcast %cst_7 : f32 to vector<1800x32xf32>
    %8 = arith.maximumf %6, %7 : vector<1800x32xf32>
    %9 = vector.shape_cast %8 : vector<1800x32xf32> to vector<15x15x8x32xf32>
    %10 = arith.truncf %9 : vector<15x15x8x32xf32> to vector<15x15x8x32xbf16>
    %cst_8 = arith.constant 0.000000e+00 : bf16
    %11 = vector.broadcast %cst_8 : bf16 to vector<1x15x8x32xbf16>
    %12 = tpu.concatenate %10, %11 in 0 : vector<15x15x8x32xbf16>, vector<1x15x8x32xbf16> -> vector<16x15x8x32xbf16>
    %cst_9 = arith.constant 0.000000e+00 : bf16
    %13 = vector.broadcast %cst_9 : bf16 to vector<16x1x8x32xbf16>
    %14 = tpu.concatenate %12, %13 in 1 : vector<16x15x8x32xbf16>, vector<16x1x8x32xbf16> -> vector<16x16x8x32xbf16>
    %15 = vector.shape_cast %14 : vector<16x16x8x32xbf16> to vector<8x2x8x2x8x32xbf16>
    %16 = vector.extract_strided_slice %15 {offsets = [0, 0, 0, 0, 0, 0], sizes = [7, 1, 7, 1, 8, 32], strides = [1, 1, 1, 1, 1, 1]} : vector<8x2x8x2x8x32xbf16> to vector<7x1x7x1x8x32xbf16>
    %17 = vector.shape_cast %16 : vector<7x1x7x1x8x32xbf16> to vector<7x7x8x32xbf16>
    %18 = vector.extract_strided_slice %15 {offsets = [0, 0, 0, 1, 0, 0], sizes = [7, 1, 7, 1, 8, 32], strides = [1, 1, 1, 1, 1, 1]} : vector<8x2x8x2x8x32xbf16> to vector<7x1x7x1x8x32xbf16>
    %19 = vector.shape_cast %18 : vector<7x1x7x1x8x32xbf16> to vector<7x7x8x32xbf16>
    %20 = vector.extract_strided_slice %15 {offsets = [0, 0, 1, 0, 0, 0], sizes = [7, 1, 7, 1, 8, 32], strides = [1, 1, 1, 1, 1, 1]} : vector<8x2x8x2x8x32xbf16> to vector<7x1x7x1x8x32xbf16>
    %21 = vector.shape_cast %20 : vector<7x1x7x1x8x32xbf16> to vector<7x7x8x32xbf16>
    %22 = vector.extract_strided_slice %15 {offsets = [0, 1, 0, 0, 0, 0], sizes = [7, 1, 7, 1, 8, 32], strides = [1, 1, 1, 1, 1, 1]} : vector<8x2x8x2x8x32xbf16> to vector<7x1x7x1x8x32xbf16>
    %23 = vector.shape_cast %22 : vector<7x1x7x1x8x32xbf16> to vector<7x7x8x32xbf16>
    %24 = vector.extract_strided_slice %15 {offsets = [0, 1, 0, 1, 0, 0], sizes = [7, 1, 7, 1, 8, 32], strides = [1, 1, 1, 1, 1, 1]} : vector<8x2x8x2x8x32xbf16> to vector<7x1x7x1x8x32xbf16>
    %25 = vector.shape_cast %24 : vector<7x1x7x1x8x32xbf16> to vector<7x7x8x32xbf16>
    %26 = vector.extract_strided_slice %15 {offsets = [0, 1, 1, 0, 0, 0], sizes = [7, 1, 7, 1, 8, 32], strides = [1, 1, 1, 1, 1, 1]} : vector<8x2x8x2x8x32xbf16> to vector<7x1x7x1x8x32xbf16>
    %27 = vector.shape_cast %26 : vector<7x1x7x1x8x32xbf16> to vector<7x7x8x32xbf16>
    %28 = vector.extract_strided_slice %15 {offsets = [1, 0, 0, 0, 0, 0], sizes = [7, 1, 7, 1, 8, 32], strides = [1, 1, 1, 1, 1, 1]} : vector<8x2x8x2x8x32xbf16> to vector<7x1x7x1x8x32xbf16>
    %29 = vector.shape_cast %28 : vector<7x1x7x1x8x32xbf16> to vector<7x7x8x32xbf16>
    %30 = vector.extract_strided_slice %15 {offsets = [1, 0, 0, 1, 0, 0], sizes = [7, 1, 7, 1, 8, 32], strides = [1, 1, 1, 1, 1, 1]} : vector<8x2x8x2x8x32xbf16> to vector<7x1x7x1x8x32xbf16>
    %31 = vector.shape_cast %30 : vector<7x1x7x1x8x32xbf16> to vector<7x7x8x32xbf16>
    %32 = vector.extract_strided_slice %15 {offsets = [1, 0, 1, 0, 0, 0], sizes = [7, 1, 7, 1, 8, 32], strides = [1, 1, 1, 1, 1, 1]} : vector<8x2x8x2x8x32xbf16> to vector<7x1x7x1x8x32xbf16>
    %33 = vector.shape_cast %32 : vector<7x1x7x1x8x32xbf16> to vector<7x7x8x32xbf16>
    %34 = tpu.concatenate %17, %19, %21, %23, %25, %27, %29, %31, %33 in 3 : vector<7x7x8x32xbf16>, vector<7x7x8x32xbf16>, vector<7x7x8x32xbf16>, vector<7x7x8x32xbf16>, vector<7x7x8x32xbf16>, vector<7x7x8x32xbf16>, vector<7x7x8x32xbf16>, vector<7x7x8x32xbf16>, vector<7x7x8x32xbf16> -> vector<7x7x8x288xbf16>
    %35 = vector.shape_cast %34 : vector<7x7x8x288xbf16> to vector<392x288xbf16>
    %c0_10 = arith.constant 0 : index
    %c0_11 = arith.constant 0 : index
    %36 = vector.load %arg4[%c0_10, %c0_11] : memref<288x64xbf16, #tpu.memory_space<vmem>>, vector<288x64xbf16>
    %cst_12 = arith.constant dense<0.000000e+00> : vector<392x64xf32>
    %37 = tpu.matmul %35, %36, %cst_12 {dimension_numbers = #tpu.dot_dimension_numbers<[1], [0], [0], [1], [0, 0, 1, 1], [], []>} : vector<392x288xbf16>, vector<288x64xbf16>, vector<392x64xf32> -> vector<392x64xf32>
    %c0_13 = arith.constant 0 : index
    %c0_14 = arith.constant 0 : index
    %38 = vector.load %arg5[%c0_13, %c0_14] : memref<1x64xf32, #tpu.memory_space<vmem>>, vector<1x64xf32>
    %39 = vector.broadcast %38 : vector<1x64xf32> to vector<392x64xf32>
    %40 = arith.addf %37, %39 : vector<392x64xf32>
    %cst_15 = arith.constant 0.000000e+00 : f32
    %41 = vector.broadcast %cst_15 : f32 to vector<392x64xf32>
    %42 = arith.maximumf %40, %41 : vector<392x64xf32>
    %43 = vector.shape_cast %42 : vector<392x64xf32> to vector<7x7x8x64xf32>
    %44 = arith.truncf %43 : vector<7x7x8x64xf32> to vector<7x7x8x64xbf16>
    %cst_16 = arith.constant 0.000000e+00 : bf16
    %45 = vector.broadcast %cst_16 : bf16 to vector<1x7x8x64xbf16>
    %46 = tpu.concatenate %44, %45 in 0 : vector<7x7x8x64xbf16>, vector<1x7x8x64xbf16> -> vector<8x7x8x64xbf16>
    %cst_17 = arith.constant 0.000000e+00 : bf16
    %47 = vector.broadcast %cst_17 : bf16 to vector<8x1x8x64xbf16>
    %48 = tpu.concatenate %46, %47 in 1 : vector<8x7x8x64xbf16>, vector<8x1x8x64xbf16> -> vector<8x8x8x64xbf16>
    %49 = vector.shape_cast %48 : vector<8x8x8x64xbf16> to vector<4x2x4x2x8x64xbf16>
    %50 = vector.extract_strided_slice %49 {offsets = [0, 0, 0, 0, 0, 0], sizes = [3, 1, 3, 1, 8, 64], strides = [1, 1, 1, 1, 1, 1]} : vector<4x2x4x2x8x64xbf16> to vector<3x1x3x1x8x64xbf16>
    %51 = vector.shape_cast %50 : vector<3x1x3x1x8x64xbf16> to vector<3x3x8x64xbf16>
    %52 = vector.extract_strided_slice %49 {offsets = [0, 0, 0, 1, 0, 0], sizes = [3, 1, 3, 1, 8, 64], strides = [1, 1, 1, 1, 1, 1]} : vector<4x2x4x2x8x64xbf16> to vector<3x1x3x1x8x64xbf16>
    %53 = vector.shape_cast %52 : vector<3x1x3x1x8x64xbf16> to vector<3x3x8x64xbf16>
    %54 = vector.extract_strided_slice %49 {offsets = [0, 0, 1, 0, 0, 0], sizes = [3, 1, 3, 1, 8, 64], strides = [1, 1, 1, 1, 1, 1]} : vector<4x2x4x2x8x64xbf16> to vector<3x1x3x1x8x64xbf16>
    %55 = vector.shape_cast %54 : vector<3x1x3x1x8x64xbf16> to vector<3x3x8x64xbf16>
    %56 = vector.extract_strided_slice %49 {offsets = [0, 1, 0, 0, 0, 0], sizes = [3, 1, 3, 1, 8, 64], strides = [1, 1, 1, 1, 1, 1]} : vector<4x2x4x2x8x64xbf16> to vector<3x1x3x1x8x64xbf16>
    %57 = vector.shape_cast %56 : vector<3x1x3x1x8x64xbf16> to vector<3x3x8x64xbf16>
    %58 = vector.extract_strided_slice %49 {offsets = [0, 1, 0, 1, 0, 0], sizes = [3, 1, 3, 1, 8, 64], strides = [1, 1, 1, 1, 1, 1]} : vector<4x2x4x2x8x64xbf16> to vector<3x1x3x1x8x64xbf16>
    %59 = vector.shape_cast %58 : vector<3x1x3x1x8x64xbf16> to vector<3x3x8x64xbf16>
    %60 = vector.extract_strided_slice %49 {offsets = [0, 1, 1, 0, 0, 0], sizes = [3, 1, 3, 1, 8, 64], strides = [1, 1, 1, 1, 1, 1]} : vector<4x2x4x2x8x64xbf16> to vector<3x1x3x1x8x64xbf16>
    %61 = vector.shape_cast %60 : vector<3x1x3x1x8x64xbf16> to vector<3x3x8x64xbf16>
    %62 = vector.extract_strided_slice %49 {offsets = [1, 0, 0, 0, 0, 0], sizes = [3, 1, 3, 1, 8, 64], strides = [1, 1, 1, 1, 1, 1]} : vector<4x2x4x2x8x64xbf16> to vector<3x1x3x1x8x64xbf16>
    %63 = vector.shape_cast %62 : vector<3x1x3x1x8x64xbf16> to vector<3x3x8x64xbf16>
    %64 = vector.extract_strided_slice %49 {offsets = [1, 0, 0, 1, 0, 0], sizes = [3, 1, 3, 1, 8, 64], strides = [1, 1, 1, 1, 1, 1]} : vector<4x2x4x2x8x64xbf16> to vector<3x1x3x1x8x64xbf16>
    %65 = vector.shape_cast %64 : vector<3x1x3x1x8x64xbf16> to vector<3x3x8x64xbf16>
    %66 = vector.extract_strided_slice %49 {offsets = [1, 0, 1, 0, 0, 0], sizes = [3, 1, 3, 1, 8, 64], strides = [1, 1, 1, 1, 1, 1]} : vector<4x2x4x2x8x64xbf16> to vector<3x1x3x1x8x64xbf16>
    %67 = vector.shape_cast %66 : vector<3x1x3x1x8x64xbf16> to vector<3x3x8x64xbf16>
    %68 = tpu.concatenate %51, %53, %55, %57, %59, %61, %63, %65, %67 in 3 : vector<3x3x8x64xbf16>, vector<3x3x8x64xbf16>, vector<3x3x8x64xbf16>, vector<3x3x8x64xbf16>, vector<3x3x8x64xbf16>, vector<3x3x8x64xbf16>, vector<3x3x8x64xbf16>, vector<3x3x8x64xbf16>, vector<3x3x8x64xbf16> -> vector<3x3x8x576xbf16>
    %69 = vector.shape_cast %68 : vector<3x3x8x576xbf16> to vector<72x576xbf16>
    %c0_18 = arith.constant 0 : index
    %c0_19 = arith.constant 0 : index
    %70 = vector.load %arg6[%c0_18, %c0_19] : memref<576x128xbf16, #tpu.memory_space<vmem>>, vector<576x128xbf16>
    %cst_20 = arith.constant dense<0.000000e+00> : vector<72x128xf32>
    %71 = tpu.matmul %69, %70, %cst_20 {dimension_numbers = #tpu.dot_dimension_numbers<[1], [0], [0], [1], [0, 0, 1, 1], [], []>} : vector<72x576xbf16>, vector<576x128xbf16>, vector<72x128xf32> -> vector<72x128xf32>
    %c0_21 = arith.constant 0 : index
    %c0_22 = arith.constant 0 : index
    %72 = vector.load %arg7[%c0_21, %c0_22] : memref<1x128xf32, #tpu.memory_space<vmem>>, vector<1x128xf32>
    %73 = vector.broadcast %72 : vector<1x128xf32> to vector<72x128xf32>
    %74 = arith.addf %71, %73 : vector<72x128xf32>
    %cst_23 = arith.constant 0.000000e+00 : f32
    %75 = vector.broadcast %cst_23 : f32 to vector<72x128xf32>
    %76 = arith.maximumf %74, %75 : vector<72x128xf32>
    %77 = vector.shape_cast %76 : vector<72x128xf32> to vector<3x3x8x128xf32>
    %78 = arith.truncf %77 : vector<3x3x8x128xf32> to vector<3x3x8x128xbf16>
    %cst_24 = arith.constant 0.000000e+00 : bf16
    %79 = vector.broadcast %cst_24 : bf16 to vector<1x3x8x128xbf16>
    %80 = tpu.concatenate %78, %79 in 0 : vector<3x3x8x128xbf16>, vector<1x3x8x128xbf16> -> vector<4x3x8x128xbf16>
    %cst_25 = arith.constant 0.000000e+00 : bf16
    %81 = vector.broadcast %cst_25 : bf16 to vector<4x1x8x128xbf16>
    %82 = tpu.concatenate %80, %81 in 1 : vector<4x3x8x128xbf16>, vector<4x1x8x128xbf16> -> vector<4x4x8x128xbf16>
    %83 = vector.shape_cast %82 : vector<4x4x8x128xbf16> to vector<2x2x2x2x8x128xbf16>
    %84 = vector.extract_strided_slice %83 {offsets = [0, 0, 0, 0, 0, 0], sizes = [1, 1, 1, 1, 8, 128], strides = [1, 1, 1, 1, 1, 1]} : vector<2x2x2x2x8x128xbf16> to vector<1x1x1x1x8x128xbf16>
    %85 = vector.shape_cast %84 : vector<1x1x1x1x8x128xbf16> to vector<1x1x8x128xbf16>
    %86 = vector.extract_strided_slice %83 {offsets = [0, 0, 0, 1, 0, 0], sizes = [1, 1, 1, 1, 8, 128], strides = [1, 1, 1, 1, 1, 1]} : vector<2x2x2x2x8x128xbf16> to vector<1x1x1x1x8x128xbf16>
    %87 = vector.shape_cast %86 : vector<1x1x1x1x8x128xbf16> to vector<1x1x8x128xbf16>
    %88 = vector.extract_strided_slice %83 {offsets = [0, 0, 1, 0, 0, 0], sizes = [1, 1, 1, 1, 8, 128], strides = [1, 1, 1, 1, 1, 1]} : vector<2x2x2x2x8x128xbf16> to vector<1x1x1x1x8x128xbf16>
    %89 = vector.shape_cast %88 : vector<1x1x1x1x8x128xbf16> to vector<1x1x8x128xbf16>
    %90 = vector.extract_strided_slice %83 {offsets = [0, 1, 0, 0, 0, 0], sizes = [1, 1, 1, 1, 8, 128], strides = [1, 1, 1, 1, 1, 1]} : vector<2x2x2x2x8x128xbf16> to vector<1x1x1x1x8x128xbf16>
    %91 = vector.shape_cast %90 : vector<1x1x1x1x8x128xbf16> to vector<1x1x8x128xbf16>
    %92 = vector.extract_strided_slice %83 {offsets = [0, 1, 0, 1, 0, 0], sizes = [1, 1, 1, 1, 8, 128], strides = [1, 1, 1, 1, 1, 1]} : vector<2x2x2x2x8x128xbf16> to vector<1x1x1x1x8x128xbf16>
    %93 = vector.shape_cast %92 : vector<1x1x1x1x8x128xbf16> to vector<1x1x8x128xbf16>
    %94 = vector.extract_strided_slice %83 {offsets = [0, 1, 1, 0, 0, 0], sizes = [1, 1, 1, 1, 8, 128], strides = [1, 1, 1, 1, 1, 1]} : vector<2x2x2x2x8x128xbf16> to vector<1x1x1x1x8x128xbf16>
    %95 = vector.shape_cast %94 : vector<1x1x1x1x8x128xbf16> to vector<1x1x8x128xbf16>
    %96 = vector.extract_strided_slice %83 {offsets = [1, 0, 0, 0, 0, 0], sizes = [1, 1, 1, 1, 8, 128], strides = [1, 1, 1, 1, 1, 1]} : vector<2x2x2x2x8x128xbf16> to vector<1x1x1x1x8x128xbf16>
    %97 = vector.shape_cast %96 : vector<1x1x1x1x8x128xbf16> to vector<1x1x8x128xbf16>
    %98 = vector.extract_strided_slice %83 {offsets = [1, 0, 0, 1, 0, 0], sizes = [1, 1, 1, 1, 8, 128], strides = [1, 1, 1, 1, 1, 1]} : vector<2x2x2x2x8x128xbf16> to vector<1x1x1x1x8x128xbf16>
    %99 = vector.shape_cast %98 : vector<1x1x1x1x8x128xbf16> to vector<1x1x8x128xbf16>
    %100 = vector.extract_strided_slice %83 {offsets = [1, 0, 1, 0, 0, 0], sizes = [1, 1, 1, 1, 8, 128], strides = [1, 1, 1, 1, 1, 1]} : vector<2x2x2x2x8x128xbf16> to vector<1x1x1x1x8x128xbf16>
    %101 = vector.shape_cast %100 : vector<1x1x1x1x8x128xbf16> to vector<1x1x8x128xbf16>
    %102 = tpu.concatenate %85, %87, %89, %91, %93, %95, %97, %99, %101 in 3 : vector<1x1x8x128xbf16>, vector<1x1x8x128xbf16>, vector<1x1x8x128xbf16>, vector<1x1x8x128xbf16>, vector<1x1x8x128xbf16>, vector<1x1x8x128xbf16>, vector<1x1x8x128xbf16>, vector<1x1x8x128xbf16>, vector<1x1x8x128xbf16> -> vector<1x1x8x1152xbf16>
    %103 = vector.shape_cast %102 : vector<1x1x8x1152xbf16> to vector<8x1152xbf16>
    %c0_26 = arith.constant 0 : index
    %c0_27 = arith.constant 0 : index
    %104 = vector.load %arg8[%c0_26, %c0_27] : memref<1152x256xbf16, #tpu.memory_space<vmem>>, vector<1152x256xbf16>
    %cst_28 = arith.constant dense<0.000000e+00> : vector<8x256xf32>
    %105 = tpu.matmul %103, %104, %cst_28 {dimension_numbers = #tpu.dot_dimension_numbers<[1], [0], [0], [1], [0, 0, 1, 1], [], []>} : vector<8x1152xbf16>, vector<1152x256xbf16>, vector<8x256xf32> -> vector<8x256xf32>
    %c0_29 = arith.constant 0 : index
    %c0_30 = arith.constant 0 : index
    %106 = vector.load %arg9[%c0_29, %c0_30] : memref<1x256xf32, #tpu.memory_space<vmem>>, vector<1x256xf32>
    %107 = vector.broadcast %106 : vector<1x256xf32> to vector<8x256xf32>
    %108 = arith.addf %105, %107 : vector<8x256xf32>
    %cst_31 = arith.constant 0.000000e+00 : f32
    %109 = vector.broadcast %cst_31 : f32 to vector<8x256xf32>
    %110 = arith.maximumf %108, %109 : vector<8x256xf32>
    %111 = vector.shape_cast %110 : vector<8x256xf32> to vector<1x1x8x256xf32>
    %c0_32 = arith.constant 0 : index
    %c0_33 = arith.constant 0 : index
    %c0_34 = arith.constant 0 : index
    %c0_35 = arith.constant 0 : index
    %112 = vector.load %arg10[%c0_32, %c0_33, %c0_34, %c0_35] : memref<1x1x8x256xf32, #tpu.memory_space<vmem>>, vector<1x1x8x256xf32>
    tpu.vector_store %arg10[%c0_32, %c0_33, %c0_34, %c0_35], %111 {strides = array<i32>} : memref<1x1x8x256xf32, #tpu.memory_space<vmem>>, vector<1x1x8x256xf32>,
    return
  }
  func.func @transform_0(%arg0: i32) -> (i32, i32, i32, i32) {
    %c0_i32 = arith.constant 0 : i32
    %c0_i32_0 = arith.constant 0 : i32
    %c0_i32_1 = arith.constant 0 : i32
    %c0_i32_2 = arith.constant 0 : i32
    return %c0_i32, %c0_i32_0, %arg0, %c0_i32_1 : i32, i32, i32, i32
  }
  func.func @transform_1(%arg0: i32) -> (i32, i32) {
    %c0_i32 = arith.constant 0 : i32
    %c0_i32_0 = arith.constant 0 : i32
    %c0_i32_1 = arith.constant 0 : i32
    return %c0_i32, %c0_i32_0 : i32, i32
  }
  func.func @transform_2(%arg0: i32) -> (i32, i32) {
    %c0_i32 = arith.constant 0 : i32
    %c0_i32_0 = arith.constant 0 : i32
    %c0_i32_1 = arith.constant 0 : i32
    return %c0_i32, %c0_i32_0 : i32, i32
  }
  func.func @transform_3(%arg0: i32) -> (i32, i32) {
    %c0_i32 = arith.constant 0 : i32
    %c0_i32_0 = arith.constant 0 : i32
    %c0_i32_1 = arith.constant 0 : i32
    return %c0_i32, %c0_i32_0 : i32, i32
  }
  func.func @transform_4(%arg0: i32) -> (i32, i32) {
    %c0_i32 = arith.constant 0 : i32
    %c0_i32_0 = arith.constant 0 : i32
    %c0_i32_1 = arith.constant 0 : i32
    return %c0_i32, %c0_i32_0 : i32, i32
  }
  func.func @transform_5(%arg0: i32) -> (i32, i32) {
    %c0_i32 = arith.constant 0 : i32
    %c0_i32_0 = arith.constant 0 : i32
    %c0_i32_1 = arith.constant 0 : i32
    return %c0_i32, %c0_i32_0 : i32, i32
  }
  func.func @transform_6(%arg0: i32) -> (i32, i32) {
    %c0_i32 = arith.constant 0 : i32
    %c0_i32_0 = arith.constant 0 : i32
    %c0_i32_1 = arith.constant 0 : i32
    return %c0_i32, %c0_i32_0 : i32, i32
  }
  func.func @transform_7(%arg0: i32) -> (i32, i32) {
    %c0_i32 = arith.constant 0 : i32
    %c0_i32_0 = arith.constant 0 : i32
    %c0_i32_1 = arith.constant 0 : i32
    return %c0_i32, %c0_i32_0 : i32, i32
  }
  func.func @transform_8(%arg0: i32) -> (i32, i32) {
    %c0_i32 = arith.constant 0 : i32
    %c0_i32_0 = arith.constant 0 : i32
    %c0_i32_1 = arith.constant 0 : i32
    return %c0_i32, %c0_i32_0 : i32, i32
  }
  func.func @transform_9(%arg0: i32) -> (i32, i32, i32, i32) {
    %c0_i32 = arith.constant 0 : i32
    %c0_i32_0 = arith.constant 0 : i32
    %c0_i32_1 = arith.constant 0 : i32
    %c0_i32_2 = arith.constant 0 : i32
    return %c0_i32, %c0_i32_0, %arg0, %c0_i32_1 : i32, i32, i32, i32
  }
}

</mosaic_0001>

<llo_original>
// kernel: encoder_forward.1
$region0: #{encoder_forward.1}
  #allocation0 [shape = 'u32[]', space=smem, size = 0x4, offset = 0x4, fixed_abs, tag = 'smem constant byte address 0x4 - core index']
  #allocation1 [shape = 'u32[144,128]{1,0:T(1,128)}', space=vmem, size = 0x12000, scoped, tag = 'internal scratch']
  %s0 = inlined_call_operand.vmem [shape: bf16[15,15,8,27], index: 0, kind: input, shape index: {}]
  %s1 = inlined_call_operand.vmem [shape: bf16[27,32], index: 1, kind: input, shape index: {}]
  %s2 = inlined_call_operand.vmem [shape: f32[1,32], index: 2, kind: input, shape index: {}]
  %s3 = inlined_call_operand.vmem [shape: bf16[288,64], index: 3, kind: input, shape index: {}]
  %s4 = inlined_call_operand.vmem [shape: f32[1,64], index: 4, kind: input, shape index: {}]
  %s5 = inlined_call_operand.vmem [shape: bf16[576,128], index: 5, kind: input, shape index: {}]
  %s6 = inlined_call_operand.vmem [shape: f32[1,128], index: 6, kind: input, shape index: {}]
  %s7 = inlined_call_operand.vmem [shape: bf16[1152,256], index: 7, kind: input, shape index: {}]
  %s8 = inlined_call_operand.vmem [shape: f32[1,256], index: 8, kind: input, shape index: {}]
  %s9 = inlined_call_operand.vmem [shape: f32[1,1,8,256], index: 9, kind: output, shape index: {}]
  %s10 = sld [smem:[#allocation0]]
  $region46: #{encoder_forward.1} parent=0
    _
  %s12 = ssub.s32 1, %s10
  %s13 = scalar_select 0, %s12, %s10
  // Predicated region
  $region2: #{encoder_forward.1} parent=0 // pred_check
    _
  $region3: #{encoder_forward.1} parent=0 // pred_check_branch
    %15 = sbr.rel (0) target = $region5
  $region4: #{encoder_forward.1} parent=0 // pred_region
    _
  $region5: #{encoder_forward.1} parent=0 // pred_fallthru
    _
  // Predicated region
  $region6: #{encoder_forward.1} parent=0 // pred_check
    _
  $region7: #{encoder_forward.1} parent=0 // pred_check_branch
    %17 = sbr.rel (0) target = $region9
  $region8: #{encoder_forward.1} parent=0 // pred_region
    _
  $region9: #{encoder_forward.1} parent=0 // pred_fallthru
    _
  // Predicated region
  $region10: #{encoder_forward.1} parent=0 // pred_check
    _
  $region11: #{encoder_forward.1} parent=0 // pred_check_branch
    %19 = sbr.rel (0) target = $region13
  $region12: #{encoder_forward.1} parent=0 // pred_region
    _
  $region13: #{encoder_forward.1} parent=0 // pred_fallthru
    _
  // Predicated region
  $region14: #{encoder_forward.1} parent=0 // pred_check
    _
  $region15: #{encoder_forward.1} parent=0 // pred_check_branch
    %21 = sbr.rel (0) target = $region17
  $region16: #{encoder_forward.1} parent=0 // pred_region
    _
  $region17: #{encoder_forward.1} parent=0 // pred_fallthru
    _
  // Predicated region
  $region18: #{encoder_forward.1} parent=0 // pred_check
    _
  $region19: #{encoder_forward.1} parent=0 // pred_check_branch
    %23 = sbr.rel (0) target = $region21
  $region20: #{encoder_forward.1} parent=0 // pred_region
    _
  $region21: #{encoder_forward.1} parent=0 // pred_fallthru
    _
  // Predicated region
  $region22: #{encoder_forward.1} parent=0 // pred_check
    _
  $region23: #{encoder_forward.1} parent=0 // pred_check_branch
    %25 = sbr.rel (0) target = $region25
  $region24: #{encoder_forward.1} parent=0 // pred_region
    _
  $region25: #{encoder_forward.1} parent=0 // pred_fallthru
    _
  // Predicated region
  $region26: #{encoder_forward.1} parent=0 // pred_check
    _
  $region27: #{encoder_forward.1} parent=0 // pred_check_branch
    %27 = sbr.rel (0) target = $region29
  $region28: #{encoder_forward.1} parent=0 // pred_region
    _
  $region29: #{encoder_forward.1} parent=0 // pred_fallthru
    _
  // Predicated region
  $region30: #{encoder_forward.1} parent=0 // pred_check
    _
  $region31: #{encoder_forward.1} parent=0 // pred_check_branch
    %29 = sbr.rel (0) target = $region33
  $region32: #{encoder_forward.1} parent=0 // pred_region
    _
  $region33: #{encoder_forward.1} parent=0 // pred_fallthru
    _
  // Predicated region
  $region34: #{encoder_forward.1} parent=0 // pred_check
    _
  $region35: #{encoder_forward.1} parent=0 // pred_check_branch
    %31 = sbr.rel (0) target = $region37
  $region36: #{encoder_forward.1} parent=0 // pred_region
    _
  $region37: #{encoder_forward.1} parent=0 // pred_fallthru
    _
  %v33 = vld [vmem:[%s0] sm:$0xf]
  %v34 = vld [vmem:[%s0 + $0x4] sm:$0xf]
  %v35 = vld [vmem:[%s0 + $0x8] sm:$0xf]
  %v36 = vld [vmem:[%s0 + $0xc] sm:$0xf]
  %v37 = vld [vmem:[%s0 + $0x10] sm:$0xf]
  %v38 = vld [vmem:[%s0 + $0x14] sm:$0xf]
  %v39 = vld [vmem:[%s0 + $0x18] sm:$0xf]
  %v40 = vld [vmem:[%s0 + $0x1c] sm:$0xf]
  %v41 = vld [vmem:[%s0 + $0x20] sm:$0xf]
  %v42 = vld [vmem:[%s0 + $0x24] sm:$0xf]
  %v43 = vld [vmem:[%s0 + $0x28] sm:$0xf]
  %v44 = vld [vmem:[%s0 + $0x2c] sm:$0xf]
  %v45 = vld [vmem:[%s0 + $0x30] sm:$0xf]
  %v46 = vld [vmem:[%s0 + $0x34] sm:$0xf]
  %v47 = vld [vmem:[%s0 + $0x38] sm:$0xf]
  %v48 = vld [vmem:[%s0 + $0x3c] sm:$0xf]
  %v49 = vld [vmem:[%s0 + $0x40] sm:$0xf]
  %v50 = vld [vmem:[%s0 + $0x44] sm:$0xf]
  %v51 = vld [vmem:[%s0 + $0x48] sm:$0xf]
  %v52 = vld [vmem:[%s0 + $0x4c] sm:$0xf]
  %v53 = vld [vmem:[%s0 + $0x50] sm:$0xf]
  %v54 = vld [vmem:[%s0 + $0x54] sm:$0xf]
  %v55 = vld [vmem:[%s0 + $0x58] sm:$0xf]
  %v56 = vld [vmem:[%s0 + $0x5c] sm:$0xf]
  %v57 = vld [vmem:[%s0 + $0x60] sm:$0xf]
  %v58 = vld [vmem:[%s0 + $0x64] sm:$0xf]
  %v59 = vld [vmem:[%s0 + $0x68] sm:$0xf]
  %v60 = vld [vmem:[%s0 + $0x6c] sm:$0xf]
  %v61 = vld [vmem:[%s0 + $0x70] sm:$0xf]
  %v62 = vld [vmem:[%s0 + $0x74] sm:$0xf]
  %v63 = vld [vmem:[%s0 + $0x78] sm:$0xf]
  %v64 = vld [vmem:[%s0 + $0x7c] sm:$0xf]
  %v65 = vld [vmem:[%s0 + $0x80] sm:$0xf]
  %v66 = vld [vmem:[%s0 + $0x84] sm:$0xf]
  %v67 = vld [vmem:[%s0 + $0x88] sm:$0xf]
  %v68 = vld [vmem:[%s0 + $0x8c] sm:$0xf]
  %v69 = vld [vmem:[%s0 + $0x90] sm:$0xf]
  %v70 = vld [vmem:[%s0 + $0x94] sm:$0xf]
  %v71 = vld [vmem:[%s0 + $0x98] sm:$0xf]
  %v72 = vld [vmem:[%s0 + $0x9c] sm:$0xf]
  %v73 = vld [vmem:[%s0 + $0xa0] sm:$0xf]
  %v74 = vld [vmem:[%s0 + $0xa4] sm:$0xf]
  %v75 = vld [vmem:[%s0 + $0xa8] sm:$0xf]
  %v76 = vld [vmem:[%s0 + $0xac] sm:$0xf]
  %v77 = vld [vmem:[%s0 + $0xb0] sm:$0xf]
  %v78 = vld [vmem:[%s0 + $0xb4] sm:$0xf]
  %v79 = vld [vmem:[%s0 + $0xb8] sm:$0xf]
  %v80 = vld [vmem:[%s0 + $0xbc] sm:$0xf]
  %v81 = vld [vmem:[%s0 + $0xc0] sm:$0xf]
  %v82 = vld [vmem:[%s0 + $0xc4] sm:$0xf]
  %v83 = vld [vmem:[%s0 + $0xc8] sm:$0xf]
  %v84 = vld [vmem:[%s0 + $0xcc] sm:$0xf]
  %v85 = vld [vmem:[%s0 + $0xd0] sm:$0xf]
  %v86 = vld [vmem:[%s0 + $0xd4] sm:$0xf]
  %v87 = vld [vmem:[%s0 + $0xd8] sm:$0xf]
  %v88 = vld [vmem:[%s0 + $0xdc] sm:$0xf]
  %v89 = vld [vmem:[%s0 + $0xe0] sm:$0xf]
  %v90 = vld [vmem:[%s0 + $0xe4] sm:$0xf]
  %v91 = vld [vmem:[%s0 + $0xe8] sm:$0xf]
  %v92 = vld [vmem:[%s0 + $0xec] sm:$0xf]
  %v93 = vld [vmem:[%s0 + $0xf0] sm:$0xf]
  %v94 = vld [vmem:[%s0 + $0xf4] sm:$0xf]
  %v95 = vld [vmem:[%s0 + $0xf8] sm:$0xf]
  %v96 = vld [vmem:[%s0 + $0xfc] sm:$0xf]
  %v97 = vld [vmem:[%s0 + $0x100] sm:$0xf]
  %v98 = vld [vmem:[%s0 + $0x104] sm:$0xf]
  %v99 = vld [vmem:[%s0 + $0x108] sm:$0xf]
  %v100 = vld [vmem:[%s0 + $0x10c] sm:$0xf]
  %v101 = vld [vmem:[%s0 + $0x110] sm:$0xf]
  %v102 = vld [vmem:[%s0 + $0x114] sm:$0xf]
  %v103 = vld [vmem:[%s0 + $0x118] sm:$0xf]
  %v104 = vld [vmem:[%s0 + $0x11c] sm:$0xf]
  %v105 = vld [vmem:[%s0 + $0x120] sm:$0xf]
  %v106 = vld [vmem:[%s0 + $0x124] sm:$0xf]
  %v107 = vld [vmem:[%s0 + $0x128] sm:$0xf]
  %v108 = vld [vmem:[%s0 + $0x12c] sm:$0xf]
  %v109 = vld [vmem:[%s0 + $0x130] sm:$0xf]
  %v110 = vld [vmem:[%s0 + $0x134] sm:$0xf]
  %v111 = vld [vmem:[%s0 + $0x138] sm:$0xf]
  %v112 = vld [vmem:[%s0 + $0x13c] sm:$0xf]
  %v113 = vld [vmem:[%s0 + $0x140] sm:$0xf]
  %v114 = vld [vmem:[%s0 + $0x144] sm:$0xf]
  %v115 = vld [vmem:[%s0 + $0x148] sm:$0xf]
  %v116 = vld [vmem:[%s0 + $0x14c] sm:$0xf]
  %v117 = vld [vmem:[%s0 + $0x150] sm:$0xf]
  %v118 = vld [vmem:[%s0 + $0x154] sm:$0xf]
  %v119 = vld [vmem:[%s0 + $0x158] sm:$0xf]
  %v120 = vld [vmem:[%s0 + $0x15c] sm:$0xf]
  %v121 = vld [vmem:[%s0 + $0x160] sm:$0xf]
  %v122 = vld [vmem:[%s0 + $0x164] sm:$0xf]
  %v123 = vld [vmem:[%s0 + $0x168] sm:$0xf]
  %v124 = vld [vmem:[%s0 + $0x16c] sm:$0xf]
  %v125 = vld [vmem:[%s0 + $0x170] sm:$0xf]
  %v126 = vld [vmem:[%s0 + $0x174] sm:$0xf]
  %v127 = vld [vmem:[%s0 + $0x178] sm:$0xf]
  %v128 = vld [vmem:[%s0 + $0x17c] sm:$0xf]
  %v129 = vld [vmem:[%s0 + $0x180] sm:$0xf]
  %v130 = vld [vmem:[%s0 + $0x184] sm:$0xf]
  %v131 = vld [vmem:[%s0 + $0x188] sm:$0xf]
  %v132 = vld [vmem:[%s0 + $0x18c] sm:$0xf]
  %v133 = vld [vmem:[%s0 + $0x190] sm:$0xf]
  %v134 = vld [vmem:[%s0 + $0x194] sm:$0xf]
  %v135 = vld [vmem:[%s0 + $0x198] sm:$0xf]
  %v136 = vld [vmem:[%s0 + $0x19c] sm:$0xf]
  %v137 = vld [vmem:[%s0 + $0x1a0] sm:$0xf]
  %v138 = vld [vmem:[%s0 + $0x1a4] sm:$0xf]
  %v139 = vld [vmem:[%s0 + $0x1a8] sm:$0xf]
  %v140 = vld [vmem:[%s0 + $0x1ac] sm:$0xf]
  %v141 = vld [vmem:[%s0 + $0x1b0] sm:$0xf]
  %v142 = vld [vmem:[%s0 + $0x1b4] sm:$0xf]
  %v143 = vld [vmem:[%s0 + $0x1b8] sm:$0xf]
  %v144 = vld [vmem:[%s0 + $0x1bc] sm:$0xf]
  %v145 = vld [vmem:[%s0 + $0x1c0] sm:$0xf]
  %v146 = vld [vmem:[%s0 + $0x1c4] sm:$0xf]
  %v147 = vld [vmem:[%s0 + $0x1c8] sm:$0xf]
  %v148 = vld [vmem:[%s0 + $0x1cc] sm:$0xf]
  %v149 = vld [vmem:[%s0 + $0x1d0] sm:$0xf]
  %v150 = vld [vmem:[%s0 + $0x1d4] sm:$0xf]
  %v151 = vld [vmem:[%s0 + $0x1d8] sm:$0xf]
  %v152 = vld [vmem:[%s0 + $0x1dc] sm:$0xf]
  %v153 = vld [vmem:[%s0 + $0x1e0] sm:$0xf]
  %v154 = vld [vmem:[%s0 + $0x1e4] sm:$0xf]
  %v155 = vld [vmem:[%s0 + $0x1e8] sm:$0xf]
  %v156 = vld [vmem:[%s0 + $0x1ec] sm:$0xf]
  %v157 = vld [vmem:[%s0 + $0x1f0] sm:$0xf]
  %v158 = vld [vmem:[%s0 + $0x1f4] sm:$0xf]
  %v159 = vld [vmem:[%s0 + $0x1f8] sm:$0xf]
  %v160 = vld [vmem:[%s0 + $0x1fc] sm:$0xf]
  %v161 = vld [vmem:[%s0 + $0x200] sm:$0xf]
  %v162 = vld [vmem:[%s0 + $0x204] sm:$0xf]
  %v163 = vld [vmem:[%s0 + $0x208] sm:$0xf]
  %v164 = vld [vmem:[%s0 + $0x20c] sm:$0xf]
  %v165 = vld [vmem:[%s0 + $0x210] sm:$0xf]
  %v166 = vld [vmem:[%s0 + $0x214] sm:$0xf]
  %v167 = vld [vmem:[%s0 + $0x218] sm:$0xf]
  %v168 = vld [vmem:[%s0 + $0x21c] sm:$0xf]
  %v169 = vld [vmem:[%s0 + $0x220] sm:$0xf]
  %v170 = vld [vmem:[%s0 + $0x224] sm:$0xf]
  %v171 = vld [vmem:[%s0 + $0x228] sm:$0xf]
  %v172 = vld [vmem:[%s0 + $0x22c] sm:$0xf]
  %v173 = vld [vmem:[%s0 + $0x230] sm:$0xf]
  %v174 = vld [vmem:[%s0 + $0x234] sm:$0xf]
  %v175 = vld [vmem:[%s0 + $0x238] sm:$0xf]
  %v176 = vld [vmem:[%s0 + $0x23c] sm:$0xf]
  %v177 = vld [vmem:[%s0 + $0x240] sm:$0xf]
  %v178 = vld [vmem:[%s0 + $0x244] sm:$0xf]
  %v179 = vld [vmem:[%s0 + $0x248] sm:$0xf]
  %v180 = vld [vmem:[%s0 + $0x24c] sm:$0xf]
  %v181 = vld [vmem:[%s0 + $0x250] sm:$0xf]
  %v182 = vld [vmem:[%s0 + $0x254] sm:$0xf]
  %v183 = vld [vmem:[%s0 + $0x258] sm:$0xf]
  %v184 = vld [vmem:[%s0 + $0x25c] sm:$0xf]
  %v185 = vld [vmem:[%s0 + $0x260] sm:$0xf]
  %v186 = vld [vmem:[%s0 + $0x264] sm:$0xf]
  %v187 = vld [vmem:[%s0 + $0x268] sm:$0xf]
  %v188 = vld [vmem:[%s0 + $0x26c] sm:$0xf]
  %v189 = vld [vmem:[%s0 + $0x270] sm:$0xf]
  %v190 = vld [vmem:[%s0 + $0x274] sm:$0xf]
  %v191 = vld [vmem:[%s0 + $0x278] sm:$0xf]
  %v192 = vld [vmem:[%s0 + $0x27c] sm:$0xf]
  %v193 = vld [vmem:[%s0 + $0x280] sm:$0xf]
  %v194 = vld [vmem:[%s0 + $0x284] sm:$0xf]
  %v195 = vld [vmem:[%s0 + $0x288] sm:$0xf]
  %v196 = vld [vmem:[%s0 + $0x28c] sm:$0xf]
  %v197 = vld [vmem:[%s0 + $0x290] sm:$0xf]
  %v198 = vld [vmem:[%s0 + $0x294] sm:$0xf]
  %v199 = vld [vmem:[%s0 + $0x298] sm:$0xf]
  %v200 = vld [vmem:[%s0 + $0x29c] sm:$0xf]
  %v201 = vld [vmem:[%s0 + $0x2a0] sm:$0xf]
  %v202 = vld [vmem:[%s0 + $0x2a4] sm:$0xf]
  %v203 = vld [vmem:[%s0 + $0x2a8] sm:$0xf]
  %v204 = vld [vmem:[%s0 + $0x2ac] sm:$0xf]
  %v205 = vld [vmem:[%s0 + $0x2b0] sm:$0xf]
  %v206 = vld [vmem:[%s0 + $0x2b4] sm:$0xf]
  %v207 = vld [vmem:[%s0 + $0x2b8] sm:$0xf]
  %v208 = vld [vmem:[%s0 + $0x2bc] sm:$0xf]
  %v209 = vld [vmem:[%s0 + $0x2c0] sm:$0xf]
  %v210 = vld [vmem:[%s0 + $0x2c4] sm:$0xf]
  %v211 = vld [vmem:[%s0 + $0x2c8] sm:$0xf]
  %v212 = vld [vmem:[%s0 + $0x2cc] sm:$0xf]
  %v213 = vld [vmem:[%s0 + $0x2d0] sm:$0xf]
  %v214 = vld [vmem:[%s0 + $0x2d4] sm:$0xf]
  %v215 = vld [vmem:[%s0 + $0x2d8] sm:$0xf]
  %v216 = vld [vmem:[%s0 + $0x2dc] sm:$0xf]
  %v217 = vld [vmem:[%s0 + $0x2e0] sm:$0xf]
  %v218 = vld [vmem:[%s0 + $0x2e4] sm:$0xf]
  %v219 = vld [vmem:[%s0 + $0x2e8] sm:$0xf]
  %v220 = vld [vmem:[%s0 + $0x2ec] sm:$0xf]
  %v221 = vld [vmem:[%s0 + $0x2f0] sm:$0xf]
  %v222 = vld [vmem:[%s0 + $0x2f4] sm:$0xf]
  %v223 = vld [vmem:[%s0 + $0x2f8] sm:$0xf]
  %v224 = vld [vmem:[%s0 + $0x2fc] sm:$0xf]
  %v225 = vld [vmem:[%s0 + $0x300] sm:$0xf]
  %v226 = vld [vmem:[%s0 + $0x304] sm:$0xf]
  %v227 = vld [vmem:[%s0 + $0x308] sm:$0xf]
  %v228 = vld [vmem:[%s0 + $0x30c] sm:$0xf]
  %v229 = vld [vmem:[%s0 + $0x310] sm:$0xf]
  %v230 = vld [vmem:[%s0 + $0x314] sm:$0xf]
  %v231 = vld [vmem:[%s0 + $0x318] sm:$0xf]
  %v232 = vld [vmem:[%s0 + $0x31c] sm:$0xf]
  %v233 = vld [vmem:[%s0 + $0x320] sm:$0xf]
  %v234 = vld [vmem:[%s0 + $0x324] sm:$0xf]
  %v235 = vld [vmem:[%s0 + $0x328] sm:$0xf]
  %v236 = vld [vmem:[%s0 + $0x32c] sm:$0xf]
  %v237 = vld [vmem:[%s0 + $0x330] sm:$0xf]
  %v238 = vld [vmem:[%s0 + $0x334] sm:$0xf]
  %v239 = vld [vmem:[%s0 + $0x338] sm:$0xf]
  %v240 = vld [vmem:[%s0 + $0x33c] sm:$0xf]
  %v241 = vld [vmem:[%s0 + $0x340] sm:$0xf]
  %v242 = vld [vmem:[%s0 + $0x344] sm:$0xf]
  %v243 = vld [vmem:[%s0 + $0x348] sm:$0xf]
  %v244 = vld [vmem:[%s0 + $0x34c] sm:$0xf]
  %v245 = vld [vmem:[%s0 + $0x350] sm:$0xf]
  %v246 = vld [vmem:[%s0 + $0x354] sm:$0xf]
  %v247 = vld [vmem:[%s0 + $0x358] sm:$0xf]
  %v248 = vld [vmem:[%s0 + $0x35c] sm:$0xf]
  %v249 = vld [vmem:[%s0 + $0x360] sm:$0xf]
  %v250 = vld [vmem:[%s0 + $0x364] sm:$0xf]
  %v251 = vld [vmem:[%s0 + $0x368] sm:$0xf]
  %v252 = vld [vmem:[%s0 + $0x36c] sm:$0xf]
  %v253 = vld [vmem:[%s0 + $0x370] sm:$0xf]
  %v254 = vld [vmem:[%s0 + $0x374] sm:$0xf]
  %v255 = vld [vmem:[%s0 + $0x378] sm:$0xf]
  %v256 = vld [vmem:[%s0 + $0x37c] sm:$0xf]
  %v257 = vld [vmem:[%s0 + $0x380] sm:$0xf]
  %v258 = vld [vmem:[%s1] sm:$0xf]
  %v259 = vld [vmem:[%s1 + $0x4] sm:$0xf]
  %v260 = vld [vmem:[%s1 + $0x8] sm:$0xf]
  %v261 = vld [vmem:[%s1 + $0xc] sm:$0x3]
  %v262 = vld [vmem:[%s2] sm:$0x1]
  %v264 = vlaneseq
  %v265 = vshrl.u32 %v264, 7
  %v266 = vsub.s32 0, %v265
  %v267 = vrot.slane %v262, %v266
  %v494 = vunpack.c.l.b16 %v33
  %v495 = vunpack.c.l.b16 %v34
  %v496 = vunpack.c.l.b16 %v35
  %v497 = vunpack.c.l.b16 %v36
  %v498 = vunpack.c.l.b16 %v37
  %v499 = vunpack.c.l.b16 %v38
  %v500 = vunpack.c.l.b16 %v39
  %v501 = vunpack.c.l.b16 %v40
  %v502 = vunpack.c.l.b16 %v41
  %v503 = vunpack.c.l.b16 %v42
  %v504 = vunpack.c.l.b16 %v43
  %v505 = vunpack.c.l.b16 %v44
  %v506 = vunpack.c.l.b16 %v45
  %v507 = vunpack.c.l.b16 %v46
  %v508 = vunpack.c.l.b16 %v47
  %v509 = vunpack.c.l.b16 %v48
  %v510 = vunpack.c.l.b16 %v49
  %v511 = vunpack.c.l.b16 %v50
  %v512 = vunpack.c.l.b16 %v51
  %v513 = vunpack.c.l.b16 %v52
  %v514 = vunpack.c.l.b16 %v53
  %v515 = vunpack.c.l.b16 %v54
  %v516 = vunpack.c.l.b16 %v55
  %v517 = vunpack.c.l.b16 %v56
  %v518 = vunpack.c.l.b16 %v57
  %v519 = vunpack.c.l.b16 %v58
  %v520 = vunpack.c.l.b16 %v59
  %v521 = vunpack.c.l.b16 %v60
  %v522 = vunpack.c.l.b16 %v61
  %v523 = vunpack.c.l.b16 %v62
  %v524 = vunpack.c.l.b16 %v63
  %v525 = vunpack.c.l.b16 %v64
  %v526 = vunpack.c.l.b16 %v65
  %v527 = vunpack.c.l.b16 %v66
  %v528 = vunpack.c.l.b16 %v67
  %v529 = vunpack.c.l.b16 %v68
  %v530 = vunpack.c.l.b16 %v69
  %v531 = vunpack.c.l.b16 %v70
  %v532 = vunpack.c.l.b16 %v71
  %v533 = vunpack.c.l.b16 %v72
  %v534 = vunpack.c.l.b16 %v73
  %v535 = vunpack.c.l.b16 %v74
  %v536 = vunpack.c.l.b16 %v75
  %v537 = vunpack.c.l.b16 %v76
  %v538 = vunpack.c.l.b16 %v77
  %v539 = vunpack.c.l.b16 %v78
  %v540 = vunpack.c.l.b16 %v79
  %v541 = vunpack.c.l.b16 %v80
  %v542 = vunpack.c.l.b16 %v81
  %v543 = vunpack.c.l.b16 %v82
  %v544 = vunpack.c.l.b16 %v83
  %v545 = vunpack.c.l.b16 %v84
  %v546 = vunpack.c.l.b16 %v85
  %v547 = vunpack.c.l.b16 %v86
  %v548 = vunpack.c.l.b16 %v87
  %v549 = vunpack.c.l.b16 %v88
  %v550 = vunpack.c.l.b16 %v89
  %v551 = vunpack.c.l.b16 %v90
  %v552 = vunpack.c.l.b16 %v91
  %v553 = vunpack.c.l.b16 %v92
  %v554 = vunpack.c.l.b16 %v93
  %v555 = vunpack.c.l.b16 %v94
  %v556 = vunpack.c.l.b16 %v95
  %v557 = vunpack.c.l.b16 %v96
  %v558 = vunpack.c.l.b16 %v97
  %v559 = vunpack.c.l.b16 %v98
  %v560 = vunpack.c.l.b16 %v99
  %v561 = vunpack.c.l.b16 %v100
  %v562 = vunpack.c.l.b16 %v101
  %v563 = vunpack.c.l.b16 %v102
  %v564 = vunpack.c.l.b16 %v103
  %v565 = vunpack.c.l.b16 %v104
  %v566 = vunpack.c.l.b16 %v105
  %v567 = vunpack.c.l.b16 %v106
  %v568 = vunpack.c.l.b16 %v107
  %v569 = vunpack.c.l.b16 %v108
  %v570 = vunpack.c.l.b16 %v109
  %v571 = vunpack.c.l.b16 %v110
  %v572 = vunpack.c.l.b16 %v111
  %v573 = vunpack.c.l.b16 %v112
  %v574 = vunpack.c.l.b16 %v113
  %v575 = vunpack.c.l.b16 %v114
  %v576 = vunpack.c.l.b16 %v115
  %v577 = vunpack.c.l.b16 %v116
  %v578 = vunpack.c.l.b16 %v117
  %v579 = vunpack.c.l.b16 %v118
  %v580 = vunpack.c.l.b16 %v119
  %v581 = vunpack.c.l.b16 %v120
  %v582 = vunpack.c.l.b16 %v121
  %v583 = vunpack.c.l.b16 %v122
  %v584 = vunpack.c.l.b16 %v123
  %v585 = vunpack.c.l.b16 %v124
  %v586 = vunpack.c.l.b16 %v125
  %v587 = vunpack.c.l.b16 %v126
  %v588 = vunpack.c.l.b16 %v127
  %v589 = vunpack.c.l.b16 %v128
  %v590 = vunpack.c.l.b16 %v129
  %v591 = vunpack.c.l.b16 %v130
  %v592 = vunpack.c.l.b16 %v131
  %v593 = vunpack.c.l.b16 %v132
  %v594 = vunpack.c.l.b16 %v133
  %v595 = vunpack.c.l.b16 %v134
  %v596 = vunpack.c.l.b16 %v135
  %v597 = vunpack.c.l.b16 %v136
  %v598 = vunpack.c.l.b16 %v137
  %v599 = vunpack.c.l.b16 %v138
  %v600 = vunpack.c.l.b16 %v139
  %v601 = vunpack.c.l.b16 %v140
  %v602 = vunpack.c.l.b16 %v141
  %v603 = vunpack.c.l.b16 %v142
  %v604 = vunpack.c.l.b16 %v143
  %v605 = vunpack.c.l.b16 %v144
  %v606 = vunpack.c.l.b16 %v145
  %v607 = vunpack.c.l.b16 %v146
  %v608 = vunpack.c.l.b16 %v147
  %v609 = vunpack.c.l.b16 %v148
  %v610 = vunpack.c.l.b16 %v149
  %v611 = vunpack.c.l.b16 %v150
  %v612 = vunpack.c.l.b16 %v151
  %v613 = vunpack.c.l.b16 %v152
  %v614 = vunpack.c.l.b16 %v153
  %v615 = vunpack.c.l.b16 %v154
  %v616 = vunpack.c.l.b16 %v155
  %v617 = vunpack.c.l.b16 %v156
  %v618 = vunpack.c.l.b16 %v157
  %v619 = vunpack.c.l.b16 %v158
  %v620 = vunpack.c.l.b16 %v159
  %v621 = vunpack.c.l.b16 %v160
  %v622 = vunpack.c.l.b16 %v161
  %v623 = vunpack.c.l.b16 %v162
  %v624 = vunpack.c.l.b16 %v163
  %v625 = vunpack.c.l.b16 %v164
  %v626 = vunpack.c.l.b16 %v165
  %v627 = vunpack.c.l.b16 %v166
  %v628 = vunpack.c.l.b16 %v167
  %v629 = vunpack.c.l.b16 %v168
  %v630 = vunpack.c.l.b16 %v169
  %v631 = vunpack.c.l.b16 %v170
  %v632 = vunpack.c.l.b16 %v171
  %v633 = vunpack.c.l.b16 %v172
  %v634 = vunpack.c.l.b16 %v173
  %v635 = vunpack.c.l.b16 %v174
  %v636 = vunpack.c.l.b16 %v175
  %v637 = vunpack.c.l.b16 %v176
  %v638 = vunpack.c.l.b16 %v177
  %v639 = vunpack.c.l.b16 %v178
  %v640 = vunpack.c.l.b16 %v179
  %v641 = vunpack.c.l.b16 %v180
  %v642 = vunpack.c.l.b16 %v181
  %v643 = vunpack.c.l.b16 %v182
  %v644 = vunpack.c.l.b16 %v183
  %v645 = vunpack.c.l.b16 %v184
  %v646 = vunpack.c.l.b16 %v185
  %v647 = vunpack.c.l.b16 %v186
  %v648 = vunpack.c.l.b16 %v187
  %v649 = vunpack.c.l.b16 %v188
  %v650 = vunpack.c.l.b16 %v189
  %v651 = vunpack.c.l.b16 %v190
  %v652 = vunpack.c.l.b16 %v191
  %v653 = vunpack.c.l.b16 %v192
  %v654 = vunpack.c.l.b16 %v193
  %v655 = vunpack.c.l.b16 %v194
  %v656 = vunpack.c.l.b16 %v195
  %v657 = vunpack.c.l.b16 %v196
  %v658 = vunpack.c.l.b16 %v197
  %v659 = vunpack.c.l.b16 %v198
  %v660 = vunpack.c.l.b16 %v199
  %v661 = vunpack.c.l.b16 %v200
  %v662 = vunpack.c.l.b16 %v201
  %v663 = vunpack.c.l.b16 %v202
  %v664 = vunpack.c.l.b16 %v203
  %v665 = vunpack.c.l.b16 %v204
  %v666 = vunpack.c.l.b16 %v205
  %v667 = vunpack.c.l.b16 %v206
  %v668 = vunpack.c.l.b16 %v207
  %v669 = vunpack.c.l.b16 %v208
  %v670 = vunpack.c.l.b16 %v209
  %v671 = vunpack.c.l.b16 %v210
  %v672 = vunpack.c.l.b16 %v211
  %v673 = vunpack.c.l.b16 %v212
  %v674 = vunpack.c.l.b16 %v213
  %v675 = vunpack.c.l.b16 %v214
  %v676 = vunpack.c.l.b16 %v215
  %v677 = vunpack.c.l.b16 %v216
  %v678 = vunpack.c.l.b16 %v217
  %v679 = vunpack.c.l.b16 %v218
  %v680 = vunpack.c.l.b16 %v219
  %v681 = vunpack.c.l.b16 %v220
  %v682 = vunpack.c.l.b16 %v221
  %v683 = vunpack.c.l.b16 %v222
  %v684 = vunpack.c.l.b16 %v223
  %v685 = vunpack.c.l.b16 %v224
  %v686 = vunpack.c.l.b16 %v225
  %v687 = vunpack.c.l.b16 %v226
  %v688 = vunpack.c.l.b16 %v227
  %v689 = vunpack.c.l.b16 %v228
  %v690 = vunpack.c.l.b16 %v229
  %v691 = vunpack.c.l.b16 %v230
  %v692 = vunpack.c.l.b16 %v231
  %v693 = vunpack.c.l.b16 %v232
  %v694 = vunpack.c.l.b16 %v233
  %v695 = vunpack.c.l.b16 %v234
  %v696 = vunpack.c.l.b16 %v235
  %v697 = vunpack.c.l.b16 %v236
  %v698 = vunpack.c.l.b16 %v237
  %v699 = vunpack.c.l.b16 %v238
  %v700 = vunpack.c.l.b16 %v239
  %v701 = vunpack.c.l.b16 %v240
  %v702 = vunpack.c.l.b16 %v241
  %v703 = vunpack.c.l.b16 %v242
  %v704 = vunpack.c.l.b16 %v243
  %v705 = vunpack.c.l.b16 %v244
  %v706 = vunpack.c.l.b16 %v245
  %v707 = vunpack.c.l.b16 %v246
  %v708 = vunpack.c.l.b16 %v247
  %v709 = vunpack.c.l.b16 %v248
  %v710 = vunpack.c.l.b16 %v249
  %v711 = vunpack.c.l.b16 %v250
  %v712 = vunpack.c.l.b16 %v251
  %v713 = vunpack.c.l.b16 %v252
  %v714 = vunpack.c.l.b16 %v253
  %v715 = vunpack.c.l.b16 %v254
  %v716 = vunpack.c.l.b16 %v255
  %v717 = vunpack.c.l.b16 %v256
  %v718 = vunpack.c.l.b16 %v257
  %v719 = vpack.c.b16 %v495, %v494
  %v720 = vpack.c.b16 %v497, %v496
  %v721 = vpack.c.b16 %v499, %v498
  %v722 = vpack.c.b16 %v501, %v500
  %v723 = vpack.c.b16 %v503, %v502
  %v724 = vpack.c.b16 %v505, %v504
  %v725 = vpack.c.b16 %v507, %v506
  %v726 = vpack.c.b16 %v509, %v508
  %v727 = vpack.c.b16 %v511, %v510
  %v728 = vpack.c.b16 %v513, %v512
  %v729 = vpack.c.b16 %v515, %v514
  %v730 = vpack.c.b16 %v517, %v516
  %v731 = vpack.c.b16 %v519, %v518
  %v732 = vpack.c.b16 %v521, %v520
  %v733 = vpack.c.b16 %v523, %v522
  %v734 = vpack.c.b16 %v525, %v524
  %v735 = vpack.c.b16 %v527, %v526
  %v736 = vpack.c.b16 %v529, %v528
  %v737 = vpack.c.b16 %v531, %v530
  %v738 = vpack.c.b16 %v533, %v532
  %v739 = vpack.c.b16 %v535, %v534
  %v740 = vpack.c.b16 %v537, %v536
  %v741 = vpack.c.b16 %v539, %v538
  %v742 = vpack.c.b16 %v541, %v540
  %v743 = vpack.c.b16 %v543, %v542
  %v744 = vpack.c.b16 %v545, %v544
  %v745 = vpack.c.b16 %v547, %v546
  %v746 = vpack.c.b16 %v549, %v548
  %v747 = vpack.c.b16 %v551, %v550
  %v748 = vpack.c.b16 %v553, %v552
  %v749 = vpack.c.b16 %v555, %v554
  %v750 = vpack.c.b16 %v557, %v556
  %v751 = vpack.c.b16 %v559, %v558
  %v752 = vpack.c.b16 %v561, %v560
  %v753 = vpack.c.b16 %v563, %v562
  %v754 = vpack.c.b16 %v565, %v564
  %v755 = vpack.c.b16 %v567, %v566
  %v756 = vpack.c.b16 %v569, %v568
  %v757 = vpack.c.b16 %v571, %v570
  %v758 = vpack.c.b16 %v573, %v572
  %v759 = vpack.c.b16 %v575, %v574
  %v760 = vpack.c.b16 %v577, %v576
  %v761 = vpack.c.b16 %v579, %v578
  %v762 = vpack.c.b16 %v581, %v580
  %v763 = vpack.c.b16 %v583, %v582
  %v764 = vpack.c.b16 %v585, %v584
  %v765 = vpack.c.b16 %v587, %v586
  %v766 = vpack.c.b16 %v589, %v588
  %v767 = vpack.c.b16 %v591, %v590
  %v768 = vpack.c.b16 %v593, %v592
  %v769 = vpack.c.b16 %v595, %v594
  %v770 = vpack.c.b16 %v597, %v596
  %v771 = vpack.c.b16 %v599, %v598
  %v772 = vpack.c.b16 %v601, %v600
  %v773 = vpack.c.b16 %v603, %v602
  %v774 = vpack.c.b16 %v605, %v604
  %v775 = vpack.c.b16 %v607, %v606
  %v776 = vpack.c.b16 %v609, %v608
  %v777 = vpack.c.b16 %v611, %v610
  %v778 = vpack.c.b16 %v613, %v612
  %v779 = vpack.c.b16 %v615, %v614
  %v780 = vpack.c.b16 %v617, %v616
  %v781 = vpack.c.b16 %v619, %v618
  %v782 = vpack.c.b16 %v621, %v620
  %v783 = vpack.c.b16 %v623, %v622
  %v784 = vpack.c.b16 %v625, %v624
  %v785 = vpack.c.b16 %v627, %v626
  %v786 = vpack.c.b16 %v629, %v628
  %v787 = vpack.c.b16 %v631, %v630
  %v788 = vpack.c.b16 %v633, %v632
  %v789 = vpack.c.b16 %v635, %v634
  %v790 = vpack.c.b16 %v637, %v636
  %v791 = vpack.c.b16 %v639, %v638
  %v792 = vpack.c.b16 %v641, %v640
  %v793 = vpack.c.b16 %v643, %v642
  %v794 = vpack.c.b16 %v645, %v644
  %v795 = vpack.c.b16 %v647, %v646
  %v796 = vpack.c.b16 %v649, %v648
  %v797 = vpack.c.b16 %v651, %v650
  %v798 = vpack.c.b16 %v653, %v652
  %v799 = vpack.c.b16 %v655, %v654
  %v800 = vpack.c.b16 %v657, %v656
  %v801 = vpack.c.b16 %v659, %v658
  %v802 = vpack.c.b16 %v661, %v660
  %v803 = vpack.c.b16 %v663, %v662
  %v804 = vpack.c.b16 %v665, %v664
  %v805 = vpack.c.b16 %v667, %v666
  %v806 = vpack.c.b16 %v669, %v668
  %v807 = vpack.c.b16 %v671, %v670
  %v808 = vpack.c.b16 %v673, %v672
  %v809 = vpack.c.b16 %v675, %v674
  %v810 = vpack.c.b16 %v677, %v676
  %v811 = vpack.c.b16 %v679, %v678
  %v812 = vpack.c.b16 %v681, %v680
  %v813 = vpack.c.b16 %v683, %v682
  %v814 = vpack.c.b16 %v685, %v684
  %v815 = vpack.c.b16 %v687, %v686
  %v816 = vpack.c.b16 %v689, %v688
  %v817 = vpack.c.b16 %v691, %v690
  %v818 = vpack.c.b16 %v693, %v692
  %v819 = vpack.c.b16 %v695, %v694
  %v820 = vpack.c.b16 %v697, %v696
  %v821 = vpack.c.b16 %v699, %v698
  %v822 = vpack.c.b16 %v701, %v700
  %v823 = vpack.c.b16 %v703, %v702
  %v824 = vpack.c.b16 %v705, %v704
  %v825 = vpack.c.b16 %v707, %v706
  %v826 = vpack.c.b16 %v709, %v708
  %v827 = vpack.c.b16 %v711, %v710
  %v828 = vpack.c.b16 %v713, %v712
  %v829 = vpack.c.b16 %v715, %v714
  %v830 = vpack.c.b16 %v717, %v716
  %v831 = vpack.c.b16 %v718, %v718
  %v836 = vunpack.c.l.b16 %v258
  %v837 = vunpack.c.l.b16 %v259
  %v838 = vunpack.c.l.b16 %v260
  %v839 = vunpack.c.l.b16 %v261
  %v840 = vpack.c.b16 %v837, %v836
  %v841 = vpack.c.b16 %v839, %v838
  %vm843 = vcmask 220160
  %v845 = vsel %vm843, %v719, 0
  %v848 = vsel %vm843, %v720, 0
  %v851 = vsel %vm843, %v721, 0
  %v854 = vsel %vm843, %v722, 0
  %v857 = vsel %vm843, %v723, 0
  %v860 = vsel %vm843, %v724, 0
  %v863 = vsel %vm843, %v725, 0
  %v866 = vsel %vm843, %v726, 0
  %v869 = vsel %vm843, %v727, 0
  %v872 = vsel %vm843, %v728, 0
  %v875 = vsel %vm843, %v729, 0
  %v878 = vsel %vm843, %v730, 0
  %v881 = vsel %vm843, %v731, 0
  %v884 = vsel %vm843, %v732, 0
  %v887 = vsel %vm843, %v733, 0
  %v890 = vsel %vm843, %v734, 0
  %v893 = vsel %vm843, %v735, 0
  %v896 = vsel %vm843, %v736, 0
  %v899 = vsel %vm843, %v737, 0
  %v902 = vsel %vm843, %v738, 0
  %v905 = vsel %vm843, %v739, 0
  %v908 = vsel %vm843, %v740, 0
  %v911 = vsel %vm843, %v741, 0
  %v914 = vsel %vm843, %v742, 0
  %v917 = vsel %vm843, %v743, 0
  %v920 = vsel %vm843, %v744, 0
  %v923 = vsel %vm843, %v745, 0
  %v926 = vsel %vm843, %v746, 0
  %v929 = vsel %vm843, %v747, 0
  %v932 = vsel %vm843, %v748, 0
  %v935 = vsel %vm843, %v749, 0
  %v938 = vsel %vm843, %v750, 0
  %v941 = vsel %vm843, %v751, 0
  %v944 = vsel %vm843, %v752, 0
  %v947 = vsel %vm843, %v753, 0
  %v950 = vsel %vm843, %v754, 0
  %v953 = vsel %vm843, %v755, 0
  %v956 = vsel %vm843, %v756, 0
  %v959 = vsel %vm843, %v757, 0
  %v962 = vsel %vm843, %v758, 0
  %v965 = vsel %vm843, %v759, 0
  %v968 = vsel %vm843, %v760, 0
  %v971 = vsel %vm843, %v761, 0
  %v974 = vsel %vm843, %v762, 0
  %v977 = vsel %vm843, %v763, 0
  %v980 = vsel %vm843, %v764, 0
  %v983 = vsel %vm843, %v765, 0
  %v986 = vsel %vm843, %v766, 0
  %v989 = vsel %vm843, %v767, 0
  %v992 = vsel %vm843, %v768, 0
  %v995 = vsel %vm843, %v769, 0
  %v998 = vsel %vm843, %v770, 0
  %v1001 = vsel %vm843, %v771, 0
  %v1004 = vsel %vm843, %v772, 0
  %v1007 = vsel %vm843, %v773, 0
  %v1010 = vsel %vm843, %v774, 0
  %v1013 = vsel %vm843, %v775, 0
  %v1016 = vsel %vm843, %v776, 0
  %v1019 = vsel %vm843, %v777, 0
  %v1022 = vsel %vm843, %v778, 0
  %v1025 = vsel %vm843, %v779, 0
  %v1028 = vsel %vm843, %v780, 0
  %v1031 = vsel %vm843, %v781, 0
  %v1034 = vsel %vm843, %v782, 0
  %v1037 = vsel %vm843, %v783, 0
  %v1040 = vsel %vm843, %v784, 0
  %v1043 = vsel %vm843, %v785, 0
  %v1046 = vsel %vm843, %v786, 0
  %v1049 = vsel %vm843, %v787, 0
  %v1052 = vsel %vm843, %v788, 0
  %v1055 = vsel %vm843, %v789, 0
  %v1058 = vsel %vm843, %v790, 0
  %v1061 = vsel %vm843, %v791, 0
  %v1064 = vsel %vm843, %v792, 0
  %v1067 = vsel %vm843, %v793, 0
  %v1070 = vsel %vm843, %v794, 0
  %v1073 = vsel %vm843, %v795, 0
  %v1076 = vsel %vm843, %v796, 0
  %v1079 = vsel %vm843, %v797, 0
  %v1082 = vsel %vm843, %v798, 0
  %v1085 = vsel %vm843, %v799, 0
  %v1088 = vsel %vm843, %v800, 0
  %v1091 = vsel %vm843, %v801, 0
  %v1094 = vsel %vm843, %v802, 0
  %v1097 = vsel %vm843, %v803, 0
  %v1100 = vsel %vm843, %v804, 0
  %v1103 = vsel %vm843, %v805, 0
  %v1106 = vsel %vm843, %v806, 0
  %v1109 = vsel %vm843, %v807, 0
  %v1112 = vsel %vm843, %v808, 0
  %v1115 = vsel %vm843, %v809, 0
  %v1118 = vsel %vm843, %v810, 0
  %v1121 = vsel %vm843, %v811, 0
  %v1124 = vsel %vm843, %v812, 0
  %v1127 = vsel %vm843, %v813, 0
  %v1130 = vsel %vm843, %v814, 0
  %v1133 = vsel %vm843, %v815, 0
  %v1136 = vsel %vm843, %v816, 0
  %v1139 = vsel %vm843, %v817, 0
  %v1142 = vsel %vm843, %v818, 0
  %v1145 = vsel %vm843, %v819, 0
  %v1148 = vsel %vm843, %v820, 0
  %v1151 = vsel %vm843, %v821, 0
  %v1154 = vsel %vm843, %v822, 0
  %v1157 = vsel %vm843, %v823, 0
  %v1160 = vsel %vm843, %v824, 0
  %v1163 = vsel %vm843, %v825, 0
  %v1166 = vsel %vm843, %v826, 0
  %v1169 = vsel %vm843, %v827, 0
  %v1172 = vsel %vm843, %v828, 0
  %v1175 = vsel %vm843, %v829, 0
  %v1178 = vsel %vm843, %v830, 0
  %v1181 = vsel %vm843, %v831, 0
  %vm1183 = vcmask 1044480
  %vm1184 = vcmask 1045504
  %v1185 = vsel %vm1183, 4294967295, 65535
  %v1186 = vsel %vm1184, %v1185, 0
  %v1188 = vand.u32 %v841, %v1186
  %1190 = vmatprep.subr.bf16.mxu0 0
  %1191 = vmatpush1.bf16.msra.mxu0 %v840
  %1192 = vmatprep.subr.bf16.mxu0 0
  %1193 = vmatpush1.bf16.msra.mxu0 %v1188
  %1194 = vmatprep.subr.bf16.mxu0 0
  %1195 = vmatpush1.bf16.msra.mxu0 0
  %1196 = vmatprep.subr.bf16.mxu0 0
  %1197 = vmatpush1.bf16.msra.mxu0 0
  %1198 = vmatprep.subr.bf16.mxu0 0
  %1199 = vmatpush1.bf16.msra.mxu0 0
  %1200 = vmatprep.subr.bf16.mxu0 0
  %1201 = vmatpush1.bf16.msra.mxu0 0
  %1202 = vmatprep.subr.bf16.mxu0 0
  %1203 = vmatpush1.bf16.msra.mxu0 0
  %1204 = vmatprep.subr.bf16.mxu0 0
  %1205 = vmatpush1.bf16.msra.mxu0 0
  %1206 = vmatprep.subr.bf16.mxu0 0
  %1207 = vmatpush1.bf16.msra.mxu0 0
  %1208 = vmatprep.subr.bf16.mxu0 0
  %1209 = vmatpush1.bf16.msra.mxu0 0
  %1210 = vmatprep.subr.bf16.mxu0 0
  %1211 = vmatpush1.bf16.msra.mxu0 0
  %1212 = vmatprep.subr.bf16.mxu0 0
  %1213 = vmatpush1.bf16.msra.mxu0 0
  %1214 = vmatprep.subr.bf16.mxu0 0
  %1215 = vmatpush1.bf16.msra.mxu0 0
  %1216 = vmatprep.subr.bf16.mxu0 0
  %1217 = vmatpush1.bf16.msra.mxu0 0
  %1218 = vmatprep.subr.bf16.mxu0 0
  %1219 = vmatpush1.bf16.msra.mxu0 0
  %1220 = vmatprep.subr.bf16.mxu0 0
  %1221 = vmatpush1.bf16.msra.mxu0 0
  %1222 = vmatprep.mubr.bf16.mxu0 0
  %1223 = vmatmul.mubr.bf16.gmra.mrb[0].mxu0 %v845
  %v1224 = vpop.f32.mrb[0].mxu0
  %v1225 = vadd.f32 %v267, %v1224
  %v1226 = vpop.f32.mrb[0].mxu0
  %v1227 = vpop.f32.mrb[0].mxu0
  %v1228 = vadd.f32 %v267, %v1227
  %v1229 = vpop.f32.mrb[0].mxu0
  %1230 = vmatprep.mubr.bf16.mxu0 0
  %1231 = vmatmul.mubr.bf16.gmra.mrb[0].mxu0 %v848
  %v1232 = vpop.f32.mrb[0].mxu0
  %v1233 = vadd.f32 %v267, %v1232
  %v1234 = vpop.f32.mrb[0].mxu0
  %v1235 = vpop.f32.mrb[0].mxu0
  %v1236 = vadd.f32 %v267, %v1235
  %v1237 = vpop.f32.mrb[0].mxu0
  %1238 = vmatprep.mubr.bf16.mxu0 0
  %1239 = vmatmul.mubr.bf16.gmra.mrb[0].mxu0 %v851
  %v1240 = vpop.f32.mrb[0].mxu0
  %v1241 = vadd.f32 %v267, %v1240
  %v1242 = vpop.f32.mrb[0].mxu0
  %v1243 = vpop.f32.mrb[0].mxu0
  %v1244 = vadd.f32 %v267, %v1243
  %v1245 = vpop.f32.mrb[0].mxu0
  %1246 = vmatprep.mubr.bf16.mxu0 0
  %1247 = vmatmul.mubr.bf16.gmra.mrb[0].mxu0 %v854
  %v1248 = vpop.f32.mrb[0].mxu0
  %v1249 = vadd.f32 %v267, %v1248
  %v1250 = vpop.f32.mrb[0].mxu0
  %v1251 = vpop.f32.mrb[0].mxu0
  %v1252 = vadd.f32 %v267, %v1251
  %v1253 = vpop.f32.mrb[0].mxu0
  %1254 = vmatprep.mubr.bf16.mxu0 0
  %1255 = vmatmul.mubr.bf16.gmra.mrb[0].mxu0 %v857
  %v1256 = vpop.f32.mrb[0].mxu0
  %v1257 = vadd.f32 %v267, %v1256
  %v1258 = vpop.f32.mrb[0].mxu0
  %v1259 = vpop.f32.mrb[0].mxu0
  %v1260 = vadd.f32 %v267, %v1259
  %v1261 = vpop.f32.mrb[0].mxu0
  %1262 = vmatprep.mubr.bf16.mxu0 0
  %1263 = vmatmul.mubr.bf16.gmra.mrb[0].mxu0 %v860
  %v1264 = vpop.f32.mrb[0].mxu0
  %v1265 = vadd.f32 %v267, %v1264
  %v1266 = vpop.f32.mrb[0].mxu0
  %v1267 = vpop.f32.mrb[0].mxu0
  %v1268 = vadd.f32 %v267, %v1267
  %v1269 = vpop.f32.mrb[0].mxu0
  %1270 = vmatprep.mubr.bf16.mxu0 0
  %1271 = vmatmul.mubr.bf16.gmra.mrb[0].mxu0 %v863
  %v1272 = vpop.f32.mrb[0].mxu0
  %v1273 = vadd.f32 %v267, %v1272
  %v1274 = vpop.f32.mrb[0].mxu0
  %v1275 = vpop.f32.mrb[0].mxu0
  %v1276 = vadd.f32 %v267, %v1275
  %v1277 = vpop.f32.mrb[0].mxu0
  %1278 = vmatprep.mubr.bf16.mxu0 0
  %1279 = vmatmul.mubr.bf16.gmra.mrb[0].mxu0 %v866
  %v1280 = vpop.f32.mrb[0].mxu0
  %v1281 = vadd.f32 %v267, %v1280
  %v1282 = vpop.f32.mrb[0].mxu0
  %v1283 = vpop.f32.mrb[0].mxu0
  %v1284 = vadd.f32 %v267, %v1283
  %v1285 = vpop.f32.mrb[0].mxu0
  %1286 = vmatprep.mubr.bf16.mxu0 0
  %1287 = vmatmul.mubr.bf16.gmra.mrb[0].mxu0 %v869
  %v1288 = vpop.f32.mrb[0].mxu0
  %v1289 = vadd.f32 %v267, %v1288
  %v1290 = vpop.f32.mrb[0].mxu0
  %v1291 = vpop.f32.mrb[0].mxu0
  %v1292 = vadd.f32 %v267, %v1291
  %v1293 = vpop.f32.mrb[0].mxu0
  %1294 = vmatprep.mubr.bf16.mxu0 0
  %1295 = vmatmul.mubr.bf16.gmra.mrb[0].mxu0 %v872
  %v1296 = vpop.f32.mrb[0].mxu0
  %v1297 = vadd.f32 %v267, %v1296
  %v1298 = vpop.f32.mrb[0].mxu0
  %v1299 = vpop.f32.mrb[0].mxu0
  %v1300 = vadd.f32 %v267, %v1299
  %v1301 = vpop.f32.mrb[0].mxu0
  %1302 = vmatprep.mubr.bf16.mxu0 0
  %1303 = vmatmul.mubr.bf16.gmra.mrb[0].mxu0 %v875
  %v1304 = vpop.f32.mrb[0].mxu0
  %v1305 = vadd.f32 %v267, %v1304
  %v1306 = vpop.f32.mrb[0].mxu0
  %v1307 = vpop.f32.mrb[0].mxu0
  %v1308 = vadd.f32 %v267, %v1307
  %v1309 = vpop.f32.mrb[0].mxu0
  %1310 = vmatprep.mubr.bf16.mxu0 0
  %1311 = vmatmul.mubr.bf16.gmra.mrb[0].mxu0 %v878
  %v1312 = vpop.f32.mrb[0].mxu0
  %v1313 = vadd.f32 %v267, %v1312
  %v1314 = vpop.f32.mrb[0].mxu0
  %v1315 = vpop.f32.mrb[0].mxu0
  %v1316 = vadd.f32 %v267, %v1315
  %v1317 = vpop.f32.mrb[0].mxu0
  %1318 = vmatprep.mubr.bf16.mxu0 0
  %1319 = vmatmul.mubr.bf16.gmra.mrb[0].mxu0 %v881
  %v1320 = vpop.f32.mrb[0].mxu0
  %v1321 = vadd.f32 %v267, %v1320
  %v1322 = vpop.f32.mrb[0].mxu0
  %v1323 = vpop.f32.mrb[0].mxu0
  %v1324 = vadd.f32 %v267, %v1323
  %v1325 = vpop.f32.mrb[0].mxu0
  %1326 = vmatprep.mubr.bf16.mxu0 0
  %1327 = vmatmul.mubr.bf16.gmra.mrb[0].mxu0 %v884
  %v1328 = vpop.f32.mrb[0].mxu0
  %v1329 = vadd.f32 %v267, %v1328
  %v1330 = vpop.f32.mrb[0].mxu0
  %v1331 = vpop.f32.mrb[0].mxu0
  %v1332 = vadd.f32 %v267, %v1331
  %v1333 = vpop.f32.mrb[0].mxu0
  %1334 = vmatprep.mubr.bf16.mxu0 0
  %1335 = vmatmul.mubr.bf16.gmra.mrb[0].mxu0 %v887
  %v1336 = vpop.f32.mrb[0].mxu0
  %v1337 = vadd.f32 %v267, %v1336
  %v1338 = vpop.f32.mrb[0].mxu0
  %v1339 = vpop.f32.mrb[0].mxu0
  %v1340 = vadd.f32 %v267, %v1339
  %v1341 = vpop.f32.mrb[0].mxu0
  %1342 = vmatprep.mubr.bf16.mxu0 0
  %1343 = vmatmul.mubr.bf16.gmra.mrb[0].mxu0 %v890
  %v1344 = vpop.f32.mrb[0].mxu0
  %v1345 = vadd.f32 %v267, %v1344
  %v1346 = vpop.f32.mrb[0].mxu0
  %v1347 = vpop.f32.mrb[0].mxu0
  %v1348 = vadd.f32 %v267, %v1347
  %v1349 = vpop.f32.mrb[0].mxu0
  %1350 = vmatprep.mubr.bf16.mxu0 0
  %1351 = vmatmul.mubr.bf16.gmra.mrb[0].mxu0 %v893
  %v1352 = vpop.f32.mrb[0].mxu0
  %v1353 = vadd.f32 %v267, %v1352
  %v1354 = vpop.f32.mrb[0].mxu0
  %v1355 = vpop.f32.mrb[0].mxu0
  %v1356 = vadd.f32 %v267, %v1355
  %v1357 = vpop.f32.mrb[0].mxu0
  %1358 = vmatprep.mubr.bf16.mxu0 0
  %1359 = vmatmul.mubr.bf16.gmra.mrb[0].mxu0 %v896
  %v1360 = vpop.f32.mrb[0].mxu0
  %v1361 = vadd.f32 %v267, %v1360
  %v1362 = vpop.f32.mrb[0].mxu0
  %v1363 = vpop.f32.mrb[0].mxu0
  %v1364 = vadd.f32 %v267, %v1363
  %v1365 = vpop.f32.mrb[0].mxu0
  %1366 = vmatprep.mubr.bf16.mxu0 0
  %1367 = vmatmul.mubr.bf16.gmra.mrb[0].mxu0 %v899
  %v1368 = vpop.f32.mrb[0].mxu0
  %v1369 = vadd.f32 %v267, %v1368
  %v1370 = vpop.f32.mrb[0].mxu0
  %v1371 = vpop.f32.mrb[0].mxu0
  %v1372 = vadd.f32 %v267, %v1371
  %v1373 = vpop.f32.mrb[0].mxu0
  %1374 = vmatprep.mubr.bf16.mxu0 0
  %1375 = vmatmul.mubr.bf16.gmra.mrb[0].mxu0 %v902
  %v1376 = vpop.f32.mrb[0].mxu0
  %v1377 = vadd.f32 %v267, %v1376
  %v1378 = vpop.f32.mrb[0].mxu0
  %v1379 = vpop.f32.mrb[0].mxu0
  %v1380 = vadd.f32 %v267, %v1379
  %v1381 = vpop.f32.mrb[0].mxu0
  %1382 = vmatprep.mubr.bf16.mxu0 0
  %1383 = vmatmul.mubr.bf16.gmra.mrb[0].mxu0 %v905
  %v1384 = vpop.f32.mrb[0].mxu0
  %v1385 = vadd.f32 %v267, %v1384
  %v1386 = vpop.f32.mrb[0].mxu0
  %v1387 = vpop.f32.mrb[0].mxu0
  %v1388 = vadd.f32 %v267, %v1387
  %v1389 = vpop.f32.mrb[0].mxu0
  %1390 = vmatprep.mubr.bf16.mxu0 0
  %1391 = vmatmul.mubr.bf16.gmra.mrb[0].mxu0 %v908
  %v1392 = vpop.f32.mrb[0].mxu0
  %v1393 = vadd.f32 %v267, %v1392
  %v1394 = vpop.f32.mrb[0].mxu0
  %v1395 = vpop.f32.mrb[0].mxu0
  %v1396 = vadd.f32 %v267, %v1395
  %v1397 = vpop.f32.mrb[0].mxu0
  %1398 = vmatprep.mubr.bf16.mxu0 0
  %1399 = vmatmul.mubr.bf16.gmra.mrb[0].mxu0 %v911
  %v1400 = vpop.f32.mrb[0].mxu0
  %v1401 = vadd.f32 %v267, %v1400
  %v1402 = vpop.f32.mrb[0].mxu0
  %v1403 = vpop.f32.mrb[0].mxu0
  %v1404 = vadd.f32 %v267, %v1403
  %v1405 = vpop.f32.mrb[0].mxu0
  %1406 = vmatprep.mubr.bf16.mxu0 0
  %1407 = vmatmul.mubr.bf16.gmra.mrb[0].mxu0 %v914
  %v1408 = vpop.f32.mrb[0].mxu0
  %v1409 = vadd.f32 %v267, %v1408
  %v1410 = vpop.f32.mrb[0].mxu0
  %v1411 = vpop.f32.mrb[0].mxu0
  %v1412 = vadd.f32 %v267, %v1411
  %v1413 = vpop.f32.mrb[0].mxu0
  %1414 = vmatprep.mubr.bf16.mxu0 0
  %1415 = vmatmul.mubr.bf16.gmra.mrb[0].mxu0 %v917
  %v1416 = vpop.f32.mrb[0].mxu0
  %v1417 = vadd.f32 %v267, %v1416
  %v1418 = vpop.f32.mrb[0].mxu0
  %v1419 = vpop.f32.mrb[0].mxu0
  %v1420 = vadd.f32 %v267, %v1419
  %v1421 = vpop.f32.mrb[0].mxu0
  %1422 = vmatprep.mubr.bf16.mxu0 0
  %1423 = vmatmul.mubr.bf16.gmra.mrb[0].mxu0 %v920
  %v1424 = vpop.f32.mrb[0].mxu0
  %v1425 = vadd.f32 %v267, %v1424
  %v1426 = vpop.f32.mrb[0].mxu0
  %v1427 = vpop.f32.mrb[0].mxu0
  %v1428 = vadd.f32 %v267, %v1427
  %v1429 = vpop.f32.mrb[0].mxu0
  %1430 = vmatprep.mubr.bf16.mxu0 0
  %1431 = vmatmul.mubr.bf16.gmra.mrb[0].mxu0 %v923
  %v1432 = vpop.f32.mrb[0].mxu0
  %v1433 = vadd.f32 %v267, %v1432
  %v1434 = vpop.f32.mrb[0].mxu0
  %v1435 = vpop.f32.mrb[0].mxu0
  %v1436 = vadd.f32 %v267, %v1435
  %v1437 = vpop.f32.mrb[0].mxu0
  %1438 = vmatprep.mubr.bf16.mxu0 0
  %1439 = vmatmul.mubr.bf16.gmra.mrb[0].mxu0 %v926
  %v1440 = vpop.f32.mrb[0].mxu0
  %v1441 = vadd.f32 %v267, %v1440
  %v1442 = vpop.f32.mrb[0].mxu0
  %v1443 = vpop.f32.mrb[0].mxu0
  %v1444 = vadd.f32 %v267, %v1443
  %v1445 = vpop.f32.mrb[0].mxu0
  %1446 = vmatprep.mubr.bf16.mxu0 0
  %1447 = vmatmul.mubr.bf16.gmra.mrb[0].mxu0 %v929
  %v1448 = vpop.f32.mrb[0].mxu0
  %v1449 = vadd.f32 %v267, %v1448
  %v1450 = vpop.f32.mrb[0].mxu0
  %v1451 = vpop.f32.mrb[0].mxu0
  %v1452 = vadd.f32 %v267, %v1451
  %v1453 = vpop.f32.mrb[0].mxu0
  %1454 = vmatprep.mubr.bf16.mxu0 0
  %1455 = vmatmul.mubr.bf16.gmra.mrb[0].mxu0 %v932
  %v1456 = vpop.f32.mrb[0].mxu0
  %v1457 = vadd.f32 %v267, %v1456
  %v1458 = vpop.f32.mrb[0].mxu0
  %v1459 = vpop.f32.mrb[0].mxu0
  %v1460 = vadd.f32 %v267, %v1459
  %v1461 = vpop.f32.mrb[0].mxu0
  %1462 = vmatprep.mubr.bf16.mxu0 0
  %1463 = vmatmul.mubr.bf16.gmra.mrb[0].mxu0 %v935
  %v1464 = vpop.f32.mrb[0].mxu0
  %v1465 = vadd.f32 %v267, %v1464
  %v1466 = vpop.f32.mrb[0].mxu0
  %v1467 = vpop.f32.mrb[0].mxu0
  %v1468 = vadd.f32 %v267, %v1467
  %v1469 = vpop.f32.mrb[0].mxu0
  %1470 = vmatprep.mubr.bf16.mxu0 0
  %1471 = vmatmul.mubr.bf16.gmra.mrb[0].mxu0 %v938
  %v1472 = vpop.f32.mrb[0].mxu0
  %v1473 = vadd.f32 %v267, %v1472
  %v1474 = vpop.f32.mrb[0].mxu0
  %v1475 = vpop.f32.mrb[0].mxu0
  %v1476 = vadd.f32 %v267, %v1475
  %v1477 = vpop.f32.mrb[0].mxu0
  %1478 = vmatprep.mubr.bf16.mxu0 0
  %1479 = vmatmul.mubr.bf16.gmra.mrb[0].mxu0 %v941
  %v1480 = vpop.f32.mrb[0].mxu0
  %v1481 = vadd.f32 %v267, %v1480
  %v1482 = vpop.f32.mrb[0].mxu0
  %v1483 = vpop.f32.mrb[0].mxu0
  %v1484 = vadd.f32 %v267, %v1483
  %v1485 = vpop.f32.mrb[0].mxu0
  %1486 = vmatprep.mubr.bf16.mxu0 0
  %1487 = vmatmul.mubr.bf16.gmra.mrb[0].mxu0 %v944
  %v1488 = vpop.f32.mrb[0].mxu0
  %v1489 = vadd.f32 %v267, %v1488
  %v1490 = vpop.f32.mrb[0].mxu0
  %v1491 = vpop.f32.mrb[0].mxu0
  %v1492 = vadd.f32 %v267, %v1491
  %v1493 = vpop.f32.mrb[0].mxu0
  %1494 = vmatprep.mubr.bf16.mxu0 0
  %1495 = vmatmul.mubr.bf16.gmra.mrb[0].mxu0 %v947
  %v1496 = vpop.f32.mrb[0].mxu0
  %v1497 = vadd.f32 %v267, %v1496
  %v1498 = vpop.f32.mrb[0].mxu0
  %v1499 = vpop.f32.mrb[0].mxu0
  %v1500 = vadd.f32 %v267, %v1499
  %v1501 = vpop.f32.mrb[0].mxu0
  %1502 = vmatprep.mubr.bf16.mxu0 0
  %1503 = vmatmul.mubr.bf16.gmra.mrb[0].mxu0 %v950
  %v1504 = vpop.f32.mrb[0].mxu0
  %v1505 = vadd.f32 %v267, %v1504
  %v1506 = vpop.f32.mrb[0].mxu0
  %v1507 = vpop.f32.mrb[0].mxu0
  %v1508 = vadd.f32 %v267, %v1507
  %v1509 = vpop.f32.mrb[0].mxu0
  %1510 = vmatprep.mubr.bf16.mxu0 0
  %1511 = vmatmul.mubr.bf16.gmra.mrb[0].mxu0 %v953
  %v1512 = vpop.f32.mrb[0].mxu0
  %v1513 = vadd.f32 %v267, %v1512
  %v1514 = vpop.f32.mrb[0].mxu0
  %v1515 = vpop.f32.mrb[0].mxu0
  %v1516 = vadd.f32 %v267, %v1515
  %v1517 = vpop.f32.mrb[0].mxu0
  %1518 = vmatprep.mubr.bf16.mxu0 0
  %1519 = vmatmul.mubr.bf16.gmra.mrb[0].mxu0 %v956
  %v1520 = vpop.f32.mrb[0].mxu0
  %v1521 = vadd.f32 %v267, %v1520
  %v1522 = vpop.f32.mrb[0].mxu0
  %v1523 = vpop.f32.mrb[0].mxu0
  %v1524 = vadd.f32 %v267, %v1523
  %v1525 = vpop.f32.mrb[0].mxu0
  %1526 = vmatprep.mubr.bf16.mxu0 0
  %1527 = vmatmul.mubr.bf16.gmra.mrb[0].mxu0 %v959
  %v1528 = vpop.f32.mrb[0].mxu0
  %v1529 = vadd.f32 %v267, %v1528
  %v1530 = vpop.f32.mrb[0].mxu0
  %v1531 = vpop.f32.mrb[0].mxu0
  %v1532 = vadd.f32 %v267, %v1531
  %v1533 = vpop.f32.mrb[0].mxu0
  %1534 = vmatprep.mubr.bf16.mxu0 0
  %1535 = vmatmul.mubr.bf16.gmra.mrb[0].mxu0 %v962
  %v1536 = vpop.f32.mrb[0].mxu0
  %v1537 = vadd.f32 %v267, %v1536
  %v1538 = vpop.f32.mrb[0].mxu0
  %v1539 = vpop.f32.mrb[0].mxu0
  %v1540 = vadd.f32 %v267, %v1539
  %v1541 = vpop.f32.mrb[0].mxu0
  %1542 = vmatprep.mubr.bf16.mxu0 0
  %1543 = vmatmul.mubr.bf16.gmra.mrb[0].mxu0 %v965
  %v1544 = vpop.f32.mrb[0].mxu0
  %v1545 = vadd.f32 %v267, %v1544
  %v1546 = vpop.f32.mrb[0].mxu0
  %v1547 = vpop.f32.mrb[0].mxu0
  %v1548 = vadd.f32 %v267, %v1547
  %v1549 = vpop.f32.mrb[0].mxu0
  %1550 = vmatprep.mubr.bf16.mxu0 0
  %1551 = vmatmul.mubr.bf16.gmra.mrb[0].mxu0 %v968
  %v1552 = vpop.f32.mrb[0].mxu0
  %v1553 = vadd.f32 %v267, %v1552
  %v1554 = vpop.f32.mrb[0].mxu0
  %v1555 = vpop.f32.mrb[0].mxu0
  %v1556 = vadd.f32 %v267, %v1555
  %v1557 = vpop.f32.mrb[0].mxu0
  %1558 = vmatprep.mubr.bf16.mxu0 0
  %1559 = vmatmul.mubr.bf16.gmra.mrb[0].mxu0 %v971
  %v1560 = vpop.f32.mrb[0].mxu0
  %v1561 = vadd.f32 %v267, %v1560
  %v1562 = vpop.f32.mrb[0].mxu0
  %v1563 = vpop.f32.mrb[0].mxu0
  %v1564 = vadd.f32 %v267, %v1563
  %v1565 = vpop.f32.mrb[0].mxu0
  %1566 = vmatprep.mubr.bf16.mxu0 0
  %1567 = vmatmul.mubr.bf16.gmra.mrb[0].mxu0 %v974
  %v1568 = vpop.f32.mrb[0].mxu0
  %v1569 = vadd.f32 %v267, %v1568
  %v1570 = vpop.f32.mrb[0].mxu0
  %v1571 = vpop.f32.mrb[0].mxu0
  %v1572 = vadd.f32 %v267, %v1571
  %v1573 = vpop.f32.mrb[0].mxu0
  %1574 = vmatprep.mubr.bf16.mxu0 0
  %1575 = vmatmul.mubr.bf16.gmra.mrb[0].mxu0 %v977
  %v1576 = vpop.f32.mrb[0].mxu0
  %v1577 = vadd.f32 %v267, %v1576
  %v1578 = vpop.f32.mrb[0].mxu0
  %v1579 = vpop.f32.mrb[0].mxu0
  %v1580 = vadd.f32 %v267, %v1579
  %v1581 = vpop.f32.mrb[0].mxu0
  %1582 = vmatprep.mubr.bf16.mxu0 0
  %1583 = vmatmul.mubr.bf16.gmra.mrb[0].mxu0 %v980
  %v1584 = vpop.f32.mrb[0].mxu0
  %v1585 = vadd.f32 %v267, %v1584
  %v1586 = vpop.f32.mrb[0].mxu0
  %v1587 = vpop.f32.mrb[0].mxu0
  %v1588 = vadd.f32 %v267, %v1587
  %v1589 = vpop.f32.mrb[0].mxu0
  %1590 = vmatprep.mubr.bf16.mxu0 0
  %1591 = vmatmul.mubr.bf16.gmra.mrb[0].mxu0 %v983
  %v1592 = vpop.f32.mrb[0].mxu0
  %v1593 = vadd.f32 %v267, %v1592
  %v1594 = vpop.f32.mrb[0].mxu0
  %v1595 = vpop.f32.mrb[0].mxu0
  %v1596 = vadd.f32 %v267, %v1595
  %v1597 = vpop.f32.mrb[0].mxu0
  %1598 = vmatprep.mubr.bf16.mxu0 0
  %1599 = vmatmul.mubr.bf16.gmra.mrb[0].mxu0 %v986
  %v1600 = vpop.f32.mrb[0].mxu0
  %v1601 = vadd.f32 %v267, %v1600
  %v1602 = vpop.f32.mrb[0].mxu0
  %v1603 = vpop.f32.mrb[0].mxu0
  %v1604 = vadd.f32 %v267, %v1603
  %v1605 = vpop.f32.mrb[0].mxu0
  %1606 = vmatprep.mubr.bf16.mxu0 0
  %1607 = vmatmul.mubr.bf16.gmra.mrb[0].mxu0 %v989
  %v1608 = vpop.f32.mrb[0].mxu0
  %v1609 = vadd.f32 %v267, %v1608
  %v1610 = vpop.f32.mrb[0].mxu0
  %v1611 = vpop.f32.mrb[0].mxu0
  %v1612 = vadd.f32 %v267, %v1611
  %v1613 = vpop.f32.mrb[0].mxu0
  %1614 = vmatprep.mubr.bf16.mxu0 0
  %1615 = vmatmul.mubr.bf16.gmra.mrb[0].mxu0 %v992
  %v1616 = vpop.f32.mrb[0].mxu0
  %v1617 = vadd.f32 %v267, %v1616
  %v1618 = vpop.f32.mrb[0].mxu0
  %v1619 = vpop.f32.mrb[0].mxu0
  %v1620 = vadd.f32 %v267, %v1619
  %v1621 = vpop.f32.mrb[0].mxu0
  %1622 = vmatprep.mubr.bf16.mxu0 0
  %1623 = vmatmul.mubr.bf16.gmra.mrb[0].mxu0 %v995
  %v1624 = vpop.f32.mrb[0].mxu0
  %v1625 = vadd.f32 %v267, %v1624
  %v1626 = vpop.f32.mrb[0].mxu0
  %v1627 = vpop.f32.mrb[0].mxu0
  %v1628 = vadd.f32 %v267, %v1627
  %v1629 = vpop.f32.mrb[0].mxu0
  %1630 = vmatprep.mubr.bf16.mxu0 0
  %1631 = vmatmul.mubr.bf16.gmra.mrb[0].mxu0 %v998
  %v1632 = vpop.f32.mrb[0].mxu0
  %v1633 = vadd.f32 %v267, %v1632
  %v1634 = vpop.f32.mrb[0].mxu0
  %v1635 = vpop.f32.mrb[0].mxu0
  %v1636 = vadd.f32 %v267, %v1635
  %v1637 = vpop.f32.mrb[0].mxu0
  %1638 = vmatprep.mubr.bf16.mxu0 0
  %1639 = vmatmul.mubr.bf16.gmra.mrb[0].mxu0 %v1001
  %v1640 = vpop.f32.mrb[0].mxu0
  %v1641 = vadd.f32 %v267, %v1640
  %v1642 = vpop.f32.mrb[0].mxu0
  %v1643 = vpop.f32.mrb[0].mxu0
  %v1644 = vadd.f32 %v267, %v1643
  %v1645 = vpop.f32.mrb[0].mxu0
  %1646 = vmatprep.mubr.bf16.mxu0 0
  %1647 = vmatmul.mubr.bf16.gmra.mrb[0].mxu0 %v1004
  %v1648 = vpop.f32.mrb[0].mxu0
  %v1649 = vadd.f32 %v267, %v1648
  %v1650 = vpop.f32.mrb[0].mxu0
  %v1651 = vpop.f32.mrb[0].mxu0
  %v1652 = vadd.f32 %v267, %v1651
  %v1653 = vpop.f32.mrb[0].mxu0
  %1654 = vmatprep.mubr.bf16.mxu0 0
  %1655 = vmatmul.mubr.bf16.gmra.mrb[0].mxu0 %v1007
  %v1656 = vpop.f32.mrb[0].mxu0
  %v1657 = vadd.f32 %v267, %v1656
  %v1658 = vpop.f32.mrb[0].mxu0
  %v1659 = vpop.f32.mrb[0].mxu0
  %v1660 = vadd.f32 %v267, %v1659
  %v1661 = vpop.f32.mrb[0].mxu0
  %1662 = vmatprep.mubr.bf16.mxu0 0
  %1663 = vmatmul.mubr.bf16.gmra.mrb[0].mxu0 %v1010
  %v1664 = vpop.f32.mrb[0].mxu0
  %v1665 = vadd.f32 %v267, %v1664
  %v1666 = vpop.f32.mrb[0].mxu0
  %v1667 = vpop.f32.mrb[0].mxu0
  %v1668 = vadd.f32 %v267, %v1667
  %v1669 = vpop.f32.mrb[0].mxu0
  %1670 = vmatprep.mubr.bf16.mxu0 0
  %1671 = vmatmul.mubr.bf16.gmra.mrb[0].mxu0 %v1013
  %v1672 = vpop.f32.mrb[0].mxu0
  %v1673 = vadd.f32 %v267, %v1672
  %v1674 = vpop.f32.mrb[0].mxu0
  %v1675 = vpop.f32.mrb[0].mxu0
  %v1676 = vadd.f32 %v267, %v1675
  %v1677 = vpop.f32.mrb[0].mxu0
  %1678 = vmatprep.mubr.bf16.mxu0 0
  %1679 = vmatmul.mubr.bf16.gmra.mrb[0].mxu0 %v1016
  %v1680 = vpop.f32.mrb[0].mxu0
  %v1681 = vadd.f32 %v267, %v1680
  %v1682 = vpop.f32.mrb[0].mxu0
  %v1683 = vpop.f32.mrb[0].mxu0
  %v1684 = vadd.f32 %v267, %v1683
  %v1685 = vpop.f32.mrb[0].mxu0
  %1686 = vmatprep.mubr.bf16.mxu0 0
  %1687 = vmatmul.mubr.bf16.gmra.mrb[0].mxu0 %v1019
  %v1688 = vpop.f32.mrb[0].mxu0
  %v1689 = vadd.f32 %v267, %v1688
  %v1690 = vpop.f32.mrb[0].mxu0
  %v1691 = vpop.f32.mrb[0].mxu0
  %v1692 = vadd.f32 %v267, %v1691
  %v1693 = vpop.f32.mrb[0].mxu0
  %1694 = vmatprep.mubr.bf16.mxu0 0
  %1695 = vmatmul.mubr.bf16.gmra.mrb[0].mxu0 %v1022
  %v1696 = vpop.f32.mrb[0].mxu0
  %v1697 = vadd.f32 %v267, %v1696
  %v1698 = vpop.f32.mrb[0].mxu0
  %v1699 = vpop.f32.mrb[0].mxu0
  %v1700 = vadd.f32 %v267, %v1699
  %v1701 = vpop.f32.mrb[0].mxu0
  %1702 = vmatprep.mubr.bf16.mxu0 0
  %1703 = vmatmul.mubr.bf16.gmra.mrb[0].mxu0 %v1025
  %v1704 = vpop.f32.mrb[0].mxu0
  %v1705 = vadd.f32 %v267, %v1704
  %v1706 = vpop.f32.mrb[0].mxu0
  %v1707 = vpop.f32.mrb[0].mxu0
  %v1708 = vadd.f32 %v267, %v1707
  %v1709 = vpop.f32.mrb[0].mxu0
  %1710 = vmatprep.mubr.bf16.mxu0 0
  %1711 = vmatmul.mubr.bf16.gmra.mrb[0].mxu0 %v1028
  %v1712 = vpop.f32.mrb[0].mxu0
  %v1713 = vadd.f32 %v267, %v1712
  %v1714 = vpop.f32.mrb[0].mxu0
  %v1715 = vpop.f32.mrb[0].mxu0
  %v1716 = vadd.f32 %v267, %v1715
  %v1717 = vpop.f32.mrb[0].mxu0
  %1718 = vmatprep.mubr.bf16.mxu0 0
  %1719 = vmatmul.mubr.bf16.gmra.mrb[0].mxu0 %v1031
  %v1720 = vpop.f32.mrb[0].mxu0
  %v1721 = vadd.f32 %v267, %v1720
  %v1722 = vpop.f32.mrb[0].mxu0
  %v1723 = vpop.f32.mrb[0].mxu0
  %v1724 = vadd.f32 %v267, %v1723
  %v1725 = vpop.f32.mrb[0].mxu0
  %1726 = vmatprep.mubr.bf16.mxu0 0
  %1727 = vmatmul.mubr.bf16.gmra.mrb[0].mxu0 %v1034
  %v1728 = vpop.f32.mrb[0].mxu0
  %v1729 = vadd.f32 %v267, %v1728
  %v1730 = vpop.f32.mrb[0].mxu0
  %v1731 = vpop.f32.mrb[0].mxu0
  %v1732 = vadd.f32 %v267, %v1731
  %v1733 = vpop.f32.mrb[0].mxu0
  %1734 = vmatprep.mubr.bf16.mxu0 0
  %1735 = vmatmul.mubr.bf16.gmra.mrb[0].mxu0 %v1037
  %v1736 = vpop.f32.mrb[0].mxu0
  %v1737 = vadd.f32 %v267, %v1736
  %v1738 = vpop.f32.mrb[0].mxu0
  %v1739 = vpop.f32.mrb[0].mxu0
  %v1740 = vadd.f32 %v267, %v1739
  %v1741 = vpop.f32.mrb[0].mxu0
  %1742 = vmatprep.mubr.bf16.mxu0 0
  %1743 = vmatmul.mubr.bf16.gmra.mrb[0].mxu0 %v1040
  %v1744 = vpop.f32.mrb[0].mxu0
  %v1745 = vadd.f32 %v267, %v1744
  %v1746 = vpop.f32.mrb[0].mxu0
  %v1747 = vpop.f32.mrb[0].mxu0
  %v1748 = vadd.f32 %v267, %v1747
  %v1749 = vpop.f32.mrb[0].mxu0
  %1750 = vmatprep.mubr.bf16.mxu0 0
  %1751 = vmatmul.mubr.bf16.gmra.mrb[0].mxu0 %v1043
  %v1752 = vpop.f32.mrb[0].mxu0
  %v1753 = vadd.f32 %v267, %v1752
  %v1754 = vpop.f32.mrb[0].mxu0
  %v1755 = vpop.f32.mrb[0].mxu0
  %v1756 = vadd.f32 %v267, %v1755
  %v1757 = vpop.f32.mrb[0].mxu0
  %1758 = vmatprep.mubr.bf16.mxu0 0
  %1759 = vmatmul.mubr.bf16.gmra.mrb[0].mxu0 %v1046
  %v1760 = vpop.f32.mrb[0].mxu0
  %v1761 = vadd.f32 %v267, %v1760
  %v1762 = vpop.f32.mrb[0].mxu0
  %v1763 = vpop.f32.mrb[0].mxu0
  %v1764 = vadd.f32 %v267, %v1763
  %v1765 = vpop.f32.mrb[0].mxu0
  %1766 = vmatprep.mubr.bf16.mxu0 0
  %1767 = vmatmul.mubr.bf16.gmra.mrb[0].mxu0 %v1049
  %v1768 = vpop.f32.mrb[0].mxu0
  %v1769 = vadd.f32 %v267, %v1768
  %v1770 = vpop.f32.mrb[0].mxu0
  %v1771 = vpop.f32.mrb[0].mxu0
  %v1772 = vadd.f32 %v267, %v1771
  %v1773 = vpop.f32.mrb[0].mxu0
  %1774 = vmatprep.mubr.bf16.mxu0 0
  %1775 = vmatmul.mubr.bf16.gmra.mrb[0].mxu0 %v1052
  %v1776 = vpop.f32.mrb[0].mxu0
  %v1777 = vadd.f32 %v267, %v1776
  %v1778 = vpop.f32.mrb[0].mxu0
  %v1779 = vpop.f32.mrb[0].mxu0
  %v1780 = vadd.f32 %v267, %v1779
  %v1781 = vpop.f32.mrb[0].mxu0
  %1782 = vmatprep.mubr.bf16.mxu0 0
  %1783 = vmatmul.mubr.bf16.gmra.mrb[0].mxu0 %v1055
  %v1784 = vpop.f32.mrb[0].mxu0
  %v1785 = vadd.f32 %v267, %v1784
  %v1786 = vpop.f32.mrb[0].mxu0
  %v1787 = vpop.f32.mrb[0].mxu0
  %v1788 = vadd.f32 %v267, %v1787
  %v1789 = vpop.f32.mrb[0].mxu0
  %1790 = vmatprep.mubr.bf16.mxu0 0
  %1791 = vmatmul.mubr.bf16.gmra.mrb[0].mxu0 %v1058
  %v1792 = vpop.f32.mrb[0].mxu0
  %v1793 = vadd.f32 %v267, %v1792
  %v1794 = vpop.f32.mrb[0].mxu0
  %v1795 = vpop.f32.mrb[0].mxu0
  %v1796 = vadd.f32 %v267, %v1795
  %v1797 = vpop.f32.mrb[0].mxu0
  %1798 = vmatprep.mubr.bf16.mxu0 0
  %1799 = vmatmul.mubr.bf16.gmra.mrb[0].mxu0 %v1061
  %v1800 = vpop.f32.mrb[0].mxu0
  %v1801 = vadd.f32 %v267, %v1800
  %v1802 = vpop.f32.mrb[0].mxu0
  %v1803 = vpop.f32.mrb[0].mxu0
  %v1804 = vadd.f32 %v267, %v1803
  %v1805 = vpop.f32.mrb[0].mxu0
  %1806 = vmatprep.mubr.bf16.mxu0 0
  %1807 = vmatmul.mubr.bf16.gmra.mrb[0].mxu0 %v1064
  %v1808 = vpop.f32.mrb[0].mxu0
  %v1809 = vadd.f32 %v267, %v1808
  %v1810 = vpop.f32.mrb[0].mxu0
  %v1811 = vpop.f32.mrb[0].mxu0
  %v1812 = vadd.f32 %v267, %v1811
  %v1813 = vpop.f32.mrb[0].mxu0
  %1814 = vmatprep.mubr.bf16.mxu0 0
  %1815 = vmatmul.mubr.bf16.gmra.mrb[0].mxu0 %v1067
  %v1816 = vpop.f32.mrb[0].mxu0
  %v1817 = vadd.f32 %v267, %v1816
  %v1818 = vpop.f32.mrb[0].mxu0
  %v1819 = vpop.f32.mrb[0].mxu0
  %v1820 = vadd.f32 %v267, %v1819
  %v1821 = vpop.f32.mrb[0].mxu0
  %1822 = vmatprep.mubr.bf16.mxu0 0
  %1823 = vmatmul.mubr.bf16.gmra.mrb[0].mxu0 %v1070
  %v1824 = vpop.f32.mrb[0].mxu0
  %v1825 = vadd.f32 %v267, %v1824
  %v1826 = vpop.f32.mrb[0].mxu0
  %v1827 = vpop.f32.mrb[0].mxu0
  %v1828 = vadd.f32 %v267, %v1827
  %v1829 = vpop.f32.mrb[0].mxu0
  %1830 = vmatprep.mubr.bf16.mxu0 0
  %1831 = vmatmul.mubr.bf16.gmra.mrb[0].mxu0 %v1073
  %v1832 = vpop.f32.mrb[0].mxu0
  %v1833 = vadd.f32 %v267, %v1832
  %v1834 = vpop.f32.mrb[0].mxu0
  %v1835 = vpop.f32.mrb[0].mxu0
  %v1836 = vadd.f32 %v267, %v1835
  %v1837 = vpop.f32.mrb[0].mxu0
  %1838 = vmatprep.mubr.bf16.mxu0 0
  %1839 = vmatmul.mubr.bf16.gmra.mrb[0].mxu0 %v1076
  %v1840 = vpop.f32.mrb[0].mxu0
  %v1841 = vadd.f32 %v267, %v1840
  %v1842 = vpop.f32.mrb[0].mxu0
  %v1843 = vpop.f32.mrb[0].mxu0
  %v1844 = vadd.f32 %v267, %v1843
  %v1845 = vpop.f32.mrb[0].mxu0
  %1846 = vmatprep.mubr.bf16.mxu0 0
  %1847 = vmatmul.mubr.bf16.gmra.mrb[0].mxu0 %v1079
  %v1848 = vpop.f32.mrb[0].mxu0
  %v1849 = vadd.f32 %v267, %v1848
  %v1850 = vpop.f32.mrb[0].mxu0
  %v1851 = vpop.f32.mrb[0].mxu0
  %v1852 = vadd.f32 %v267, %v1851
  %v1853 = vpop.f32.mrb[0].mxu0
  %1854 = vmatprep.mubr.bf16.mxu0 0
  %1855 = vmatmul.mubr.bf16.gmra.mrb[0].mxu0 %v1082
  %v1856 = vpop.f32.mrb[0].mxu0
  %v1857 = vadd.f32 %v267, %v1856
  %v1858 = vpop.f32.mrb[0].mxu0
  %v1859 = vpop.f32.mrb[0].mxu0
  %v1860 = vadd.f32 %v267, %v1859
  %v1861 = vpop.f32.mrb[0].mxu0
  %1862 = vmatprep.mubr.bf16.mxu0 0
  %1863 = vmatmul.mubr.bf16.gmra.mrb[0].mxu0 %v1085
  %v1864 = vpop.f32.mrb[0].mxu0
  %v1865 = vadd.f32 %v267, %v1864
  %v1866 = vpop.f32.mrb[0].mxu0
  %v1867 = vpop.f32.mrb[0].mxu0
  %v1868 = vadd.f32 %v267, %v1867
  %v1869 = vpop.f32.mrb[0].mxu0
  %1870 = vmatprep.mubr.bf16.mxu0 0
  %1871 = vmatmul.mubr.bf16.gmra.mrb[0].mxu0 %v1088
  %v1872 = vpop.f32.mrb[0].mxu0
  %v1873 = vadd.f32 %v267, %v1872
  %v1874 = vpop.f32.mrb[0].mxu0
  %v1875 = vpop.f32.mrb[0].mxu0
  %v1876 = vadd.f32 %v267, %v1875
  %v1877 = vpop.f32.mrb[0].mxu0
  %1878 = vmatprep.mubr.bf16.mxu0 0
  %1879 = vmatmul.mubr.bf16.gmra.mrb[0].mxu0 %v1091
  %v1880 = vpop.f32.mrb[0].mxu0
  %v1881 = vadd.f32 %v267, %v1880
  %v1882 = vpop.f32.mrb[0].mxu0
  %v1883 = vpop.f32.mrb[0].mxu0
  %v1884 = vadd.f32 %v267, %v1883
  %v1885 = vpop.f32.mrb[0].mxu0
  %1886 = vmatprep.mubr.bf16.mxu0 0
  %1887 = vmatmul.mubr.bf16.gmra.mrb[0].mxu0 %v1094
  %v1888 = vpop.f32.mrb[0].mxu0
  %v1889 = vadd.f32 %v267, %v1888
  %v1890 = vpop.f32.mrb[0].mxu0
  %v1891 = vpop.f32.mrb[0].mxu0
  %v1892 = vadd.f32 %v267, %v1891
  %v1893 = vpop.f32.mrb[0].mxu0
  %1894 = vmatprep.mubr.bf16.mxu0 0
  %1895 = vmatmul.mubr.bf16.gmra.mrb[0].mxu0 %v1097
  %v1896 = vpop.f32.mrb[0].mxu0
  %v1897 = vadd.f32 %v267, %v1896
  %v1898 = vpop.f32.mrb[0].mxu0
  %v1899 = vpop.f32.mrb[0].mxu0
  %v1900 = vadd.f32 %v267, %v1899
  %v1901 = vpop.f32.mrb[0].mxu0
  %1902 = vmatprep.mubr.bf16.mxu0 0
  %1903 = vmatmul.mubr.bf16.gmra.mrb[0].mxu0 %v1100
  %v1904 = vpop.f32.mrb[0].mxu0
  %v1905 = vadd.f32 %v267, %v1904
  %v1906 = vpop.f32.mrb[0].mxu0
  %v1907 = vpop.f32.mrb[0].mxu0
  %v1908 = vadd.f32 %v267, %v1907
  %v1909 = vpop.f32.mrb[0].mxu0
  %1910 = vmatprep.mubr.bf16.mxu0 0
  %1911 = vmatmul.mubr.bf16.gmra.mrb[0].mxu0 %v1103
  %v1912 = vpop.f32.mrb[0].mxu0
  %v1913 = vadd.f32 %v267, %v1912
  %v1914 = vpop.f32.mrb[0].mxu0
  %v1915 = vpop.f32.mrb[0].mxu0
  %v1916 = vadd.f32 %v267, %v1915
  %v1917 = vpop.f32.mrb[0].mxu0
  %1918 = vmatprep.mubr.bf16.mxu0 0
  %1919 = vmatmul.mubr.bf16.gmra.mrb[0].mxu0 %v1106
  %v1920 = vpop.f32.mrb[0].mxu0
  %v1921 = vadd.f32 %v267, %v1920
  %v1922 = vpop.f32.mrb[0].mxu0
  %v1923 = vpop.f32.mrb[0].mxu0
  %v1924 = vadd.f32 %v267, %v1923
  %v1925 = vpop.f32.mrb[0].mxu0
  %1926 = vmatprep.mubr.bf16.mxu0 0
  %1927 = vmatmul.mubr.bf16.gmra.mrb[0].mxu0 %v1109
  %v1928 = vpop.f32.mrb[0].mxu0
  %v1929 = vadd.f32 %v267, %v1928
  %v1930 = vpop.f32.mrb[0].mxu0
  %v1931 = vpop.f32.mrb[0].mxu0
  %v1932 = vadd.f32 %v267, %v1931
  %v1933 = vpop.f32.mrb[0].mxu0
  %1934 = vmatprep.mubr.bf16.mxu0 0
  %1935 = vmatmul.mubr.bf16.gmra.mrb[0].mxu0 %v1112
  %v1936 = vpop.f32.mrb[0].mxu0
  %v1937 = vadd.f32 %v267, %v1936
  %v1938 = vpop.f32.mrb[0].mxu0
  %v1939 = vpop.f32.mrb[0].mxu0
  %v1940 = vadd.f32 %v267, %v1939
  %v1941 = vpop.f32.mrb[0].mxu0
  %1942 = vmatprep.mubr.bf16.mxu0 0
  %1943 = vmatmul.mubr.bf16.gmra.mrb[0].mxu0 %v1115
  %v1944 = vpop.f32.mrb[0].mxu0
  %v1945 = vadd.f32 %v267, %v1944
  %v1946 = vpop.f32.mrb[0].mxu0
  %v1947 = vpop.f32.mrb[0].mxu0
  %v1948 = vadd.f32 %v267, %v1947
  %v1949 = vpop.f32.mrb[0].mxu0
  %1950 = vmatprep.mubr.bf16.mxu0 0
  %1951 = vmatmul.mubr.bf16.gmra.mrb[0].mxu0 %v1118
  %v1952 = vpop.f32.mrb[0].mxu0
  %v1953 = vadd.f32 %v267, %v1952
  %v1954 = vpop.f32.mrb[0].mxu0
  %v1955 = vpop.f32.mrb[0].mxu0
  %v1956 = vadd.f32 %v267, %v1955
  %v1957 = vpop.f32.mrb[0].mxu0
  %1958 = vmatprep.mubr.bf16.mxu0 0
  %1959 = vmatmul.mubr.bf16.gmra.mrb[0].mxu0 %v1121
  %v1960 = vpop.f32.mrb[0].mxu0
  %v1961 = vadd.f32 %v267, %v1960
  %v1962 = vpop.f32.mrb[0].mxu0
  %v1963 = vpop.f32.mrb[0].mxu0
  %v1964 = vadd.f32 %v267, %v1963
  %v1965 = vpop.f32.mrb[0].mxu0
  %1966 = vmatprep.mubr.bf16.mxu0 0
  %1967 = vmatmul.mubr.bf16.gmra.mrb[0].mxu0 %v1124
  %v1968 = vpop.f32.mrb[0].mxu0
  %v1969 = vadd.f32 %v267, %v1968
  %v1970 = vpop.f32.mrb[0].mxu0
  %v1971 = vpop.f32.mrb[0].mxu0
  %v1972 = vadd.f32 %v267, %v1971
  %v1973 = vpop.f32.mrb[0].mxu0
  %1974 = vmatprep.mubr.bf16.mxu0 0
  %1975 = vmatmul.mubr.bf16.gmra.mrb[0].mxu0 %v1127
  %v1976 = vpop.f32.mrb[0].mxu0
  %v1977 = vadd.f32 %v267, %v1976
  %v1978 = vpop.f32.mrb[0].mxu0
  %v1979 = vpop.f32.mrb[0].mxu0
  %v1980 = vadd.f32 %v267, %v1979
  %v1981 = vpop.f32.mrb[0].mxu0
  %1982 = vmatprep.mubr.bf16.mxu0 0
  %1983 = vmatmul.mubr.bf16.gmra.mrb[0].mxu0 %v1130
  %v1984 = vpop.f32.mrb[0].mxu0
  %v1985 = vadd.f32 %v267, %v1984
  %v1986 = vpop.f32.mrb[0].mxu0
  %v1987 = vpop.f32.mrb[0].mxu0
  %v1988 = vadd.f32 %v267, %v1987
  %v1989 = vpop.f32.mrb[0].mxu0
  %1990 = vmatprep.mubr.bf16.mxu0 0
  %1991 = vmatmul.mubr.bf16.gmra.mrb[0].mxu0 %v1133
  %v1992 = vpop.f32.mrb[0].mxu0
  %v1993 = vadd.f32 %v267, %v1992
  %v1994 = vpop.f32.mrb[0].mxu0
  %v1995 = vpop.f32.mrb[0].mxu0
  %v1996 = vadd.f32 %v267, %v1995
  %v1997 = vpop.f32.mrb[0].mxu0
  %1998 = vmatprep.mubr.bf16.mxu0 0
  %1999 = vmatmul.mubr.bf16.gmra.mrb[0].mxu0 %v1136
  %v2000 = vpop.f32.mrb[0].mxu0
  %v2001 = vadd.f32 %v267, %v2000
  %v2002 = vpop.f32.mrb[0].mxu0
  %v2003 = vpop.f32.mrb[0].mxu0
  %v2004 = vadd.f32 %v267, %v2003
  %v2005 = vpop.f32.mrb[0].mxu0
  %2006 = vmatprep.mubr.bf16.mxu0 0
  %2007 = vmatmul.mubr.bf16.gmra.mrb[0].mxu0 %v1139
  %v2008 = vpop.f32.mrb[0].mxu0
  %v2009 = vadd.f32 %v267, %v2008
  %v2010 = vpop.f32.mrb[0].mxu0
  %v2011 = vpop.f32.mrb[0].mxu0
  %v2012 = vadd.f32 %v267, %v2011
  %v2013 = vpop.f32.mrb[0].mxu0
  %2014 = vmatprep.mubr.bf16.mxu0 0
  %2015 = vmatmul.mubr.bf16.gmra.mrb[0].mxu0 %v1142
  %v2016 = vpop.f32.mrb[0].mxu0
  %v2017 = vadd.f32 %v267, %v2016
  %v2018 = vpop.f32.mrb[0].mxu0
  %v2019 = vpop.f32.mrb[0].mxu0
  %v2020 = vadd.f32 %v267, %v2019
  %v2021 = vpop.f32.mrb[0].mxu0
  %2022 = vmatprep.mubr.bf16.mxu0 0
  %2023 = vmatmul.mubr.bf16.gmra.mrb[0].mxu0 %v1145
  %v2024 = vpop.f32.mrb[0].mxu0
  %v2025 = vadd.f32 %v267, %v2024
  %v2026 = vpop.f32.mrb[0].mxu0
  %v2027 = vpop.f32.mrb[0].mxu0
  %v2028 = vadd.f32 %v267, %v2027
  %v2029 = vpop.f32.mrb[0].mxu0
  %2030 = vmatprep.mubr.bf16.mxu0 0
  %2031 = vmatmul.mubr.bf16.gmra.mrb[0].mxu0 %v1148
  %v2032 = vpop.f32.mrb[0].mxu0
  %v2033 = vadd.f32 %v267, %v2032
  %v2034 = vpop.f32.mrb[0].mxu0
  %v2035 = vpop.f32.mrb[0].mxu0
  %v2036 = vadd.f32 %v267, %v2035
  %v2037 = vpop.f32.mrb[0].mxu0
  %2038 = vmatprep.mubr.bf16.mxu0 0
  %2039 = vmatmul.mubr.bf16.gmra.mrb[0].mxu0 %v1151
  %v2040 = vpop.f32.mrb[0].mxu0
  %v2041 = vadd.f32 %v267, %v2040
  %v2042 = vpop.f32.mrb[0].mxu0
  %v2043 = vpop.f32.mrb[0].mxu0
  %v2044 = vadd.f32 %v267, %v2043
  %v2045 = vpop.f32.mrb[0].mxu0
  %2046 = vmatprep.mubr.bf16.mxu0 0
  %2047 = vmatmul.mubr.bf16.gmra.mrb[0].mxu0 %v1154
  %v2048 = vpop.f32.mrb[0].mxu0
  %v2049 = vadd.f32 %v267, %v2048
  %v2050 = vpop.f32.mrb[0].mxu0
  %v2051 = vpop.f32.mrb[0].mxu0
  %v2052 = vadd.f32 %v267, %v2051
  %v2053 = vpop.f32.mrb[0].mxu0
  %2054 = vmatprep.mubr.bf16.mxu0 0
  %2055 = vmatmul.mubr.bf16.gmra.mrb[0].mxu0 %v1157
  %v2056 = vpop.f32.mrb[0].mxu0
  %v2057 = vadd.f32 %v267, %v2056
  %v2058 = vpop.f32.mrb[0].mxu0
  %v2059 = vpop.f32.mrb[0].mxu0
  %v2060 = vadd.f32 %v267, %v2059
  %v2061 = vpop.f32.mrb[0].mxu0
  %2062 = vmatprep.mubr.bf16.mxu0 0
  %2063 = vmatmul.mubr.bf16.gmra.mrb[0].mxu0 %v1160
  %v2064 = vpop.f32.mrb[0].mxu0
  %v2065 = vadd.f32 %v267, %v2064
  %v2066 = vpop.f32.mrb[0].mxu0
  %v2067 = vpop.f32.mrb[0].mxu0
  %v2068 = vadd.f32 %v267, %v2067
  %v2069 = vpop.f32.mrb[0].mxu0
  %2070 = vmatprep.mubr.bf16.mxu0 0
  %2071 = vmatmul.mubr.bf16.gmra.mrb[0].mxu0 %v1163
  %v2072 = vpop.f32.mrb[0].mxu0
  %v2073 = vadd.f32 %v267, %v2072
  %v2074 = vpop.f32.mrb[0].mxu0
  %v2075 = vpop.f32.mrb[0].mxu0
  %v2076 = vadd.f32 %v267, %v2075
  %v2077 = vpop.f32.mrb[0].mxu0
  %2078 = vmatprep.mubr.bf16.mxu0 0
  %2079 = vmatmul.mubr.bf16.gmra.mrb[0].mxu0 %v1166
  %v2080 = vpop.f32.mrb[0].mxu0
  %v2081 = vadd.f32 %v267, %v2080
  %v2082 = vpop.f32.mrb[0].mxu0
  %v2083 = vpop.f32.mrb[0].mxu0
  %v2084 = vadd.f32 %v267, %v2083
  %v2085 = vpop.f32.mrb[0].mxu0
  %2086 = vmatprep.mubr.bf16.mxu0 0
  %2087 = vmatmul.mubr.bf16.gmra.mrb[0].mxu0 %v1169
  %v2088 = vpop.f32.mrb[0].mxu0
  %v2089 = vadd.f32 %v267, %v2088
  %v2090 = vpop.f32.mrb[0].mxu0
  %v2091 = vpop.f32.mrb[0].mxu0
  %v2092 = vadd.f32 %v267, %v2091
  %v2093 = vpop.f32.mrb[0].mxu0
  %2094 = vmatprep.mubr.bf16.mxu0 0
  %2095 = vmatmul.mubr.bf16.gmra.mrb[0].mxu0 %v1172
  %v2096 = vpop.f32.mrb[0].mxu0
  %v2097 = vadd.f32 %v267, %v2096
  %v2098 = vpop.f32.mrb[0].mxu0
  %v2099 = vpop.f32.mrb[0].mxu0
  %v2100 = vadd.f32 %v267, %v2099
  %v2101 = vpop.f32.mrb[0].mxu0
  %2102 = vmatprep.mubr.bf16.mxu0 0
  %2103 = vmatmul.mubr.bf16.gmra.mrb[0].mxu0 %v1175
  %v2104 = vpop.f32.mrb[0].mxu0
  %v2105 = vadd.f32 %v267, %v2104
  %v2106 = vpop.f32.mrb[0].mxu0
  %v2107 = vpop.f32.mrb[0].mxu0
  %v2108 = vadd.f32 %v267, %v2107
  %v2109 = vpop.f32.mrb[0].mxu0
  %2110 = vmatprep.mubr.bf16.mxu0 0
  %2111 = vmatmul.mubr.bf16.gmra.mrb[0].mxu0 %v1178
  %v2112 = vpop.f32.mrb[0].mxu0
  %v2113 = vadd.f32 %v267, %v2112
  %v2114 = vpop.f32.mrb[0].mxu0
  %v2115 = vpop.f32.mrb[0].mxu0
  %v2116 = vadd.f32 %v267, %v2115
  %v2117 = vpop.f32.mrb[0].mxu0
  %2118 = vmatprep.mubr.bf16.mxu0 0
  %2119 = vmatmul.mubr.bf16.gmra.mrb[0].mxu0 %v1181
  %v2120 = vpop.f32.mrb[0].mxu0
  %v2121 = vadd.f32 %v267, %v2120
  %v2122 = vpop.f32.mrb[0].mxu0
  %v2123 = vpop.f32.mrb[0].mxu0
  %v2124 = vpop.f32.mrb[0].mxu0
  %2125 = vdwg.mxu0
  %v2126 = vmax.f32 %v1225, 0.0
  %v2127 = vmax.f32 %v1228, 0.0
  %v2128 = vmax.f32 %v1233, 0.0
  %v2129 = vmax.f32 %v1236, 0.0
  %v2130 = vmax.f32 %v1241, 0.0
  %v2131 = vmax.f32 %v1244, 0.0
  %v2132 = vmax.f32 %v1249, 0.0
  %v2133 = vmax.f32 %v1252, 0.0
  %v2134 = vmax.f32 %v1257, 0.0
  %v2135 = vmax.f32 %v1260, 0.0
  %v2136 = vmax.f32 %v1265, 0.0
  %v2137 = vmax.f32 %v1268, 0.0
  %v2138 = vmax.f32 %v1273, 0.0
  %v2139 = vmax.f32 %v1276, 0.0
  %v2140 = vmax.f32 %v1281, 0.0
  %v2141 = vmax.f32 %v1284, 0.0
  %v2142 = vmax.f32 %v1289, 0.0
  %v2143 = vmax.f32 %v1292, 0.0
  %v2144 = vmax.f32 %v1297, 0.0
  %v2145 = vmax.f32 %v1300, 0.0
  %v2146 = vmax.f32 %v1305, 0.0
  %v2147 = vmax.f32 %v1308, 0.0
  %v2148 = vmax.f32 %v1313, 0.0
  %v2149 = vmax.f32 %v1316, 0.0
  %v2150 = vmax.f32 %v1321, 0.0
  %v2151 = vmax.f32 %v1324, 0.0
  %v2152 = vmax.f32 %v1329, 0.0
  %v2153 = vmax.f32 %v1332, 0.0
  %v2154 = vmax.f32 %v1337, 0.0
  %v2155 = vmax.f32 %v1340, 0.0
  %v2156 = vmax.f32 %v1345, 0.0
  %v2157 = vmax.f32 %v1348, 0.0
  %v2158 = vmax.f32 %v1353, 0.0
  %v2159 = vmax.f32 %v1356, 0.0
  %v2160 = vmax.f32 %v1361, 0.0
  %v2161 = vmax.f32 %v1364, 0.0
  %v2162 = vmax.f32 %v1369, 0.0
  %v2163 = vmax.f32 %v1372, 0.0
  %v2164 = vmax.f32 %v1377, 0.0
  %v2165 = vmax.f32 %v1380, 0.0
  %v2166 = vmax.f32 %v1385, 0.0
  %v2167 = vmax.f32 %v1388, 0.0
  %v2168 = vmax.f32 %v1393, 0.0
  %v2169 = vmax.f32 %v1396, 0.0
  %v2170 = vmax.f32 %v1401, 0.0
  %v2171 = vmax.f32 %v1404, 0.0
  %v2172 = vmax.f32 %v1409, 0.0
  %v2173 = vmax.f32 %v1412, 0.0
  %v2174 = vmax.f32 %v1417, 0.0
  %v2175 = vmax.f32 %v1420, 0.0
  %v2176 = vmax.f32 %v1425, 0.0
  %v2177 = vmax.f32 %v1428, 0.0
  %v2178 = vmax.f32 %v1433, 0.0
  %v2179 = vmax.f32 %v1436, 0.0
  %v2180 = vmax.f32 %v1441, 0.0
  %v2181 = vmax.f32 %v1444, 0.0
  %v2182 = vmax.f32 %v1449, 0.0
  %v2183 = vmax.f32 %v1452, 0.0
  %v2184 = vmax.f32 %v1457, 0.0
  %v2185 = vmax.f32 %v1460, 0.0
  %v2186 = vmax.f32 %v1465, 0.0
  %v2187 = vmax.f32 %v1468, 0.0
  %v2188 = vmax.f32 %v1473, 0.0
  %v2189 = vmax.f32 %v1476, 0.0
  %v2190 = vmax.f32 %v1481, 0.0
  %v2191 = vmax.f32 %v1484, 0.0
  %v2192 = vmax.f32 %v1489, 0.0
  %v2193 = vmax.f32 %v1492, 0.0
  %v2194 = vmax.f32 %v1497, 0.0
  %v2195 = vmax.f32 %v1500, 0.0
  %v2196 = vmax.f32 %v1505, 0.0
  %v2197 = vmax.f32 %v1508, 0.0
  %v2198 = vmax.f32 %v1513, 0.0
  %v2199 = vmax.f32 %v1516, 0.0
  %v2200 = vmax.f32 %v1521, 0.0
  %v2201 = vmax.f32 %v1524, 0.0
  %v2202 = vmax.f32 %v1529, 0.0
  %v2203 = vmax.f32 %v1532, 0.0
  %v2204 = vmax.f32 %v1537, 0.0
  %v2205 = vmax.f32 %v1540, 0.0
  %v2206 = vmax.f32 %v1545, 0.0
  %v2207 = vmax.f32 %v1548, 0.0
  %v2208 = vmax.f32 %v1553, 0.0
  %v2209 = vmax.f32 %v1556, 0.0
  %v2210 = vmax.f32 %v1561, 0.0
  %v2211 = vmax.f32 %v1564, 0.0
  %v2212 = vmax.f32 %v1569, 0.0
  %v2213 = vmax.f32 %v1572, 0.0
  %v2214 = vmax.f32 %v1577, 0.0
  %v2215 = vmax.f32 %v1580, 0.0
  %v2216 = vmax.f32 %v1585, 0.0
  %v2217 = vmax.f32 %v1588, 0.0
  %v2218 = vmax.f32 %v1593, 0.0
  %v2219 = vmax.f32 %v1596, 0.0
  %v2220 = vmax.f32 %v1601, 0.0
  %v2221 = vmax.f32 %v1604, 0.0
  %v2222 = vmax.f32 %v1609, 0.0
  %v2223 = vmax.f32 %v1612, 0.0
  %v2224 = vmax.f32 %v1617, 0.0
  %v2225 = vmax.f32 %v1620, 0.0
  %v2226 = vmax.f32 %v1625, 0.0
  %v2227 = vmax.f32 %v1628, 0.0
  %v2228 = vmax.f32 %v1633, 0.0
  %v2229 = vmax.f32 %v1636, 0.0
  %v2230 = vmax.f32 %v1641, 0.0
  %v2231 = vmax.f32 %v1644, 0.0
  %v2232 = vmax.f32 %v1649, 0.0
  %v2233 = vmax.f32 %v1652, 0.0
  %v2234 = vmax.f32 %v1657, 0.0
  %v2235 = vmax.f32 %v1660, 0.0
  %v2236 = vmax.f32 %v1665, 0.0
  %v2237 = vmax.f32 %v1668, 0.0
  %v2238 = vmax.f32 %v1673, 0.0
  %v2239 = vmax.f32 %v1676, 0.0
  %v2240 = vmax.f32 %v1681, 0.0
  %v2241 = vmax.f32 %v1684, 0.0
  %v2242 = vmax.f32 %v1689, 0.0
  %v2243 = vmax.f32 %v1692, 0.0
  %v2244 = vmax.f32 %v1697, 0.0
  %v2245 = vmax.f32 %v1700, 0.0
  %v2246 = vmax.f32 %v1705, 0.0
  %v2247 = vmax.f32 %v1708, 0.0
  %v2248 = vmax.f32 %v1713, 0.0
  %v2249 = vmax.f32 %v1716, 0.0
  %v2250 = vmax.f32 %v1721, 0.0
  %v2251 = vmax.f32 %v1724, 0.0
  %v2252 = vmax.f32 %v1729, 0.0
  %v2253 = vmax.f32 %v1732, 0.0
  %v2254 = vmax.f32 %v1737, 0.0
  %v2255 = vmax.f32 %v1740, 0.0
  %v2256 = vmax.f32 %v1745, 0.0
  %v2257 = vmax.f32 %v1748, 0.0
  %v2258 = vmax.f32 %v1753, 0.0
  %v2259 = vmax.f32 %v1756, 0.0
  %v2260 = vmax.f32 %v1761, 0.0
  %v2261 = vmax.f32 %v1764, 0.0
  %v2262 = vmax.f32 %v1769, 0.0
  %v2263 = vmax.f32 %v1772, 0.0
  %v2264 = vmax.f32 %v1777, 0.0
  %v2265 = vmax.f32 %v1780, 0.0
  %v2266 = vmax.f32 %v1785, 0.0
  %v2267 = vmax.f32 %v1788, 0.0
  %v2268 = vmax.f32 %v1793, 0.0
  %v2269 = vmax.f32 %v1796, 0.0
  %v2270 = vmax.f32 %v1801, 0.0
  %v2271 = vmax.f32 %v1804, 0.0
  %v2272 = vmax.f32 %v1809, 0.0
  %v2273 = vmax.f32 %v1812, 0.0
  %v2274 = vmax.f32 %v1817, 0.0
  %v2275 = vmax.f32 %v1820, 0.0
  %v2276 = vmax.f32 %v1825, 0.0
  %v2277 = vmax.f32 %v1828, 0.0
  %v2278 = vmax.f32 %v1833, 0.0
  %v2279 = vmax.f32 %v1836, 0.0
  %v2280 = vmax.f32 %v1841, 0.0
  %v2281 = vmax.f32 %v1844, 0.0
  %v2282 = vmax.f32 %v1849, 0.0
  %v2283 = vmax.f32 %v1852, 0.0
  %v2284 = vmax.f32 %v1857, 0.0
  %v2285 = vmax.f32 %v1860, 0.0
  %v2286 = vmax.f32 %v1865, 0.0
  %v2287 = vmax.f32 %v1868, 0.0
  %v2288 = vmax.f32 %v1873, 0.0
  %v2289 = vmax.f32 %v1876, 0.0
  %v2290 = vmax.f32 %v1881, 0.0
  %v2291 = vmax.f32 %v1884, 0.0
  %v2292 = vmax.f32 %v1889, 0.0
  %v2293 = vmax.f32 %v1892, 0.0
  %v2294 = vmax.f32 %v1897, 0.0
  %v2295 = vmax.f32 %v1900, 0.0
  %v2296 = vmax.f32 %v1905, 0.0
  %v2297 = vmax.f32 %v1908, 0.0
  %v2298 = vmax.f32 %v1913, 0.0
  %v2299 = vmax.f32 %v1916, 0.0
  %v2300 = vmax.f32 %v1921, 0.0
  %v2301 = vmax.f32 %v1924, 0.0
  %v2302 = vmax.f32 %v1929, 0.0
  %v2303 = vmax.f32 %v1932, 0.0
  %v2304 = vmax.f32 %v1937, 0.0
  %v2305 = vmax.f32 %v1940, 0.0
  %v2306 = vmax.f32 %v1945, 0.0
  %v2307 = vmax.f32 %v1948, 0.0
  %v2308 = vmax.f32 %v1953, 0.0
  %v2309 = vmax.f32 %v1956, 0.0
  %v2310 = vmax.f32 %v1961, 0.0
  %v2311 = vmax.f32 %v1964, 0.0
  %v2312 = vmax.f32 %v1969, 0.0
  %v2313 = vmax.f32 %v1972, 0.0
  %v2314 = vmax.f32 %v1977, 0.0
  %v2315 = vmax.f32 %v1980, 0.0
  %v2316 = vmax.f32 %v1985, 0.0
  %v2317 = vmax.f32 %v1988, 0.0
  %v2318 = vmax.f32 %v1993, 0.0
  %v2319 = vmax.f32 %v1996, 0.0
  %v2320 = vmax.f32 %v2001, 0.0
  %v2321 = vmax.f32 %v2004, 0.0
  %v2322 = vmax.f32 %v2009, 0.0
  %v2323 = vmax.f32 %v2012, 0.0
  %v2324 = vmax.f32 %v2017, 0.0
  %v2325 = vmax.f32 %v2020, 0.0
  %v2326 = vmax.f32 %v2025, 0.0
  %v2327 = vmax.f32 %v2028, 0.0
  %v2328 = vmax.f32 %v2033, 0.0
  %v2329 = vmax.f32 %v2036, 0.0
  %v2330 = vmax.f32 %v2041, 0.0
  %v2331 = vmax.f32 %v2044, 0.0
  %v2332 = vmax.f32 %v2049, 0.0
  %v2333 = vmax.f32 %v2052, 0.0
  %v2334 = vmax.f32 %v2057, 0.0
  %v2335 = vmax.f32 %v2060, 0.0
  %v2336 = vmax.f32 %v2065, 0.0
  %v2337 = vmax.f32 %v2068, 0.0
  %v2338 = vmax.f32 %v2073, 0.0
  %v2339 = vmax.f32 %v2076, 0.0
  %v2340 = vmax.f32 %v2081, 0.0
  %v2341 = vmax.f32 %v2084, 0.0
  %v2342 = vmax.f32 %v2089, 0.0
  %v2343 = vmax.f32 %v2092, 0.0
  %v2344 = vmax.f32 %v2097, 0.0
  %v2345 = vmax.f32 %v2100, 0.0
  %v2346 = vmax.f32 %v2105, 0.0
  %v2347 = vmax.f32 %v2108, 0.0
  %v2348 = vmax.f32 %v2113, 0.0
  %v2349 = vmax.f32 %v2116, 0.0
  %v2350 = vmax.f32 %v2121, 0.0
  %v2351 = vpack.c.bf16 %v2126, %v2126
  %v2352 = vpack.c.bf16 %v2127, %v2127
  %v2353 = vpack.c.bf16 %v2128, %v2128
  %v2354 = vpack.c.bf16 %v2129, %v2129
  %v2355 = vpack.c.bf16 %v2130, %v2130
  %v2356 = vpack.c.bf16 %v2131, %v2131
  %v2357 = vpack.c.bf16 %v2132, %v2132
  %v2358 = vpack.c.bf16 %v2133, %v2133
  %v2359 = vpack.c.bf16 %v2134, %v2134
  %v2360 = vpack.c.bf16 %v2135, %v2135
  %v2361 = vpack.c.bf16 %v2136, %v2136
  %v2362 = vpack.c.bf16 %v2137, %v2137
  %v2363 = vpack.c.bf16 %v2138, %v2138
  %v2364 = vpack.c.bf16 %v2139, %v2139
  %v2365 = vpack.c.bf16 %v2140, %v2140
  %v2366 = vpack.c.bf16 %v2141, %v2141
  %v2367 = vpack.c.bf16 %v2142, %v2142
  %v2368 = vpack.c.bf16 %v2143, %v2143
  %v2369 = vpack.c.bf16 %v2144, %v2144
  %v2370 = vpack.c.bf16 %v2145, %v2145
  %v2371 = vpack.c.bf16 %v2146, %v2146
  %v2372 = vpack.c.bf16 %v2147, %v2147
  %v2373 = vpack.c.bf16 %v2148, %v2148
  %v2374 = vpack.c.bf16 %v2149, %v2149
  %v2375 = vpack.c.bf16 %v2150, %v2150
  %v2376 = vpack.c.bf16 %v2151, %v2151
  %v2377 = vpack.c.bf16 %v2152, %v2152
  %v2378 = vpack.c.bf16 %v2153, %v2153
  %v2379 = vpack.c.bf16 %v2154, %v2154
  %v2380 = vpack.c.bf16 %v2155, %v2155
  %v2381 = vpack.c.bf16 %v2156, %v2156
  %v2382 = vpack.c.bf16 %v2157, %v2157
  %v2383 = vpack.c.bf16 %v2158, %v2158
  %v2384 = vpack.c.bf16 %v2159, %v2159
  %v2385 = vpack.c.bf16 %v2160, %v2160
  %v2386 = vpack.c.bf16 %v2161, %v2161
  %v2387 = vpack.c.bf16 %v2162, %v2162
  %v2388 = vpack.c.bf16 %v2163, %v2163
  %v2389 = vpack.c.bf16 %v2164, %v2164
  %v2390 = vpack.c.bf16 %v2165, %v2165
  %v2391 = vpack.c.bf16 %v2166, %v2166
  %v2392 = vpack.c.bf16 %v2167, %v2167
  %v2393 = vpack.c.bf16 %v2168, %v2168
  %v2394 = vpack.c.bf16 %v2169, %v2169
  %v2395 = vpack.c.bf16 %v2170, %v2170
  %v2396 = vpack.c.bf16 %v2171, %v2171
  %v2397 = vpack.c.bf16 %v2172, %v2172
  %v2398 = vpack.c.bf16 %v2173, %v2173
  %v2399 = vpack.c.bf16 %v2174, %v2174
  %v2400 = vpack.c.bf16 %v2175, %v2175
  %v2401 = vpack.c.bf16 %v2176, %v2176
  %v2402 = vpack.c.bf16 %v2177, %v2177
  %v2403 = vpack.c.bf16 %v2178, %v2178
  %v2404 = vpack.c.bf16 %v2179, %v2179
  %v2405 = vpack.c.bf16 %v2180, %v2180
  %v2406 = vpack.c.bf16 %v2181, %v2181
  %v2407 = vpack.c.bf16 %v2182, %v2182
  %v2408 = vpack.c.bf16 %v2183, %v2183
  %v2409 = vpack.c.bf16 %v2184, %v2184
  %v2410 = vpack.c.bf16 %v2185, %v2185
  %v2411 = vpack.c.bf16 %v2186, %v2186
  %v2412 = vpack.c.bf16 %v2187, %v2187
  %v2413 = vpack.c.bf16 %v2188, %v2188
  %v2414 = vpack.c.bf16 %v2189, %v2189
  %v2415 = vpack.c.bf16 %v2190, %v2190
  %v2416 = vpack.c.bf16 %v2191, %v2191
  %v2417 = vpack.c.bf16 %v2192, %v2192
  %v2418 = vpack.c.bf16 %v2193, %v2193
  %v2419 = vpack.c.bf16 %v2194, %v2194
  %v2420 = vpack.c.bf16 %v2195, %v2195
  %v2421 = vpack.c.bf16 %v2196, %v2196
  %v2422 = vpack.c.bf16 %v2197, %v2197
  %v2423 = vpack.c.bf16 %v2198, %v2198
  %v2424 = vpack.c.bf16 %v2199, %v2199
  %v2425 = vpack.c.bf16 %v2200, %v2200
  %v2426 = vpack.c.bf16 %v2201, %v2201
  %v2427 = vpack.c.bf16 %v2202, %v2202
  %v2428 = vpack.c.bf16 %v2203, %v2203
  %v2429 = vpack.c.bf16 %v2204, %v2204
  %v2430 = vpack.c.bf16 %v2205, %v2205
  %v2431 = vpack.c.bf16 %v2206, %v2206
  %v2432 = vpack.c.bf16 %v2207, %v2207
  %v2433 = vpack.c.bf16 %v2208, %v2208
  %v2434 = vpack.c.bf16 %v2209, %v2209
  %v2435 = vpack.c.bf16 %v2210, %v2210
  %v2436 = vpack.c.bf16 %v2211, %v2211
  %v2437 = vpack.c.bf16 %v2212, %v2212
  %v2438 = vpack.c.bf16 %v2213, %v2213
  %v2439 = vpack.c.bf16 %v2214, %v2214
  %v2440 = vpack.c.bf16 %v2215, %v2215
  %v2441 = vpack.c.bf16 %v2216, %v2216
  %v2442 = vpack.c.bf16 %v2217, %v2217
  %v2443 = vpack.c.bf16 %v2218, %v2218
  %v2444 = vpack.c.bf16 %v2219, %v2219
  %v2445 = vpack.c.bf16 %v2220, %v2220
  %v2446 = vpack.c.bf16 %v2221, %v2221
  %v2447 = vpack.c.bf16 %v2222, %v2222
  %v2448 = vpack.c.bf16 %v2223, %v2223
  %v2449 = vpack.c.bf16 %v2224, %v2224
  %v2450 = vpack.c.bf16 %v2225, %v2225
  %v2451 = vpack.c.bf16 %v2226, %v2226
  %v2452 = vpack.c.bf16 %v2227, %v2227
  %v2453 = vpack.c.bf16 %v2228, %v2228
  %v2454 = vpack.c.bf16 %v2229, %v2229
  %v2455 = vpack.c.bf16 %v2230, %v2230
  %v2456 = vpack.c.bf16 %v2231, %v2231
  %v2457 = vpack.c.bf16 %v2232, %v2232
  %v2458 = vpack.c.bf16 %v2233, %v2233
  %v2459 = vpack.c.bf16 %v2234, %v2234
  %v2460 = vpack.c.bf16 %v2235, %v2235
  %v2461 = vpack.c.bf16 %v2236, %v2236
  %v2462 = vpack.c.bf16 %v2237, %v2237
  %v2463 = vpack.c.bf16 %v2238, %v2238
  %v2464 = vpack.c.bf16 %v2239, %v2239
  %v2465 = vpack.c.bf16 %v2240, %v2240
  %v2466 = vpack.c.bf16 %v2241, %v2241
  %v2467 = vpack.c.bf16 %v2242, %v2242
  %v2468 = vpack.c.bf16 %v2243, %v2243
  %v2469 = vpack.c.bf16 %v2244, %v2244
  %v2470 = vpack.c.bf16 %v2245, %v2245
  %v2471 = vpack.c.bf16 %v2246, %v2246
  %v2472 = vpack.c.bf16 %v2247, %v2247
  %v2473 = vpack.c.bf16 %v2248, %v2248
  %v2474 = vpack.c.bf16 %v2249, %v2249
  %v2475 = vpack.c.bf16 %v2250, %v2250
  %v2476 = vpack.c.bf16 %v2251, %v2251
  %v2477 = vpack.c.bf16 %v2252, %v2252
  %v2478 = vpack.c.bf16 %v2253, %v2253
  %v2479 = vpack.c.bf16 %v2254, %v2254
  %v2480 = vpack.c.bf16 %v2255, %v2255
  %v2481 = vpack.c.bf16 %v2256, %v2256
  %v2482 = vpack.c.bf16 %v2257, %v2257
  %v2483 = vpack.c.bf16 %v2258, %v2258
  %v2484 = vpack.c.bf16 %v2259, %v2259
  %v2485 = vpack.c.bf16 %v2260, %v2260
  %v2486 = vpack.c.bf16 %v2261, %v2261
  %v2487 = vpack.c.bf16 %v2262, %v2262
  %v2488 = vpack.c.bf16 %v2263, %v2263
  %v2489 = vpack.c.bf16 %v2264, %v2264
  %v2490 = vpack.c.bf16 %v2265, %v2265
  %v2491 = vpack.c.bf16 %v2266, %v2266
  %v2492 = vpack.c.bf16 %v2267, %v2267
  %v2493 = vpack.c.bf16 %v2268, %v2268
  %v2494 = vpack.c.bf16 %v2269, %v2269
  %v2495 = vpack.c.bf16 %v2270, %v2270
  %v2496 = vpack.c.bf16 %v2271, %v2271
  %v2497 = vpack.c.bf16 %v2272, %v2272
  %v2498 = vpack.c.bf16 %v2273, %v2273
  %v2499 = vpack.c.bf16 %v2274, %v2274
  %v2500 = vpack.c.bf16 %v2275, %v2275
  %v2501 = vpack.c.bf16 %v2276, %v2276
  %v2502 = vpack.c.bf16 %v2277, %v2277
  %v2503 = vpack.c.bf16 %v2278, %v2278
  %v2504 = vpack.c.bf16 %v2279, %v2279
  %v2505 = vpack.c.bf16 %v2280, %v2280
  %v2506 = vpack.c.bf16 %v2281, %v2281
  %v2507 = vpack.c.bf16 %v2282, %v2282
  %v2508 = vpack.c.bf16 %v2283, %v2283
  %v2509 = vpack.c.bf16 %v2284, %v2284
  %v2510 = vpack.c.bf16 %v2285, %v2285
  %v2511 = vpack.c.bf16 %v2286, %v2286
  %v2512 = vpack.c.bf16 %v2287, %v2287
  %v2513 = vpack.c.bf16 %v2288, %v2288
  %v2514 = vpack.c.bf16 %v2289, %v2289
  %v2515 = vpack.c.bf16 %v2290, %v2290
  %v2516 = vpack.c.bf16 %v2291, %v2291
  %v2517 = vpack.c.bf16 %v2292, %v2292
  %v2518 = vpack.c.bf16 %v2293, %v2293
  %v2519 = vpack.c.bf16 %v2294, %v2294
  %v2520 = vpack.c.bf16 %v2295, %v2295
  %v2521 = vpack.c.bf16 %v2296, %v2296
  %v2522 = vpack.c.bf16 %v2297, %v2297
  %v2523 = vpack.c.bf16 %v2298, %v2298
  %v2524 = vpack.c.bf16 %v2299, %v2299
  %v2525 = vpack.c.bf16 %v2300, %v2300
  %v2526 = vpack.c.bf16 %v2301, %v2301
  %v2527 = vpack.c.bf16 %v2302, %v2302
  %v2528 = vpack.c.bf16 %v2303, %v2303
  %v2529 = vpack.c.bf16 %v2304, %v2304
  %v2530 = vpack.c.bf16 %v2305, %v2305
  %v2531 = vpack.c.bf16 %v2306, %v2306
  %v2532 = vpack.c.bf16 %v2307, %v2307
  %v2533 = vpack.c.bf16 %v2308, %v2308
  %v2534 = vpack.c.bf16 %v2309, %v2309
  %v2535 = vpack.c.bf16 %v2310, %v2310
  %v2536 = vpack.c.bf16 %v2311, %v2311
  %v2537 = vpack.c.bf16 %v2312, %v2312
  %v2538 = vpack.c.bf16 %v2313, %v2313
  %v2539 = vpack.c.bf16 %v2314, %v2314
  %v2540 = vpack.c.bf16 %v2315, %v2315
  %v2541 = vpack.c.bf16 %v2316, %v2316
  %v2542 = vpack.c.bf16 %v2317, %v2317
  %v2543 = vpack.c.bf16 %v2318, %v2318
  %v2544 = vpack.c.bf16 %v2319, %v2319
  %v2545 = vpack.c.bf16 %v2320, %v2320
  %v2546 = vpack.c.bf16 %v2321, %v2321
  %v2547 = vpack.c.bf16 %v2322, %v2322
  %v2548 = vpack.c.bf16 %v2323, %v2323
  %v2549 = vpack.c.bf16 %v2324, %v2324
  %v2550 = vpack.c.bf16 %v2325, %v2325
  %v2551 = vpack.c.bf16 %v2326, %v2326
  %v2552 = vpack.c.bf16 %v2327, %v2327
  %v2553 = vpack.c.bf16 %v2328, %v2328
  %v2554 = vpack.c.bf16 %v2329, %v2329
  %v2555 = vpack.c.bf16 %v2330, %v2330
  %v2556 = vpack.c.bf16 %v2331, %v2331
  %v2557 = vpack.c.bf16 %v2332, %v2332
  %v2558 = vpack.c.bf16 %v2333, %v2333
  %v2559 = vpack.c.bf16 %v2334, %v2334
  %v2560 = vpack.c.bf16 %v2335, %v2335
  %v2561 = vpack.c.bf16 %v2336, %v2336
  %v2562 = vpack.c.bf16 %v2337, %v2337
  %v2563 = vpack.c.bf16 %v2338, %v2338
  %v2564 = vpack.c.bf16 %v2339, %v2339
  %v2565 = vpack.c.bf16 %v2340, %v2340
  %v2566 = vpack.c.bf16 %v2341, %v2341
  %v2567 = vpack.c.bf16 %v2342, %v2342
  %v2568 = vpack.c.bf16 %v2343, %v2343
  %v2569 = vpack.c.bf16 %v2344, %v2344
  %v2570 = vpack.c.bf16 %v2345, %v2345
  %v2571 = vpack.c.bf16 %v2346, %v2346
  %v2572 = vpack.c.bf16 %v2347, %v2347
  %v2573 = vpack.c.bf16 %v2348, %v2348
  %v2574 = vpack.c.bf16 %v2349, %v2349
  %v2575 = vpack.c.bf16 %v2350, %v2350
  %2625 = vrot.lane.b32.xlu0 %v2352, 32
  %v2626 = vpop.permute.xlu0 %2625
  %2627 = vrot.lane.b32.xlu0 %v2354, 32
  %v2628 = vpop.permute.xlu0 %2627
  %2629 = vrot.lane.b32.xlu0 %v2356, 32
  %v2630 = vpop.permute.xlu0 %2629
  %2631 = vrot.lane.b32.xlu0 %v2358, 32
  %v2632 = vpop.permute.xlu0 %2631
  %2633 = vrot.lane.b32.xlu0 %v2360, 32
  %v2634 = vpop.permute.xlu0 %2633
  %2635 = vrot.lane.b32.xlu0 %v2362, 32
  %v2636 = vpop.permute.xlu0 %2635
  %2637 = vrot.lane.b32.xlu0 %v2364, 32
  %v2638 = vpop.permute.xlu0 %2637
  %2639 = vrot.lane.b32.xlu0 %v2382, 32
  %v2640 = vpop.permute.xlu0 %2639
  %2641 = vrot.lane.b32.xlu0 %v2384, 32
  %v2642 = vpop.permute.xlu0 %2641
  %2643 = vrot.lane.b32.xlu0 %v2386, 32
  %v2644 = vpop.permute.xlu0 %2643
  %2645 = vrot.lane.b32.xlu0 %v2388, 32
  %v2646 = vpop.permute.xlu0 %2645
  %2647 = vrot.lane.b32.xlu0 %v2390, 32
  %v2648 = vpop.permute.xlu0 %2647
  %2649 = vrot.lane.b32.xlu0 %v2392, 32
  %v2650 = vpop.permute.xlu0 %2649
  %2651 = vrot.lane.b32.xlu0 %v2394, 32
  %v2652 = vpop.permute.xlu0 %2651
  %2653 = vrot.lane.b32.xlu0 %v2412, 32
  %v2654 = vpop.permute.xlu0 %2653
  %2655 = vrot.lane.b32.xlu0 %v2414, 32
  %v2656 = vpop.permute.xlu0 %2655
  %2657 = vrot.lane.b32.xlu0 %v2416, 32
  %v2658 = vpop.permute.xlu0 %2657
  %2659 = vrot.lane.b32.xlu0 %v2418, 32
  %v2660 = vpop.permute.xlu0 %2659
  %2661 = vrot.lane.b32.xlu0 %v2420, 32
  %v2662 = vpop.permute.xlu0 %2661
  %2663 = vrot.lane.b32.xlu0 %v2422, 32
  %v2664 = vpop.permute.xlu0 %2663
  %2665 = vrot.lane.b32.xlu0 %v2424, 32
  %v2666 = vpop.permute.xlu0 %2665
  %2667 = vrot.lane.b32.xlu0 %v2442, 32
  %v2668 = vpop.permute.xlu0 %2667
  %2669 = vrot.lane.b32.xlu0 %v2444, 32
  %v2670 = vpop.permute.xlu0 %2669
  %2671 = vrot.lane.b32.xlu0 %v2446, 32
  %v2672 = vpop.permute.xlu0 %2671
  %2673 = vrot.lane.b32.xlu0 %v2448, 32
  %v2674 = vpop.permute.xlu0 %2673
  %2675 = vrot.lane.b32.xlu0 %v2450, 32
  %v2676 = vpop.permute.xlu0 %2675
  %2677 = vrot.lane.b32.xlu0 %v2452, 32
  %v2678 = vpop.permute.xlu0 %2677
  %2679 = vrot.lane.b32.xlu0 %v2454, 32
  %v2680 = vpop.permute.xlu0 %2679
  %2681 = vrot.lane.b32.xlu0 %v2472, 32
  %v2682 = vpop.permute.xlu0 %2681
  %2683 = vrot.lane.b32.xlu0 %v2474, 32
  %v2684 = vpop.permute.xlu0 %2683
  %2685 = vrot.lane.b32.xlu0 %v2476, 32
  %v2686 = vpop.permute.xlu0 %2685
  %2687 = vrot.lane.b32.xlu0 %v2478, 32
  %v2688 = vpop.permute.xlu0 %2687
  %2689 = vrot.lane.b32.xlu0 %v2480, 32
  %v2690 = vpop.permute.xlu0 %2689
  %2691 = vrot.lane.b32.xlu0 %v2482, 32
  %v2692 = vpop.permute.xlu0 %2691
  %2693 = vrot.lane.b32.xlu0 %v2484, 32
  %v2694 = vpop.permute.xlu0 %2693
  %2695 = vrot.lane.b32.xlu0 %v2502, 32
  %v2696 = vpop.permute.xlu0 %2695
  %2697 = vrot.lane.b32.xlu0 %v2504, 32
  %v2698 = vpop.permute.xlu0 %2697
  %2699 = vrot.lane.b32.xlu0 %v2506, 32
  %v2700 = vpop.permute.xlu0 %2699
  %2701 = vrot.lane.b32.xlu0 %v2508, 32
  %v2702 = vpop.permute.xlu0 %2701
  %2703 = vrot.lane.b32.xlu0 %v2510, 32
  %v2704 = vpop.permute.xlu0 %2703
  %2705 = vrot.lane.b32.xlu0 %v2512, 32
  %v2706 = vpop.permute.xlu0 %2705
  %2707 = vrot.lane.b32.xlu0 %v2514, 32
  %v2708 = vpop.permute.xlu0 %2707
  %2709 = vrot.lane.b32.xlu0 %v2532, 32
  %v2710 = vpop.permute.xlu0 %2709
  %2711 = vrot.lane.b32.xlu0 %v2534, 32
  %v2712 = vpop.permute.xlu0 %2711
  %2713 = vrot.lane.b32.xlu0 %v2536, 32
  %v2714 = vpop.permute.xlu0 %2713
  %2715 = vrot.lane.b32.xlu0 %v2538, 32
  %v2716 = vpop.permute.xlu0 %2715
  %2717 = vrot.lane.b32.xlu0 %v2540, 32
  %v2718 = vpop.permute.xlu0 %2717
  %2719 = vrot.lane.b32.xlu0 %v2542, 32
  %v2720 = vpop.permute.xlu0 %2719
  %2721 = vrot.lane.b32.xlu0 %v2544, 32
  %v2722 = vpop.permute.xlu0 %2721
  %2772 = vrot.lane.b32.xlu0 %v2353, 64
  %v2773 = vpop.permute.xlu0 %2772
  %2774 = vrot.lane.b32.xlu0 %v2355, 64
  %v2775 = vpop.permute.xlu0 %2774
  %2776 = vrot.lane.b32.xlu0 %v2357, 64
  %v2777 = vpop.permute.xlu0 %2776
  %2778 = vrot.lane.b32.xlu0 %v2359, 64
  %v2779 = vpop.permute.xlu0 %2778
  %2780 = vrot.lane.b32.xlu0 %v2361, 64
  %v2781 = vpop.permute.xlu0 %2780
  %2782 = vrot.lane.b32.xlu0 %v2363, 64
  %v2783 = vpop.permute.xlu0 %2782
  %2784 = vrot.lane.b32.xlu0 %v2365, 64
  %v2785 = vpop.permute.xlu0 %2784
  %2786 = vrot.lane.b32.xlu0 %v2383, 64
  %v2787 = vpop.permute.xlu0 %2786
  %2788 = vrot.lane.b32.xlu0 %v2385, 64
  %v2789 = vpop.permute.xlu0 %2788
  %2790 = vrot.lane.b32.xlu0 %v2387, 64
  %v2791 = vpop.permute.xlu0 %2790
  %2792 = vrot.lane.b32.xlu0 %v2389, 64
  %v2793 = vpop.permute.xlu0 %2792
  %2794 = vrot.lane.b32.xlu0 %v2391, 64
  %v2795 = vpop.permute.xlu0 %2794
  %2796 = vrot.lane.b32.xlu0 %v2393, 64
  %v2797 = vpop.permute.xlu0 %2796
  %2798 = vrot.lane.b32.xlu0 %v2395, 64
  %v2799 = vpop.permute.xlu0 %2798
  %2800 = vrot.lane.b32.xlu0 %v2413, 64
  %v2801 = vpop.permute.xlu0 %2800
  %2802 = vrot.lane.b32.xlu0 %v2415, 64
  %v2803 = vpop.permute.xlu0 %2802
  %2804 = vrot.lane.b32.xlu0 %v2417, 64
  %v2805 = vpop.permute.xlu0 %2804
  %2806 = vrot.lane.b32.xlu0 %v2419, 64
  %v2807 = vpop.permute.xlu0 %2806
  %2808 = vrot.lane.b32.xlu0 %v2421, 64
  %v2809 = vpop.permute.xlu0 %2808
  %2810 = vrot.lane.b32.xlu0 %v2423, 64
  %v2811 = vpop.permute.xlu0 %2810
  %2812 = vrot.lane.b32.xlu0 %v2425, 64
  %v2813 = vpop.permute.xlu0 %2812
  %2814 = vrot.lane.b32.xlu0 %v2443, 64
  %v2815 = vpop.permute.xlu0 %2814
  %2816 = vrot.lane.b32.xlu0 %v2445, 64
  %v2817 = vpop.permute.xlu0 %2816
  %2818 = vrot.lane.b32.xlu0 %v2447, 64
  %v2819 = vpop.permute.xlu0 %2818
  %2820 = vrot.lane.b32.xlu0 %v2449, 64
  %v2821 = vpop.permute.xlu0 %2820
  %2822 = vrot.lane.b32.xlu0 %v2451, 64
  %v2823 = vpop.permute.xlu0 %2822
  %2824 = vrot.lane.b32.xlu0 %v2453, 64
  %v2825 = vpop.permute.xlu0 %2824
  %2826 = vrot.lane.b32.xlu0 %v2455, 64
  %v2827 = vpop.permute.xlu0 %2826
  %2828 = vrot.lane.b32.xlu0 %v2473, 64
  %v2829 = vpop.permute.xlu0 %2828
  %2830 = vrot.lane.b32.xlu0 %v2475, 64
  %v2831 = vpop.permute.xlu0 %2830
  %2832 = vrot.lane.b32.xlu0 %v2477, 64
  %v2833 = vpop.permute.xlu0 %2832
  %2834 = vrot.lane.b32.xlu0 %v2479, 64
  %v2835 = vpop.permute.xlu0 %2834
  %2836 = vrot.lane.b32.xlu0 %v2481, 64
  %v2837 = vpop.permute.xlu0 %2836
  %2838 = vrot.lane.b32.xlu0 %v2483, 64
  %v2839 = vpop.permute.xlu0 %2838
  %2840 = vrot.lane.b32.xlu0 %v2485, 64
  %v2841 = vpop.permute.xlu0 %2840
  %2842 = vrot.lane.b32.xlu0 %v2503, 64
  %v2843 = vpop.permute.xlu0 %2842
  %2844 = vrot.lane.b32.xlu0 %v2505, 64
  %v2845 = vpop.permute.xlu0 %2844
  %2846 = vrot.lane.b32.xlu0 %v2507, 64
  %v2847 = vpop.permute.xlu0 %2846
  %2848 = vrot.lane.b32.xlu0 %v2509, 64
  %v2849 = vpop.permute.xlu0 %2848
  %2850 = vrot.lane.b32.xlu0 %v2511, 64
  %v2851 = vpop.permute.xlu0 %2850
  %2852 = vrot.lane.b32.xlu0 %v2513, 64
  %v2853 = vpop.permute.xlu0 %2852
  %2854 = vrot.lane.b32.xlu0 %v2515, 64
  %v2855 = vpop.permute.xlu0 %2854
  %2856 = vrot.lane.b32.xlu0 %v2533, 64
  %v2857 = vpop.permute.xlu0 %2856
  %2858 = vrot.lane.b32.xlu0 %v2535, 64
  %v2859 = vpop.permute.xlu0 %2858
  %2860 = vrot.lane.b32.xlu0 %v2537, 64
  %v2861 = vpop.permute.xlu0 %2860
  %2862 = vrot.lane.b32.xlu0 %v2539, 64
  %v2863 = vpop.permute.xlu0 %2862
  %2864 = vrot.lane.b32.xlu0 %v2541, 64
  %v2865 = vpop.permute.xlu0 %2864
  %2866 = vrot.lane.b32.xlu0 %v2543, 64
  %v2867 = vpop.permute.xlu0 %2866
  %2868 = vrot.lane.b32.xlu0 %v2545, 64
  %v2869 = vpop.permute.xlu0 %2868
  %2919 = vrot.lane.b32.xlu0 %v2366, 96
  %v2920 = vpop.permute.xlu0 %2919
  %2921 = vrot.lane.b32.xlu0 %v2368, 96
  %v2922 = vpop.permute.xlu0 %2921
  %2923 = vrot.lane.b32.xlu0 %v2370, 96
  %v2924 = vpop.permute.xlu0 %2923
  %2925 = vrot.lane.b32.xlu0 %v2372, 96
  %v2926 = vpop.permute.xlu0 %2925
  %2927 = vrot.lane.b32.xlu0 %v2374, 96
  %v2928 = vpop.permute.xlu0 %2927
  %2929 = vrot.lane.b32.xlu0 %v2376, 96
  %v2930 = vpop.permute.xlu0 %2929
  %2931 = vrot.lane.b32.xlu0 %v2378, 96
  %v2932 = vpop.permute.xlu0 %2931
  %2933 = vrot.lane.b32.xlu0 %v2396, 96
  %v2934 = vpop.permute.xlu0 %2933
  %2935 = vrot.lane.b32.xlu0 %v2398, 96
  %v2936 = vpop.permute.xlu0 %2935
  %2937 = vrot.lane.b32.xlu0 %v2400, 96
  %v2938 = vpop.permute.xlu0 %2937
  %2939 = vrot.lane.b32.xlu0 %v2402, 96
  %v2940 = vpop.permute.xlu0 %2939
  %2941 = vrot.lane.b32.xlu0 %v2404, 96
  %v2942 = vpop.permute.xlu0 %2941
  %2943 = vrot.lane.b32.xlu0 %v2406, 96
  %v2944 = vpop.permute.xlu0 %2943
  %2945 = vrot.lane.b32.xlu0 %v2408, 96
  %v2946 = vpop.permute.xlu0 %2945
  %2947 = vrot.lane.b32.xlu0 %v2426, 96
  %v2948 = vpop.permute.xlu0 %2947
  %2949 = vrot.lane.b32.xlu0 %v2428, 96
  %v2950 = vpop.permute.xlu0 %2949
  %2951 = vrot.lane.b32.xlu0 %v2430, 96
  %v2952 = vpop.permute.xlu0 %2951
  %2953 = vrot.lane.b32.xlu0 %v2432, 96
  %v2954 = vpop.permute.xlu0 %2953
  %2955 = vrot.lane.b32.xlu0 %v2434, 96
  %v2956 = vpop.permute.xlu0 %2955
  %2957 = vrot.lane.b32.xlu0 %v2436, 96
  %v2958 = vpop.permute.xlu0 %2957
  %2959 = vrot.lane.b32.xlu0 %v2438, 96
  %v2960 = vpop.permute.xlu0 %2959
  %2961 = vrot.lane.b32.xlu0 %v2456, 96
  %v2962 = vpop.permute.xlu0 %2961
  %2963 = vrot.lane.b32.xlu0 %v2458, 96
  %v2964 = vpop.permute.xlu0 %2963
  %2965 = vrot.lane.b32.xlu0 %v2460, 96
  %v2966 = vpop.permute.xlu0 %2965
  %2967 = vrot.lane.b32.xlu0 %v2462, 96
  %v2968 = vpop.permute.xlu0 %2967
  %2969 = vrot.lane.b32.xlu0 %v2464, 96
  %v2970 = vpop.permute.xlu0 %2969
  %2971 = vrot.lane.b32.xlu0 %v2466, 96
  %v2972 = vpop.permute.xlu0 %2971
  %2973 = vrot.lane.b32.xlu0 %v2468, 96
  %v2974 = vpop.permute.xlu0 %2973
  %2975 = vrot.lane.b32.xlu0 %v2486, 96
  %v2976 = vpop.permute.xlu0 %2975
  %2977 = vrot.lane.b32.xlu0 %v2488, 96
  %v2978 = vpop.permute.xlu0 %2977
  %2979 = vrot.lane.b32.xlu0 %v2490, 96
  %v2980 = vpop.permute.xlu0 %2979
  %2981 = vrot.lane.b32.xlu0 %v2492, 96
  %v2982 = vpop.permute.xlu0 %2981
  %2983 = vrot.lane.b32.xlu0 %v2494, 96
  %v2984 = vpop.permute.xlu0 %2983
  %2985 = vrot.lane.b32.xlu0 %v2496, 96
  %v2986 = vpop.permute.xlu0 %2985
  %2987 = vrot.lane.b32.xlu0 %v2498, 96
  %v2988 = vpop.permute.xlu0 %2987
  %2989 = vrot.lane.b32.xlu0 %v2516, 96
  %v2990 = vpop.permute.xlu0 %2989
  %2991 = vrot.lane.b32.xlu0 %v2518, 96
  %v2992 = vpop.permute.xlu0 %2991
  %2993 = vrot.lane.b32.xlu0 %v2520, 96
  %v2994 = vpop.permute.xlu0 %2993
  %2995 = vrot.lane.b32.xlu0 %v2522, 96
  %v2996 = vpop.permute.xlu0 %2995
  %2997 = vrot.lane.b32.xlu0 %v2524, 96
  %v2998 = vpop.permute.xlu0 %2997
  %2999 = vrot.lane.b32.xlu0 %v2526, 96
  %v3000 = vpop.permute.xlu0 %2999
  %3001 = vrot.lane.b32.xlu0 %v2528, 96
  %v3002 = vpop.permute.xlu0 %3001
  %3003 = vrot.lane.b32.xlu0 %v2546, 96
  %v3004 = vpop.permute.xlu0 %3003
  %3005 = vrot.lane.b32.xlu0 %v2548, 96
  %v3006 = vpop.permute.xlu0 %3005
  %3007 = vrot.lane.b32.xlu0 %v2550, 96
  %v3008 = vpop.permute.xlu0 %3007
  %3009 = vrot.lane.b32.xlu0 %v2552, 96
  %v3010 = vpop.permute.xlu0 %3009
  %3011 = vrot.lane.b32.xlu0 %v2554, 96
  %v3012 = vpop.permute.xlu0 %3011
  %3013 = vrot.lane.b32.xlu0 %v2556, 96
  %v3014 = vpop.permute.xlu0 %3013
  %3015 = vrot.lane.b32.xlu0 %v2558, 96
  %v3016 = vpop.permute.xlu0 %3015
  %3024 = vrot.lane.b32.xlu0 %v2368, 32
  %v3025 = vpop.permute.xlu0 %3024
  %3026 = vrot.lane.b32.xlu0 %v2370, 32
  %v3027 = vpop.permute.xlu0 %3026
  %3028 = vrot.lane.b32.xlu0 %v2372, 32
  %v3029 = vpop.permute.xlu0 %3028
  %3030 = vrot.lane.b32.xlu0 %v2374, 32
  %v3031 = vpop.permute.xlu0 %3030
  %3032 = vrot.lane.b32.xlu0 %v2376, 32
  %v3033 = vpop.permute.xlu0 %3032
  %3034 = vrot.lane.b32.xlu0 %v2378, 32
  %v3035 = vpop.permute.xlu0 %3034
  %3036 = vrot.lane.b32.xlu0 %v2380, 32
  %v3037 = vpop.permute.xlu0 %3036
  %3038 = vrot.lane.b32.xlu0 %v2398, 32
  %v3039 = vpop.permute.xlu0 %3038
  %3040 = vrot.lane.b32.xlu0 %v2400, 32
  %v3041 = vpop.permute.xlu0 %3040
  %3042 = vrot.lane.b32.xlu0 %v2402, 32
  %v3043 = vpop.permute.xlu0 %3042
  %3044 = vrot.lane.b32.xlu0 %v2404, 32
  %v3045 = vpop.permute.xlu0 %3044
  %3046 = vrot.lane.b32.xlu0 %v2406, 32
  %v3047 = vpop.permute.xlu0 %3046
  %3048 = vrot.lane.b32.xlu0 %v2408, 32
  %v3049 = vpop.permute.xlu0 %3048
  %3050 = vrot.lane.b32.xlu0 %v2410, 32
  %v3051 = vpop.permute.xlu0 %3050
  %3052 = vrot.lane.b32.xlu0 %v2428, 32
  %v3053 = vpop.permute.xlu0 %3052
  %3054 = vrot.lane.b32.xlu0 %v2430, 32
  %v3055 = vpop.permute.xlu0 %3054
  %3056 = vrot.lane.b32.xlu0 %v2432, 32
  %v3057 = vpop.permute.xlu0 %3056
  %3058 = vrot.lane.b32.xlu0 %v2434, 32
  %v3059 = vpop.permute.xlu0 %3058
  %3060 = vrot.lane.b32.xlu0 %v2436, 32
  %v3061 = vpop.permute.xlu0 %3060
  %3062 = vrot.lane.b32.xlu0 %v2438, 32
  %v3063 = vpop.permute.xlu0 %3062
  %3064 = vrot.lane.b32.xlu0 %v2440, 32
  %v3065 = vpop.permute.xlu0 %3064
  %3066 = vrot.lane.b32.xlu0 %v2458, 32
  %v3067 = vpop.permute.xlu0 %3066
  %3068 = vrot.lane.b32.xlu0 %v2460, 32
  %v3069 = vpop.permute.xlu0 %3068
  %3070 = vrot.lane.b32.xlu0 %v2462, 32
  %v3071 = vpop.permute.xlu0 %3070
  %3072 = vrot.lane.b32.xlu0 %v2464, 32
  %v3073 = vpop.permute.xlu0 %3072
  %3074 = vrot.lane.b32.xlu0 %v2466, 32
  %v3075 = vpop.permute.xlu0 %3074
  %3076 = vrot.lane.b32.xlu0 %v2468, 32
  %v3077 = vpop.permute.xlu0 %3076
  %3078 = vrot.lane.b32.xlu0 %v2470, 32
  %v3079 = vpop.permute.xlu0 %3078
  %3080 = vrot.lane.b32.xlu0 %v2488, 32
  %v3081 = vpop.permute.xlu0 %3080
  %3082 = vrot.lane.b32.xlu0 %v2490, 32
  %v3083 = vpop.permute.xlu0 %3082
  %3084 = vrot.lane.b32.xlu0 %v2492, 32
  %v3085 = vpop.permute.xlu0 %3084
  %3086 = vrot.lane.b32.xlu0 %v2494, 32
  %v3087 = vpop.permute.xlu0 %3086
  %3088 = vrot.lane.b32.xlu0 %v2496, 32
  %v3089 = vpop.permute.xlu0 %3088
  %3090 = vrot.lane.b32.xlu0 %v2498, 32
  %v3091 = vpop.permute.xlu0 %3090
  %3092 = vrot.lane.b32.xlu0 %v2500, 32
  %v3093 = vpop.permute.xlu0 %3092
  %3094 = vrot.lane.b32.xlu0 %v2518, 32
  %v3095 = vpop.permute.xlu0 %3094
  %3096 = vrot.lane.b32.xlu0 %v2520, 32
  %v3097 = vpop.permute.xlu0 %3096
  %3098 = vrot.lane.b32.xlu0 %v2522, 32
  %v3099 = vpop.permute.xlu0 %3098
  %3100 = vrot.lane.b32.xlu0 %v2524, 32
  %v3101 = vpop.permute.xlu0 %3100
  %3102 = vrot.lane.b32.xlu0 %v2526, 32
  %v3103 = vpop.permute.xlu0 %3102
  %3104 = vrot.lane.b32.xlu0 %v2528, 32
  %v3105 = vpop.permute.xlu0 %3104
  %3106 = vrot.lane.b32.xlu0 %v2530, 32
  %v3107 = vpop.permute.xlu0 %3106
  %3108 = vrot.lane.b32.xlu0 %v2548, 32
  %v3109 = vpop.permute.xlu0 %3108
  %3110 = vrot.lane.b32.xlu0 %v2550, 32
  %v3111 = vpop.permute.xlu0 %3110
  %3112 = vrot.lane.b32.xlu0 %v2552, 32
  %v3113 = vpop.permute.xlu0 %3112
  %3114 = vrot.lane.b32.xlu0 %v2554, 32
  %v3115 = vpop.permute.xlu0 %3114
  %3116 = vrot.lane.b32.xlu0 %v2556, 32
  %v3117 = vpop.permute.xlu0 %3116
  %3118 = vrot.lane.b32.xlu0 %v2558, 32
  %v3119 = vpop.permute.xlu0 %3118
  %3120 = vrot.lane.b32.xlu0 %v2560, 32
  %v3121 = vpop.permute.xlu0 %3120
  %3135 = vrot.lane.b32.xlu0 %v2381, 64
  %v3136 = vpop.permute.xlu0 %3135
  %3137 = vrot.lane.b32.xlu0 %v2411, 64
  %v3138 = vpop.permute.xlu0 %3137
  %3139 = vrot.lane.b32.xlu0 %v2441, 64
  %v3140 = vpop.permute.xlu0 %3139
  %3141 = vrot.lane.b32.xlu0 %v2471, 64
  %v3142 = vpop.permute.xlu0 %3141
  %3143 = vrot.lane.b32.xlu0 %v2501, 64
  %v3144 = vpop.permute.xlu0 %3143
  %3145 = vrot.lane.b32.xlu0 %v2531, 64
  %v3146 = vpop.permute.xlu0 %3145
  %3147 = vrot.lane.b32.xlu0 %v2561, 64
  %v3148 = vpop.permute.xlu0 %3147
  %3149 = vrot.lane.b32.xlu0 %v2563, 64
  %v3150 = vpop.permute.xlu0 %3149
  %3151 = vrot.lane.b32.xlu0 %v2565, 64
  %v3152 = vpop.permute.xlu0 %3151
  %3153 = vrot.lane.b32.xlu0 %v2567, 64
  %v3154 = vpop.permute.xlu0 %3153
  %3155 = vrot.lane.b32.xlu0 %v2569, 64
  %v3156 = vpop.permute.xlu0 %3155
  %3157 = vrot.lane.b32.xlu0 %v2571, 64
  %v3158 = vpop.permute.xlu0 %3157
  %3159 = vrot.lane.b32.xlu0 %v2573, 64
  %v3160 = vpop.permute.xlu0 %3159
  %3168 = vrot.lane.b32.xlu0 %v2382, 96
  %v3169 = vpop.permute.xlu0 %3168
  %3170 = vrot.lane.b32.xlu0 %v2384, 96
  %v3171 = vpop.permute.xlu0 %3170
  %3172 = vrot.lane.b32.xlu0 %v2386, 96
  %v3173 = vpop.permute.xlu0 %3172
  %3174 = vrot.lane.b32.xlu0 %v2388, 96
  %v3175 = vpop.permute.xlu0 %3174
  %3176 = vrot.lane.b32.xlu0 %v2390, 96
  %v3177 = vpop.permute.xlu0 %3176
  %3178 = vrot.lane.b32.xlu0 %v2392, 96
  %v3179 = vpop.permute.xlu0 %3178
  %3180 = vrot.lane.b32.xlu0 %v2394, 96
  %v3181 = vpop.permute.xlu0 %3180
  %3182 = vrot.lane.b32.xlu0 %v2412, 96
  %v3183 = vpop.permute.xlu0 %3182
  %3184 = vrot.lane.b32.xlu0 %v2414, 96
  %v3185 = vpop.permute.xlu0 %3184
  %3186 = vrot.lane.b32.xlu0 %v2416, 96
  %v3187 = vpop.permute.xlu0 %3186
  %3188 = vrot.lane.b32.xlu0 %v2418, 96
  %v3189 = vpop.permute.xlu0 %3188
  %3190 = vrot.lane.b32.xlu0 %v2420, 96
  %v3191 = vpop.permute.xlu0 %3190
  %3192 = vrot.lane.b32.xlu0 %v2422, 96
  %v3193 = vpop.permute.xlu0 %3192
  %3194 = vrot.lane.b32.xlu0 %v2424, 96
  %v3195 = vpop.permute.xlu0 %3194
  %3196 = vrot.lane.b32.xlu0 %v2442, 96
  %v3197 = vpop.permute.xlu0 %3196
  %3198 = vrot.lane.b32.xlu0 %v2444, 96
  %v3199 = vpop.permute.xlu0 %3198
  %3200 = vrot.lane.b32.xlu0 %v2446, 96
  %v3201 = vpop.permute.xlu0 %3200
  %3202 = vrot.lane.b32.xlu0 %v2448, 96
  %v3203 = vpop.permute.xlu0 %3202
  %3204 = vrot.lane.b32.xlu0 %v2450, 96
  %v3205 = vpop.permute.xlu0 %3204
  %3206 = vrot.lane.b32.xlu0 %v2452, 96
  %v3207 = vpop.permute.xlu0 %3206
  %3208 = vrot.lane.b32.xlu0 %v2454, 96
  %v3209 = vpop.permute.xlu0 %3208
  %3210 = vrot.lane.b32.xlu0 %v2472, 96
  %v3211 = vpop.permute.xlu0 %3210
  %3212 = vrot.lane.b32.xlu0 %v2474, 96
  %v3213 = vpop.permute.xlu0 %3212
  %3214 = vrot.lane.b32.xlu0 %v2476, 96
  %v3215 = vpop.permute.xlu0 %3214
  %3216 = vrot.lane.b32.xlu0 %v2478, 96
  %v3217 = vpop.permute.xlu0 %3216
  %3218 = vrot.lane.b32.xlu0 %v2480, 96
  %v3219 = vpop.permute.xlu0 %3218
  %3220 = vrot.lane.b32.xlu0 %v2482, 96
  %v3221 = vpop.permute.xlu0 %3220
  %3222 = vrot.lane.b32.xlu0 %v2484, 96
  %v3223 = vpop.permute.xlu0 %3222
  %3224 = vrot.lane.b32.xlu0 %v2502, 96
  %v3225 = vpop.permute.xlu0 %3224
  %3226 = vrot.lane.b32.xlu0 %v2504, 96
  %v3227 = vpop.permute.xlu0 %3226
  %3228 = vrot.lane.b32.xlu0 %v2506, 96
  %v3229 = vpop.permute.xlu0 %3228
  %3230 = vrot.lane.b32.xlu0 %v2508, 96
  %v3231 = vpop.permute.xlu0 %3230
  %3232 = vrot.lane.b32.xlu0 %v2510, 96
  %v3233 = vpop.permute.xlu0 %3232
  %3234 = vrot.lane.b32.xlu0 %v2512, 96
  %v3235 = vpop.permute.xlu0 %3234
  %3236 = vrot.lane.b32.xlu0 %v2514, 96
  %v3237 = vpop.permute.xlu0 %3236
  %3238 = vrot.lane.b32.xlu0 %v2532, 96
  %v3239 = vpop.permute.xlu0 %3238
  %3240 = vrot.lane.b32.xlu0 %v2534, 96
  %v3241 = vpop.permute.xlu0 %3240
  %3242 = vrot.lane.b32.xlu0 %v2536, 96
  %v3243 = vpop.permute.xlu0 %3242
  %3244 = vrot.lane.b32.xlu0 %v2538, 96
  %v3245 = vpop.permute.xlu0 %3244
  %3246 = vrot.lane.b32.xlu0 %v2540, 96
  %v3247 = vpop.permute.xlu0 %3246
  %3248 = vrot.lane.b32.xlu0 %v2542, 96
  %v3249 = vpop.permute.xlu0 %3248
  %3250 = vrot.lane.b32.xlu0 %v2544, 96
  %v3251 = vpop.permute.xlu0 %3250
  %3252 = vrot.lane.b32.xlu0 %v2562, 96
  %v3253 = vpop.permute.xlu0 %3252
  %3254 = vrot.lane.b32.xlu0 %v2564, 96
  %v3255 = vpop.permute.xlu0 %3254
  %3256 = vrot.lane.b32.xlu0 %v2566, 96
  %v3257 = vpop.permute.xlu0 %3256
  %3258 = vrot.lane.b32.xlu0 %v2568, 96
  %v3259 = vpop.permute.xlu0 %3258
  %3260 = vrot.lane.b32.xlu0 %v2570, 96
  %v3261 = vpop.permute.xlu0 %3260
  %3262 = vrot.lane.b32.xlu0 %v2572, 96
  %v3263 = vpop.permute.xlu0 %3262
  %3264 = vrot.lane.b32.xlu0 %v2574, 96
  %v3265 = vpop.permute.xlu0 %3264
  %vm3266 = vcmask 261120
  %v3269 = vsel %vm3266, %v2351, %v2626
  %v3272 = vsel %vm3266, %v2353, %v2628
  %v3275 = vsel %vm3266, %v2355, %v2630
  %v3278 = vsel %vm3266, %v2357, %v2632
  %v3281 = vsel %vm3266, %v2359, %v2634
  %v3284 = vsel %vm3266, %v2361, %v2636
  %v3287 = vsel %vm3266, %v2363, %v2638
  %v3290 = vsel %vm3266, %v2381, %v2640
  %v3293 = vsel %vm3266, %v2383, %v2642
  %v3296 = vsel %vm3266, %v2385, %v2644
  %v3299 = vsel %vm3266, %v2387, %v2646
  %v3302 = vsel %vm3266, %v2389, %v2648
  %v3305 = vsel %vm3266, %v2391, %v2650
  %v3308 = vsel %vm3266, %v2393, %v2652
  %v3311 = vsel %vm3266, %v2411, %v2654
  %v3314 = vsel %vm3266, %v2413, %v2656
  %v3317 = vsel %vm3266, %v2415, %v2658
  %v3320 = vsel %vm3266, %v2417, %v2660
  %v3323 = vsel %vm3266, %v2419, %v2662
  %v3326 = vsel %vm3266, %v2421, %v2664
  %v3329 = vsel %vm3266, %v2423, %v2666
  %v3332 = vsel %vm3266, %v2441, %v2668
  %v3335 = vsel %vm3266, %v2443, %v2670
  %v3338 = vsel %vm3266, %v2445, %v2672
  %v3341 = vsel %vm3266, %v2447, %v2674
  %v3344 = vsel %vm3266, %v2449, %v2676
  %v3347 = vsel %vm3266, %v2451, %v2678
  %v3350 = vsel %vm3266, %v2453, %v2680
  %v3353 = vsel %vm3266, %v2471, %v2682
  %v3356 = vsel %vm3266, %v2473, %v2684
  %v3359 = vsel %vm3266, %v2475, %v2686
  %v3362 = vsel %vm3266, %v2477, %v2688
  %v3365 = vsel %vm3266, %v2479, %v2690
  %v3368 = vsel %vm3266, %v2481, %v2692
  %v3371 = vsel %vm3266, %v2483, %v2694
  %v3374 = vsel %vm3266, %v2501, %v2696
  %v3377 = vsel %vm3266, %v2503, %v2698
  %v3380 = vsel %vm3266, %v2505, %v2700
  %v3383 = vsel %vm3266, %v2507, %v2702
  %v3386 = vsel %vm3266, %v2509, %v2704
  %v3389 = vsel %vm3266, %v2511, %v2706
  %v3392 = vsel %vm3266, %v2513, %v2708
  %v3395 = vsel %vm3266, %v2531, %v2710
  %v3398 = vsel %vm3266, %v2533, %v2712
  %v3401 = vsel %vm3266, %v2535, %v2714
  %v3404 = vsel %vm3266, %v2537, %v2716
  %v3407 = vsel %vm3266, %v2539, %v2718
  %v3410 = vsel %vm3266, %v2541, %v2720
  %v3413 = vsel %vm3266, %v2543, %v2722
  %vm3414 = vcmask 523264
  %v3416 = vsel %vm3414, %v3269, %v2773
  %v3418 = vsel %vm3414, %v3272, %v2775
  %v3420 = vsel %vm3414, %v3275, %v2777
  %v3422 = vsel %vm3414, %v3278, %v2779
  %v3424 = vsel %vm3414, %v3281, %v2781
  %v3426 = vsel %vm3414, %v3284, %v2783
  %v3428 = vsel %vm3414, %v3287, %v2785
  %v3430 = vsel %vm3414, %v3290, %v2787
  %v3432 = vsel %vm3414, %v3293, %v2789
  %v3434 = vsel %vm3414, %v3296, %v2791
  %v3436 = vsel %vm3414, %v3299, %v2793
  %v3438 = vsel %vm3414, %v3302, %v2795
  %v3440 = vsel %vm3414, %v3305, %v2797
  %v3442 = vsel %vm3414, %v3308, %v2799
  %v3444 = vsel %vm3414, %v3311, %v2801
  %v3446 = vsel %vm3414, %v3314, %v2803
  %v3448 = vsel %vm3414, %v3317, %v2805
  %v3450 = vsel %vm3414, %v3320, %v2807
  %v3452 = vsel %vm3414, %v3323, %v2809
  %v3454 = vsel %vm3414, %v3326, %v2811
  %v3456 = vsel %vm3414, %v3329, %v2813
  %v3458 = vsel %vm3414, %v3332, %v2815
  %v3460 = vsel %vm3414, %v3335, %v2817
  %v3462 = vsel %vm3414, %v3338, %v2819
  %v3464 = vsel %vm3414, %v3341, %v2821
  %v3466 = vsel %vm3414, %v3344, %v2823
  %v3468 = vsel %vm3414, %v3347, %v2825
  %v3470 = vsel %vm3414, %v3350, %v2827
  %v3472 = vsel %vm3414, %v3353, %v2829
  %v3474 = vsel %vm3414, %v3356, %v2831
  %v3476 = vsel %vm3414, %v3359, %v2833
  %v3478 = vsel %vm3414, %v3362, %v2835
  %v3480 = vsel %vm3414, %v3365, %v2837
  %v3482 = vsel %vm3414, %v3368, %v2839
  %v3484 = vsel %vm3414, %v3371, %v2841
  %v3486 = vsel %vm3414, %v3374, %v2843
  %v3488 = vsel %vm3414, %v3377, %v2845
  %v3490 = vsel %vm3414, %v3380, %v2847
  %v3492 = vsel %vm3414, %v3383, %v2849
  %v3494 = vsel %vm3414, %v3386, %v2851
  %v3496 = vsel %vm3414, %v3389, %v2853
  %v3498 = vsel %vm3414, %v3392, %v2855
  %v3500 = vsel %vm3414, %v3395, %v2857
  %v3502 = vsel %vm3414, %v3398, %v2859
  %v3504 = vsel %vm3414, %v3401, %v2861
  %v3506 = vsel %vm3414, %v3404, %v2863
  %v3508 = vsel %vm3414, %v3407, %v2865
  %v3510 = vsel %vm3414, %v3410, %v2867
  %v3512 = vsel %vm3414, %v3413, %v2869
  %vm3513 = vcmask 785408
  %v3515 = vsel %vm3513, %v3416, %v2920
  %v3517 = vsel %vm3513, %v3418, %v2922
  %v3519 = vsel %vm3513, %v3420, %v2924
  %v3521 = vsel %vm3513, %v3422, %v2926
  %v3523 = vsel %vm3513, %v3424, %v2928
  %v3525 = vsel %vm3513, %v3426, %v2930
  %v3527 = vsel %vm3513, %v3428, %v2932
  %v3529 = vsel %vm3513, %v3430, %v2934
  %v3531 = vsel %vm3513, %v3432, %v2936
  %v3533 = vsel %vm3513, %v3434, %v2938
  %v3535 = vsel %vm3513, %v3436, %v2940
  %v3537 = vsel %vm3513, %v3438, %v2942
  %v3539 = vsel %vm3513, %v3440, %v2944
  %v3541 = vsel %vm3513, %v3442, %v2946
  %v3543 = vsel %vm3513, %v3444, %v2948
  %v3545 = vsel %vm3513, %v3446, %v2950
  %v3547 = vsel %vm3513, %v3448, %v2952
  %v3549 = vsel %vm3513, %v3450, %v2954
  %v3551 = vsel %vm3513, %v3452, %v2956
  %v3553 = vsel %vm3513, %v3454, %v2958
  %v3555 = vsel %vm3513, %v3456, %v2960
  %v3557 = vsel %vm3513, %v3458, %v2962
  %v3559 = vsel %vm3513, %v3460, %v2964
  %v3561 = vsel %vm3513, %v3462, %v2966
  %v3563 = vsel %vm3513, %v3464, %v2968
  %v3565 = vsel %vm3513, %v3466, %v2970
  %v3567 = vsel %vm3513, %v3468, %v2972
  %v3569 = vsel %vm3513, %v3470, %v2974
  %v3571 = vsel %vm3513, %v3472, %v2976
  %v3573 = vsel %vm3513, %v3474, %v2978
  %v3575 = vsel %vm3513, %v3476, %v2980
  %v3577 = vsel %vm3513, %v3478, %v2982
  %v3579 = vsel %vm3513, %v3480, %v2984
  %v3581 = vsel %vm3513, %v3482, %v2986
  %v3583 = vsel %vm3513, %v3484, %v2988
  %v3585 = vsel %vm3513, %v3486, %v2990
  %v3587 = vsel %vm3513, %v3488, %v2992
  %v3589 = vsel %vm3513, %v3490, %v2994
  %v3591 = vsel %vm3513, %v3492, %v2996
  %v3593 = vsel %vm3513, %v3494, %v2998
  %v3595 = vsel %vm3513, %v3496, %v3000
  %v3597 = vsel %vm3513, %v3498, %v3002
  %v3599 = vsel %vm3513, %v3500, %v3004
  %v3601 = vsel %vm3513, %v3502, %v3006
  %v3603 = vsel %vm3513, %v3504, %v3008
  %v3605 = vsel %vm3513, %v3506, %v3010
  %v3607 = vsel %vm3513, %v3508, %v3012
  %v3609 = vsel %vm3513, %v3510, %v3014
  %v3611 = vsel %vm3513, %v3512, %v3016
  %v3614 = vsel %vm3266, %v2367, %v3025
  %v3617 = vsel %vm3266, %v2369, %v3027
  %v3620 = vsel %vm3266, %v2371, %v3029
  %v3623 = vsel %vm3266, %v2373, %v3031
  %v3626 = vsel %vm3266, %v2375, %v3033
  %v3629 = vsel %vm3266, %v2377, %v3035
  %v3632 = vsel %vm3266, %v2379, %v3037
  %v3635 = vsel %vm3266, %v2397, %v3039
  %v3638 = vsel %vm3266, %v2399, %v3041
  %v3641 = vsel %vm3266, %v2401, %v3043
  %v3644 = vsel %vm3266, %v2403, %v3045
  %v3647 = vsel %vm3266, %v2405, %v3047
  %v3650 = vsel %vm3266, %v2407, %v3049
  %v3653 = vsel %vm3266, %v2409, %v3051
  %v3656 = vsel %vm3266, %v2427, %v3053
  %v3659 = vsel %vm3266, %v2429, %v3055
  %v3662 = vsel %vm3266, %v2431, %v3057
  %v3665 = vsel %vm3266, %v2433, %v3059
  %v3668 = vsel %vm3266, %v2435, %v3061
  %v3671 = vsel %vm3266, %v2437, %v3063
  %v3674 = vsel %vm3266, %v2439, %v3065
  %v3677 = vsel %vm3266, %v2457, %v3067
  %v3680 = vsel %vm3266, %v2459, %v3069
  %v3683 = vsel %vm3266, %v2461, %v3071
  %v3686 = vsel %vm3266, %v2463, %v3073
  %v3689 = vsel %vm3266, %v2465, %v3075
  %v3692 = vsel %vm3266, %v2467, %v3077
  %v3695 = vsel %vm3266, %v2469, %v3079
  %v3698 = vsel %vm3266, %v2487, %v3081
  %v3701 = vsel %vm3266, %v2489, %v3083
  %v3704 = vsel %vm3266, %v2491, %v3085
  %v3707 = vsel %vm3266, %v2493, %v3087
  %v3710 = vsel %vm3266, %v2495, %v3089
  %v3713 = vsel %vm3266, %v2497, %v3091
  %v3716 = vsel %vm3266, %v2499, %v3093
  %v3719 = vsel %vm3266, %v2517, %v3095
  %v3722 = vsel %vm3266, %v2519, %v3097
  %v3725 = vsel %vm3266, %v2521, %v3099
  %v3728 = vsel %vm3266, %v2523, %v3101
  %v3731 = vsel %vm3266, %v2525, %v3103
  %v3734 = vsel %vm3266, %v2527, %v3105
  %v3737 = vsel %vm3266, %v2529, %v3107
  %v3740 = vsel %vm3266, %v2547, %v3109
  %v3743 = vsel %vm3266, %v2549, %v3111
  %v3746 = vsel %vm3266, %v2551, %v3113
  %v3749 = vsel %vm3266, %v2553, %v3115
  %v3752 = vsel %vm3266, %v2555, %v3117
  %v3755 = vsel %vm3266, %v2557, %v3119
  %v3758 = vsel %vm3266, %v2559, %v3121
  %v3760 = vsel %vm3414, %v3614, %v3136
  %v3761 = vsel %vm3414, %v3617, %v2787
  %v3762 = vsel %vm3414, %v3620, %v2789
  %v3763 = vsel %vm3414, %v3623, %v2791
  %v3764 = vsel %vm3414, %v3626, %v2793
  %v3765 = vsel %vm3414, %v3629, %v2795
  %v3766 = vsel %vm3414, %v3632, %v2797
  %v3768 = vsel %vm3414, %v3635, %v3138
  %v3769 = vsel %vm3414, %v3638, %v2801
  %v3770 = vsel %vm3414, %v3641, %v2803
  %v3771 = vsel %vm3414, %v3644, %v2805
  %v3772 = vsel %vm3414, %v3647, %v2807
  %v3773 = vsel %vm3414, %v3650, %v2809
  %v3774 = vsel %vm3414, %v3653, %v2811
  %v3776 = vsel %vm3414, %v3656, %v3140
  %v3777 = vsel %vm3414, %v3659, %v2815
  %v3778 = vsel %vm3414, %v3662, %v2817
  %v3779 = vsel %vm3414, %v3665, %v2819
  %v3780 = vsel %vm3414, %v3668, %v2821
  %v3781 = vsel %vm3414, %v3671, %v2823
  %v3782 = vsel %vm3414, %v3674, %v2825
  %v3784 = vsel %vm3414, %v3677, %v3142
  %v3785 = vsel %vm3414, %v3680, %v2829
  %v3786 = vsel %vm3414, %v3683, %v2831
  %v3787 = vsel %vm3414, %v3686, %v2833
  %v3788 = vsel %vm3414, %v3689, %v2835
  %v3789 = vsel %vm3414, %v3692, %v2837
  %v3790 = vsel %vm3414, %v3695, %v2839
  %v3792 = vsel %vm3414, %v3698, %v3144
  %v3793 = vsel %vm3414, %v3701, %v2843
  %v3794 = vsel %vm3414, %v3704, %v2845
  %v3795 = vsel %vm3414, %v3707, %v2847
  %v3796 = vsel %vm3414, %v3710, %v2849
  %v3797 = vsel %vm3414, %v3713, %v2851
  %v3798 = vsel %vm3414, %v3716, %v2853
  %v3800 = vsel %vm3414, %v3719, %v3146
  %v3801 = vsel %vm3414, %v3722, %v2857
  %v3802 = vsel %vm3414, %v3725, %v2859
  %v3803 = vsel %vm3414, %v3728, %v2861
  %v3804 = vsel %vm3414, %v3731, %v2863
  %v3805 = vsel %vm3414, %v3734, %v2865
  %v3806 = vsel %vm3414, %v3737, %v2867
  %v3808 = vsel %vm3414, %v3740, %v3148
  %v3810 = vsel %vm3414, %v3743, %v3150
  %v3812 = vsel %vm3414, %v3746, %v3152
  %v3814 = vsel %vm3414, %v3749, %v3154
  %v3816 = vsel %vm3414, %v3752, %v3156
  %v3818 = vsel %vm3414, %v3755, %v3158
  %v3820 = vsel %vm3414, %v3758, %v3160
  %v3822 = vsel %vm3513, %v3760, %v3169
  %v3824 = vsel %vm3513, %v3761, %v3171
  %v3826 = vsel %vm3513, %v3762, %v3173
  %v3828 = vsel %vm3513, %v3763, %v3175
  %v3830 = vsel %vm3513, %v3764, %v3177
  %v3832 = vsel %vm3513, %v3765, %v3179
  %v3834 = vsel %vm3513, %v3766, %v3181
  %v3836 = vsel %vm3513, %v3768, %v3183
  %v3838 = vsel %vm3513, %v3769, %v3185
  %v3840 = vsel %vm3513, %v3770, %v3187
  %v3842 = vsel %vm3513, %v3771, %v3189
  %v3844 = vsel %vm3513, %v3772, %v3191
  %v3846 = vsel %vm3513, %v3773, %v3193
  %v3848 = vsel %vm3513, %v3774, %v3195
  %v3850 = vsel %vm3513, %v3776, %v3197
  %v3852 = vsel %vm3513, %v3777, %v3199
  %v3854 = vsel %vm3513, %v3778, %v3201
  %v3856 = vsel %vm3513, %v3779, %v3203
  %v3858 = vsel %vm3513, %v3780, %v3205
  %v3860 = vsel %vm3513, %v3781, %v3207
  %v3862 = vsel %vm3513, %v3782, %v3209
  %v3864 = vsel %vm3513, %v3784, %v3211
  %v3866 = vsel %vm3513, %v3785, %v3213
  %v3868 = vsel %vm3513, %v3786, %v3215
  %v3870 = vsel %vm3513, %v3787, %v3217
  %v3872 = vsel %vm3513, %v3788, %v3219
  %v3874 = vsel %vm3513, %v3789, %v3221
  %v3876 = vsel %vm3513, %v3790, %v3223
  %v3878 = vsel %vm3513, %v3792, %v3225
  %v3880 = vsel %vm3513, %v3793, %v3227
  %v3882 = vsel %vm3513, %v3794, %v3229
  %v3884 = vsel %vm3513, %v3795, %v3231
  %v3886 = vsel %vm3513, %v3796, %v3233
  %v3888 = vsel %vm3513, %v3797, %v3235
  %v3890 = vsel %vm3513, %v3798, %v3237
  %v3892 = vsel %vm3513, %v3800, %v3239
  %v3894 = vsel %vm3513, %v3801, %v3241
  %v3896 = vsel %vm3513, %v3802, %v3243
  %v3898 = vsel %vm3513, %v3803, %v3245
  %v3900 = vsel %vm3513, %v3804, %v3247
  %v3902 = vsel %vm3513, %v3805, %v3249
  %v3904 = vsel %vm3513, %v3806, %v3251
  %v3906 = vsel %vm3513, %v3808, %v3253
  %v3908 = vsel %vm3513, %v3810, %v3255
  %v3910 = vsel %vm3513, %v3812, %v3257
  %v3912 = vsel %vm3513, %v3814, %v3259
  %v3914 = vsel %vm3513, %v3816, %v3261
  %v3916 = vsel %vm3513, %v3818, %v3263
  %v3918 = vsel %vm3513, %v3820, %v3265
  %v4018 = vunpack.c.l.b16 %v3515
  %v4019 = vunpack.c.l.b16 %v3822
  %v4020 = vunpack.c.l.b16 %v2383
  %v4021 = vunpack.c.l.b16 %v3517
  %v4022 = vunpack.c.l.b16 %v3824
  %v4023 = vunpack.c.l.b16 %v2385
  %v4024 = vunpack.c.l.b16 %v3519
  %v4025 = vunpack.c.l.b16 %v3826
  %v4026 = vunpack.c.l.b16 %v2387
  %v4027 = vunpack.c.l.b16 %v3521
  %v4028 = vunpack.c.l.b16 %v3828
  %v4029 = vunpack.c.l.b16 %v2389
  %v4030 = vunpack.c.l.b16 %v3523
  %v4031 = vunpack.c.l.b16 %v3830
  %v4032 = vunpack.c.l.b16 %v2391
  %v4033 = vunpack.c.l.b16 %v3525
  %v4034 = vunpack.c.l.b16 %v3832
  %v4035 = vunpack.c.l.b16 %v2393
  %v4036 = vunpack.c.l.b16 %v3527
  %v4037 = vunpack.c.l.b16 %v3834
  %v4038 = vunpack.c.l.b16 %v2395
  %v4039 = vunpack.c.l.b16 %v3529
  %v4040 = vunpack.c.l.b16 %v3836
  %v4041 = vunpack.c.l.b16 %v2413
  %v4042 = vunpack.c.l.b16 %v3531
  %v4043 = vunpack.c.l.b16 %v3838
  %v4044 = vunpack.c.l.b16 %v2415
  %v4045 = vunpack.c.l.b16 %v3533
  %v4046 = vunpack.c.l.b16 %v3840
  %v4047 = vunpack.c.l.b16 %v2417
  %v4048 = vunpack.c.l.b16 %v3535
  %v4049 = vunpack.c.l.b16 %v3842
  %v4050 = vunpack.c.l.b16 %v2419
  %v4051 = vunpack.c.l.b16 %v3537
  %v4052 = vunpack.c.l.b16 %v3844
  %v4053 = vunpack.c.l.b16 %v2421
  %v4054 = vunpack.c.l.b16 %v3539
  %v4055 = vunpack.c.l.b16 %v3846
  %v4056 = vunpack.c.l.b16 %v2423
  %v4057 = vunpack.c.l.b16 %v3541
  %v4058 = vunpack.c.l.b16 %v3848
  %v4059 = vunpack.c.l.b16 %v2425
  %v4060 = vunpack.c.l.b16 %v3543
  %v4061 = vunpack.c.l.b16 %v3850
  %v4062 = vunpack.c.l.b16 %v2443
  %v4063 = vunpack.c.l.b16 %v3545
  %v4064 = vunpack.c.l.b16 %v3852
  %v4065 = vunpack.c.l.b16 %v2445
  %v4066 = vunpack.c.l.b16 %v3547
  %v4067 = vunpack.c.l.b16 %v3854
  %v4068 = vunpack.c.l.b16 %v2447
  %v4069 = vunpack.c.l.b16 %v3549
  %v4070 = vunpack.c.l.b16 %v3856
  %v4071 = vunpack.c.l.b16 %v2449
  %v4072 = vunpack.c.l.b16 %v3551
  %v4073 = vunpack.c.l.b16 %v3858
  %v4074 = vunpack.c.l.b16 %v2451
  %v4075 = vunpack.c.l.b16 %v3553
  %v4076 = vunpack.c.l.b16 %v3860
  %v4077 = vunpack.c.l.b16 %v2453
  %v4078 = vunpack.c.l.b16 %v3555
  %v4079 = vunpack.c.l.b16 %v3862
  %v4080 = vunpack.c.l.b16 %v2455
  %v4081 = vunpack.c.l.b16 %v3557
  %v4082 = vunpack.c.l.b16 %v3864
  %v4083 = vunpack.c.l.b16 %v2473
  %v4084 = vunpack.c.l.b16 %v3559
  %v4085 = vunpack.c.l.b16 %v3866
  %v4086 = vunpack.c.l.b16 %v2475
  %v4087 = vunpack.c.l.b16 %v3561
  %v4088 = vunpack.c.l.b16 %v3868
  %v4089 = vunpack.c.l.b16 %v2477
  %v4090 = vunpack.c.l.b16 %v3563
  %v4091 = vunpack.c.l.b16 %v3870
  %v4092 = vunpack.c.l.b16 %v2479
  %v4093 = vunpack.c.l.b16 %v3565
  %v4094 = vunpack.c.l.b16 %v3872
  %v4095 = vunpack.c.l.b16 %v2481
  %v4096 = vunpack.c.l.b16 %v3567
  %v4097 = vunpack.c.l.b16 %v3874
  %v4098 = vunpack.c.l.b16 %v2483
  %v4099 = vunpack.c.l.b16 %v3569
  %v4100 = vunpack.c.l.b16 %v3876
  %v4101 = vunpack.c.l.b16 %v2485
  %v4102 = vunpack.c.l.b16 %v3571
  %v4103 = vunpack.c.l.b16 %v3878
  %v4104 = vunpack.c.l.b16 %v2503
  %v4105 = vunpack.c.l.b16 %v3573
  %v4106 = vunpack.c.l.b16 %v3880
  %v4107 = vunpack.c.l.b16 %v2505
  %v4108 = vunpack.c.l.b16 %v3575
  %v4109 = vunpack.c.l.b16 %v3882
  %v4110 = vunpack.c.l.b16 %v2507
  %v4111 = vunpack.c.l.b16 %v3577
  %v4112 = vunpack.c.l.b16 %v3884
  %v4113 = vunpack.c.l.b16 %v2509
  %v4114 = vunpack.c.l.b16 %v3579
  %v4115 = vunpack.c.l.b16 %v3886
  %v4116 = vunpack.c.l.b16 %v2511
  %v4117 = vunpack.c.l.b16 %v3581
  %v4118 = vunpack.c.l.b16 %v3888
  %v4119 = vunpack.c.l.b16 %v2513
  %v4120 = vunpack.c.l.b16 %v3583
  %v4121 = vunpack.c.l.b16 %v3890
  %v4122 = vunpack.c.l.b16 %v2515
  %v4123 = vunpack.c.l.b16 %v3585
  %v4124 = vunpack.c.l.b16 %v3892
  %v4125 = vunpack.c.l.b16 %v2533
  %v4126 = vunpack.c.l.b16 %v3587
  %v4127 = vunpack.c.l.b16 %v3894
  %v4128 = vunpack.c.l.b16 %v2535
  %v4129 = vunpack.c.l.b16 %v3589
  %v4130 = vunpack.c.l.b16 %v3896
  %v4131 = vunpack.c.l.b16 %v2537
  %v4132 = vunpack.c.l.b16 %v3591
  %v4133 = vunpack.c.l.b16 %v3898
  %v4134 = vunpack.c.l.b16 %v2539
  %v4135 = vunpack.c.l.b16 %v3593
  %v4136 = vunpack.c.l.b16 %v3900
  %v4137 = vunpack.c.l.b16 %v2541
  %v4138 = vunpack.c.l.b16 %v3595
  %v4139 = vunpack.c.l.b16 %v3902
  %v4140 = vunpack.c.l.b16 %v2543
  %v4141 = vunpack.c.l.b16 %v3597
  %v4142 = vunpack.c.l.b16 %v3904
  %v4143 = vunpack.c.l.b16 %v2545
  %v4144 = vunpack.c.l.b16 %v3599
  %v4145 = vunpack.c.l.b16 %v3906
  %v4146 = vunpack.c.l.b16 %v2563
  %v4147 = vunpack.c.l.b16 %v3601
  %v4148 = vunpack.c.l.b16 %v3908
  %v4149 = vunpack.c.l.b16 %v2565
  %v4150 = vunpack.c.l.b16 %v3603
  %v4151 = vunpack.c.l.b16 %v3910
  %v4152 = vunpack.c.l.b16 %v2567
  %v4153 = vunpack.c.l.b16 %v3605
  %v4154 = vunpack.c.l.b16 %v3912
  %v4155 = vunpack.c.l.b16 %v2569
  %v4156 = vunpack.c.l.b16 %v3607
  %v4157 = vunpack.c.l.b16 %v3914
  %v4158 = vunpack.c.l.b16 %v2571
  %v4159 = vunpack.c.l.b16 %v3609
  %v4160 = vunpack.c.l.b16 %v3916
  %v4161 = vunpack.c.l.b16 %v2573
  %v4162 = vunpack.c.l.b16 %v3611
  %v4163 = vunpack.c.l.b16 %v3918
  %v4164 = vunpack.c.l.b16 %v2575
  %v4165 = vld [vmem:[%s3] sm:$0xf]
  %v4166 = vld [vmem:[%s3 + $0x4] sm:$0xf]
  %v4167 = vld [vmem:[%s3 + $0x8] sm:$0xf]
  %v4168 = vld [vmem:[%s3 + $0xc] sm:$0xf]
  %v4169 = vld [vmem:[%s3 + $0x10] sm:$0xf]
  %v4170 = vld [vmem:[%s3 + $0x14] sm:$0xf]
  %v4171 = vld [vmem:[%s3 + $0x18] sm:$0xf]
  %v4172 = vld [vmem:[%s3 + $0x1c] sm:$0xf]
  %v4173 = vld [vmem:[%s3 + $0x20] sm:$0xf]
  %v4174 = vld [vmem:[%s3 + $0x24] sm:$0xf]
  %v4175 = vld [vmem:[%s3 + $0x28] sm:$0xf]
  %v4176 = vld [vmem:[%s3 + $0x2c] sm:$0xf]
  %v4177 = vld [vmem:[%s3 + $0x30] sm:$0xf]
  %v4178 = vld [vmem:[%s3 + $0x34] sm:$0xf]
  %v4179 = vld [vmem:[%s3 + $0x38] sm:$0xf]
  %v4180 = vld [vmem:[%s3 + $0x3c] sm:$0xf]
  %v4181 = vld [vmem:[%s3 + $0x40] sm:$0xf]
  %v4182 = vld [vmem:[%s3 + $0x44] sm:$0xf]
  %v4183 = vld [vmem:[%s3 + $0x48] sm:$0xf]
  %v4184 = vld [vmem:[%s3 + $0x4c] sm:$0xf]
  %v4185 = vld [vmem:[%s3 + $0x50] sm:$0xf]
  %v4186 = vld [vmem:[%s3 + $0x54] sm:$0xf]
  %v4187 = vld [vmem:[%s3 + $0x58] sm:$0xf]
  %v4188 = vld [vmem:[%s3 + $0x5c] sm:$0xf]
  %v4189 = vld [vmem:[%s3 + $0x60] sm:$0xf]
  %v4190 = vld [vmem:[%s3 + $0x64] sm:$0xf]
  %v4191 = vld [vmem:[%s3 + $0x68] sm:$0xf]
  %v4192 = vld [vmem:[%s3 + $0x6c] sm:$0xf]
  %v4193 = vld [vmem:[%s3 + $0x70] sm:$0xf]
  %v4194 = vld [vmem:[%s3 + $0x74] sm:$0xf]
  %v4195 = vld [vmem:[%s3 + $0x78] sm:$0xf]
  %v4196 = vld [vmem:[%s3 + $0x7c] sm:$0xf]
  %v4197 = vld [vmem:[%s3 + $0x80] sm:$0xf]
  %v4198 = vld [vmem:[%s3 + $0x84] sm:$0xf]
  %v4199 = vld [vmem:[%s3 + $0x88] sm:$0xf]
  %v4200 = vld [vmem:[%s3 + $0x8c] sm:$0xf]
  %v4201 = vld [vmem:[%s4] sm:$0x1]
  %v4203 = vlaneseq
  %v4204 = vshrl.u32 %v4203, 7
  %v4205 = vsub.s32 0, %v4204
  %v4206 = vrot.slane %v4201, %v4205
  %v4208 = vpack.c.b16 %v4021, %v4018
  %v4209 = vpack.c.b16 %v4022, %v4019
  %v4210 = vpack.c.b16 %v4023, %v4020
  %v4211 = vpack.c.b16 %v4027, %v4024
  %v4212 = vpack.c.b16 %v4028, %v4025
  %v4213 = vpack.c.b16 %v4029, %v4026
  %v4214 = vpack.c.b16 %v4033, %v4030
  %v4215 = vpack.c.b16 %v4034, %v4031
  %v4216 = vpack.c.b16 %v4035, %v4032
  %v4217 = vpack.c.b16 %v4039, %v4036
  %v4218 = vpack.c.b16 %v4040, %v4037
  %v4219 = vpack.c.b16 %v4041, %v4038
  %v4220 = vpack.c.b16 %v4045, %v4042
  %v4221 = vpack.c.b16 %v4046, %v4043
  %v4222 = vpack.c.b16 %v4047, %v4044
  %v4223 = vpack.c.b16 %v4051, %v4048
  %v4224 = vpack.c.b16 %v4052, %v4049
  %v4225 = vpack.c.b16 %v4053, %v4050
  %v4226 = vpack.c.b16 %v4057, %v4054
  %v4227 = vpack.c.b16 %v4058, %v4055
  %v4228 = vpack.c.b16 %v4059, %v4056
  %v4229 = vpack.c.b16 %v4063, %v4060
  %v4230 = vpack.c.b16 %v4064, %v4061
  %v4231 = vpack.c.b16 %v4065, %v4062
  %v4232 = vpack.c.b16 %v4069, %v4066
  %v4233 = vpack.c.b16 %v4070, %v4067
  %v4234 = vpack.c.b16 %v4071, %v4068
  %v4235 = vpack.c.b16 %v4075, %v4072
  %v4236 = vpack.c.b16 %v4076, %v4073
  %v4237 = vpack.c.b16 %v4077, %v4074
  %v4238 = vpack.c.b16 %v4081, %v4078
  %v4239 = vpack.c.b16 %v4082, %v4079
  %v4240 = vpack.c.b16 %v4083, %v4080
  %v4241 = vpack.c.b16 %v4087, %v4084
  %v4242 = vpack.c.b16 %v4088, %v4085
  %v4243 = vpack.c.b16 %v4089, %v4086
  %v4244 = vpack.c.b16 %v4093, %v4090
  %v4245 = vpack.c.b16 %v4094, %v4091
  %v4246 = vpack.c.b16 %v4095, %v4092
  %v4247 = vpack.c.b16 %v4099, %v4096
  %v4248 = vpack.c.b16 %v4100, %v4097
  %v4249 = vpack.c.b16 %v4101, %v4098
  %v4250 = vpack.c.b16 %v4105, %v4102
  %v4251 = vpack.c.b16 %v4106, %v4103
  %v4252 = vpack.c.b16 %v4107, %v4104
  %v4253 = vpack.c.b16 %v4111, %v4108
  %v4254 = vpack.c.b16 %v4112, %v4109
  %v4255 = vpack.c.b16 %v4113, %v4110
  %v4256 = vpack.c.b16 %v4117, %v4114
  %v4257 = vpack.c.b16 %v4118, %v4115
  %v4258 = vpack.c.b16 %v4119, %v4116
  %v4259 = vpack.c.b16 %v4123, %v4120
  %v4260 = vpack.c.b16 %v4124, %v4121
  %v4261 = vpack.c.b16 %v4125, %v4122
  %v4262 = vpack.c.b16 %v4129, %v4126
  %v4263 = vpack.c.b16 %v4130, %v4127
  %v4264 = vpack.c.b16 %v4131, %v4128
  %v4265 = vpack.c.b16 %v4135, %v4132
  %v4266 = vpack.c.b16 %v4136, %v4133
  %v4267 = vpack.c.b16 %v4137, %v4134
  %v4268 = vpack.c.b16 %v4141, %v4138
  %v4269 = vpack.c.b16 %v4142, %v4139
  %v4270 = vpack.c.b16 %v4143, %v4140
  %v4271 = vpack.c.b16 %v4147, %v4144
  %v4272 = vpack.c.b16 %v4148, %v4145
  %v4273 = vpack.c.b16 %v4149, %v4146
  %v4274 = vpack.c.b16 %v4153, %v4150
  %v4275 = vpack.c.b16 %v4154, %v4151
  %v4276 = vpack.c.b16 %v4155, %v4152
  %v4277 = vpack.c.b16 %v4159, %v4156
  %v4278 = vpack.c.b16 %v4160, %v4157
  %v4279 = vpack.c.b16 %v4161, %v4158
  %v4280 = vpack.c.b16 %v4162, %v4162
  %v4281 = vpack.c.b16 %v4163, %v4163
  %v4282 = vpack.c.b16 %v4164, %v4164
  %v4369 = vunpack.c.l.b16 %v4165
  %v4370 = vunpack.c.l.b16 %v4166
  %v4371 = vunpack.c.l.b16 %v4167
  %v4372 = vunpack.c.l.b16 %v4168
  %v4373 = vunpack.c.l.b16 %v4169
  %v4374 = vunpack.c.l.b16 %v4170
  %v4375 = vunpack.c.l.b16 %v4171
  %v4376 = vunpack.c.l.b16 %v4172
  %v4377 = vunpack.c.l.b16 %v4173
  %v4378 = vunpack.c.l.b16 %v4174
  %v4379 = vunpack.c.l.b16 %v4175
  %v4380 = vunpack.c.l.b16 %v4176
  %v4381 = vunpack.c.l.b16 %v4177
  %v4382 = vunpack.c.l.b16 %v4178
  %v4383 = vunpack.c.l.b16 %v4179
  %v4384 = vunpack.c.l.b16 %v4180
  %v4385 = vunpack.c.l.b16 %v4181
  %v4386 = vunpack.c.l.b16 %v4182
  %v4387 = vunpack.c.l.b16 %v4183
  %v4388 = vunpack.c.l.b16 %v4184
  %v4389 = vunpack.c.l.b16 %v4185
  %v4390 = vunpack.c.l.b16 %v4186
  %v4391 = vunpack.c.l.b16 %v4187
  %v4392 = vunpack.c.l.b16 %v4188
  %v4393 = vunpack.c.l.b16 %v4189
  %v4394 = vunpack.c.l.b16 %v4190
  %v4395 = vunpack.c.l.b16 %v4191
  %v4396 = vunpack.c.l.b16 %v4192
  %v4397 = vunpack.c.l.b16 %v4193
  %v4398 = vunpack.c.l.b16 %v4194
  %v4399 = vunpack.c.l.b16 %v4195
  %v4400 = vunpack.c.l.b16 %v4196
  %v4401 = vunpack.c.l.b16 %v4197
  %v4402 = vunpack.c.l.b16 %v4198
  %v4403 = vunpack.c.l.b16 %v4199
  %v4404 = vunpack.c.l.b16 %v4200
  %v4405 = vpack.c.b16 %v4370, %v4369
  %v4406 = vpack.c.b16 %v4372, %v4371
  %v4407 = vpack.c.b16 %v4374, %v4373
  %v4408 = vpack.c.b16 %v4376, %v4375
  %v4409 = vpack.c.b16 %v4378, %v4377
  %v4410 = vpack.c.b16 %v4380, %v4379
  %v4411 = vpack.c.b16 %v4382, %v4381
  %v4412 = vpack.c.b16 %v4384, %v4383
  %v4413 = vpack.c.b16 %v4386, %v4385
  %v4414 = vpack.c.b16 %v4388, %v4387
  %v4415 = vpack.c.b16 %v4390, %v4389
  %v4416 = vpack.c.b16 %v4392, %v4391
  %v4417 = vpack.c.b16 %v4394, %v4393
  %v4418 = vpack.c.b16 %v4396, %v4395
  %v4419 = vpack.c.b16 %v4398, %v4397
  %v4420 = vpack.c.b16 %v4400, %v4399
  %v4421 = vpack.c.b16 %v4402, %v4401
  %v4422 = vpack.c.b16 %v4404, %v4403
  %v4442 = vsel %vm3266, %v4210, 0
  %v4445 = vsel %vm3266, %v4213, 0
  %v4448 = vsel %vm3266, %v4216, 0
  %v4451 = vsel %vm3266, %v4219, 0
  %v4454 = vsel %vm3266, %v4222, 0
  %v4457 = vsel %vm3266, %v4225, 0
  %v4460 = vsel %vm3266, %v4228, 0
  %v4463 = vsel %vm3266, %v4231, 0
  %v4466 = vsel %vm3266, %v4234, 0
  %v4469 = vsel %vm3266, %v4237, 0
  %v4472 = vsel %vm3266, %v4240, 0
  %v4475 = vsel %vm3266, %v4243, 0
  %v4478 = vsel %vm3266, %v4246, 0
  %v4481 = vsel %vm3266, %v4249, 0
  %v4484 = vsel %vm3266, %v4252, 0
  %v4487 = vsel %vm3266, %v4255, 0
  %v4490 = vsel %vm3266, %v4258, 0
  %v4493 = vsel %vm3266, %v4261, 0
  %v4496 = vsel %vm3266, %v4264, 0
  %v4499 = vsel %vm3266, %v4267, 0
  %v4502 = vsel %vm3266, %v4270, 0
  %v4505 = vsel %vm3266, %v4273, 0
  %v4508 = vsel %vm3266, %v4276, 0
  %v4511 = vsel %vm3266, %v4279, 0
  %v4514 = vsel %vm3266, %v4282, 0
  %4516 = vmatprep.subr.bf16.mxu0 0
  %4517 = vmatpush1.bf16.msra.mxu0 %v4405
  %4518 = vmatprep.subr.bf16.mxu0 0
  %4519 = vmatpush1.bf16.msra.mxu0 %v4406
  %4520 = vmatprep.subr.bf16.mxu0 0
  %4521 = vmatpush1.bf16.msra.mxu0 %v4407
  %4522 = vmatprep.subr.bf16.mxu0 0
  %4523 = vmatpush1.bf16.msra.mxu0 %v4408
  %4524 = vmatprep.subr.bf16.mxu0 0
  %4525 = vmatpush1.bf16.msra.mxu0 %v4409
  %4526 = vmatprep.subr.bf16.mxu0 0
  %4527 = vmatpush1.bf16.msra.mxu0 %v4410
  %4528 = vmatprep.subr.bf16.mxu0 0
  %4529 = vmatpush1.bf16.msra.mxu0 %v4411
  %4530 = vmatprep.subr.bf16.mxu0 0
  %4531 = vmatpush1.bf16.msra.mxu0 %v4412
  %4532 = vmatprep.subr.bf16.mxu0 0
  %4533 = vmatpush1.bf16.msra.mxu0 %v4413
  %4534 = vmatprep.subr.bf16.mxu0 0
  %4535 = vmatpush1.bf16.msra.mxu0 %v4414
  %4536 = vmatprep.subr.bf16.mxu0 0
  %4537 = vmatpush1.bf16.msra.mxu0 %v4415
  %4538 = vmatprep.subr.bf16.mxu0 0
  %4539 = vmatpush1.bf16.msra.mxu0 %v4416
  %4540 = vmatprep.subr.bf16.mxu0 0
  %4541 = vmatpush1.bf16.msra.mxu0 %v4417
  %4542 = vmatprep.subr.bf16.mxu0 0
  %4543 = vmatpush1.bf16.msra.mxu0 %v4418
  %4544 = vmatprep.subr.bf16.mxu0 0
  %4545 = vmatpush1.bf16.msra.mxu0 %v4419
  %4546 = vmatprep.subr.bf16.mxu0 0
  %4547 = vmatpush1.bf16.msra.mxu0 %v4420
  %4548 = vmatprep.mubr.bf16.mxu0 %v4209
  %4549 = vmatmul.mubr.bf16.gmra.mrb[0].mxu0 %v4208
  %v4550 = vpop.f32.mrb[0].mxu0
  %v4551 = vadd.f32 %v4206, %v4550
  %v4552 = vpop.f32.mrb[0].mxu0
  %v4553 = vpop.f32.mrb[0].mxu0
  %v4554 = vadd.f32 %v4206, %v4553
  %v4555 = vpop.f32.mrb[0].mxu0
  %4556 = vmatprep.mubr.bf16.mxu0 %v4212
  %4557 = vmatmul.mubr.bf16.gmra.mrb[0].mxu0 %v4211
  %v4558 = vpop.f32.mrb[0].mxu0
  %v4559 = vadd.f32 %v4206, %v4558
  %v4560 = vpop.f32.mrb[0].mxu0
  %v4561 = vpop.f32.mrb[0].mxu0
  %v4562 = vadd.f32 %v4206, %v4561
  %v4563 = vpop.f32.mrb[0].mxu0
  %4564 = vmatprep.mubr.bf16.mxu0 %v4215
  %4565 = vmatmul.mubr.bf16.gmra.mrb[0].mxu0 %v4214
  %v4566 = vpop.f32.mrb[0].mxu0
  %v4567 = vadd.f32 %v4206, %v4566
  %v4568 = vpop.f32.mrb[0].mxu0
  %v4569 = vpop.f32.mrb[0].mxu0
  %v4570 = vadd.f32 %v4206, %v4569
  %v4571 = vpop.f32.mrb[0].mxu0
  %4572 = vmatprep.mubr.bf16.mxu0 %v4218
  %4573 = vmatmul.mubr.bf16.gmra.mrb[0].mxu0 %v4217
  %v4574 = vpop.f32.mrb[0].mxu0
  %v4575 = vadd.f32 %v4206, %v4574
  %v4576 = vpop.f32.mrb[0].mxu0
  %v4577 = vpop.f32.mrb[0].mxu0
  %v4578 = vadd.f32 %v4206, %v4577
  %v4579 = vpop.f32.mrb[0].mxu0
  %4580 = vmatprep.mubr.bf16.mxu0 %v4221
  %4581 = vmatmul.mubr.bf16.gmra.mrb[0].mxu0 %v4220
  %v4582 = vpop.f32.mrb[0].mxu0
  %v4583 = vadd.f32 %v4206, %v4582
  %v4584 = vpop.f32.mrb[0].mxu0
  %v4585 = vpop.f32.mrb[0].mxu0
  %v4586 = vadd.f32 %v4206, %v4585
  %v4587 = vpop.f32.mrb[0].mxu0
  %4588 = vmatprep.mubr.bf16.mxu0 %v4224
  %4589 = vmatmul.mubr.bf16.gmra.mrb[0].mxu0 %v4223
  %v4590 = vpop.f32.mrb[0].mxu0
  %v4591 = vadd.f32 %v4206, %v4590
  %v4592 = vpop.f32.mrb[0].mxu0
  %v4593 = vpop.f32.mrb[0].mxu0
  %v4594 = vadd.f32 %v4206, %v4593
  %v4595 = vpop.f32.mrb[0].mxu0
  %4596 = vmatprep.mubr.bf16.mxu0 %v4227
  %4597 = vmatmul.mubr.bf16.gmra.mrb[0].mxu0 %v4226
  %v4598 = vpop.f32.mrb[0].mxu0
  %v4599 = vadd.f32 %v4206, %v4598
  %v4600 = vpop.f32.mrb[0].mxu0
  %v4601 = vpop.f32.mrb[0].mxu0
  %v4602 = vadd.f32 %v4206, %v4601
  %v4603 = vpop.f32.mrb[0].mxu0
  %4604 = vmatprep.mubr.bf16.mxu0 %v4230
  %4605 = vmatmul.mubr.bf16.gmra.mrb[0].mxu0 %v4229
  %v4606 = vpop.f32.mrb[0].mxu0
  %v4607 = vadd.f32 %v4206, %v4606
  %v4608 = vpop.f32.mrb[0].mxu0
  %v4609 = vpop.f32.mrb[0].mxu0
  %v4610 = vadd.f32 %v4206, %v4609
  %v4611 = vpop.f32.mrb[0].mxu0
  %4612 = vmatprep.mubr.bf16.mxu0 %v4233
  %4613 = vmatmul.mubr.bf16.gmra.mrb[0].mxu0 %v4232
  %v4614 = vpop.f32.mrb[0].mxu0
  %v4615 = vadd.f32 %v4206, %v4614
  %v4616 = vpop.f32.mrb[0].mxu0
  %v4617 = vpop.f32.mrb[0].mxu0
  %v4618 = vadd.f32 %v4206, %v4617
  %v4619 = vpop.f32.mrb[0].mxu0
  %4620 = vmatprep.mubr.bf16.mxu0 %v4236
  %4621 = vmatmul.mubr.bf16.gmra.mrb[0].mxu0 %v4235
  %v4622 = vpop.f32.mrb[0].mxu0
  %v4623 = vadd.f32 %v4206, %v4622
  %v4624 = vpop.f32.mrb[0].mxu0
  %v4625 = vpop.f32.mrb[0].mxu0
  %v4626 = vadd.f32 %v4206, %v4625
  %v4627 = vpop.f32.mrb[0].mxu0
  %4628 = vmatprep.mubr.bf16.mxu0 %v4239
  %4629 = vmatmul.mubr.bf16.gmra.mrb[0].mxu0 %v4238
  %v4630 = vpop.f32.mrb[0].mxu0
  %v4631 = vadd.f32 %v4206, %v4630
  %v4632 = vpop.f32.mrb[0].mxu0
  %v4633 = vpop.f32.mrb[0].mxu0
  %v4634 = vadd.f32 %v4206, %v4633
  %v4635 = vpop.f32.mrb[0].mxu0
  %4636 = vmatprep.mubr.bf16.mxu0 %v4242
  %4637 = vmatmul.mubr.bf16.gmra.mrb[0].mxu0 %v4241
  %v4638 = vpop.f32.mrb[0].mxu0
  %v4639 = vadd.f32 %v4206, %v4638
  %v4640 = vpop.f32.mrb[0].mxu0
  %v4641 = vpop.f32.mrb[0].mxu0
  %v4642 = vadd.f32 %v4206, %v4641
  %v4643 = vpop.f32.mrb[0].mxu0
  %4644 = vmatprep.mubr.bf16.mxu0 %v4245
  %4645 = vmatmul.mubr.bf16.gmra.mrb[0].mxu0 %v4244
  %v4646 = vpop.f32.mrb[0].mxu0
  %v4647 = vadd.f32 %v4206, %v4646
  %v4648 = vpop.f32.mrb[0].mxu0
  %v4649 = vpop.f32.mrb[0].mxu0
  %v4650 = vadd.f32 %v4206, %v4649
  %v4651 = vpop.f32.mrb[0].mxu0
  %4652 = vmatprep.mubr.bf16.mxu0 %v4248
  %4653 = vmatmul.mubr.bf16.gmra.mrb[0].mxu0 %v4247
  %v4654 = vpop.f32.mrb[0].mxu0
  %v4655 = vadd.f32 %v4206, %v4654
  %v4656 = vpop.f32.mrb[0].mxu0
  %v4657 = vpop.f32.mrb[0].mxu0
  %v4658 = vadd.f32 %v4206, %v4657
  %v4659 = vpop.f32.mrb[0].mxu0
  %4660 = vmatprep.mubr.bf16.mxu0 %v4251
  %4661 = vmatmul.mubr.bf16.gmra.mrb[0].mxu0 %v4250
  %v4662 = vpop.f32.mrb[0].mxu0
  %v4663 = vadd.f32 %v4206, %v4662
  %v4664 = vpop.f32.mrb[0].mxu0
  %v4665 = vpop.f32.mrb[0].mxu0
  %v4666 = vadd.f32 %v4206, %v4665
  %v4667 = vpop.f32.mrb[0].mxu0
  %4668 = vmatprep.mubr.bf16.mxu0 %v4254
  %4669 = vmatmul.mubr.bf16.gmra.mrb[0].mxu0 %v4253
  %v4670 = vpop.f32.mrb[0].mxu0
  %v4671 = vadd.f32 %v4206, %v4670
  %v4672 = vpop.f32.mrb[0].mxu0
  %v4673 = vpop.f32.mrb[0].mxu0
  %v4674 = vadd.f32 %v4206, %v4673
  %v4675 = vpop.f32.mrb[0].mxu0
  %4676 = vmatprep.mubr.bf16.mxu0 %v4257
  %4677 = vmatmul.mubr.bf16.gmra.mrb[0].mxu0 %v4256
  %v4678 = vpop.f32.mrb[0].mxu0
  %v4679 = vadd.f32 %v4206, %v4678
  %v4680 = vpop.f32.mrb[0].mxu0
  %v4681 = vpop.f32.mrb[0].mxu0
  %v4682 = vadd.f32 %v4206, %v4681
  %v4683 = vpop.f32.mrb[0].mxu0
  %4684 = vmatprep.mubr.bf16.mxu0 %v4260
  %4685 = vmatmul.mubr.bf16.gmra.mrb[0].mxu0 %v4259
  %v4686 = vpop.f32.mrb[0].mxu0
  %v4687 = vadd.f32 %v4206, %v4686
  %v4688 = vpop.f32.mrb[0].mxu0
  %v4689 = vpop.f32.mrb[0].mxu0
  %v4690 = vadd.f32 %v4206, %v4689
  %v4691 = vpop.f32.mrb[0].mxu0
  %4692 = vmatprep.mubr.bf16.mxu0 %v4263
  %4693 = vmatmul.mubr.bf16.gmra.mrb[0].mxu0 %v4262
  %v4694 = vpop.f32.mrb[0].mxu0
  %v4695 = vadd.f32 %v4206, %v4694
  %v4696 = vpop.f32.mrb[0].mxu0
  %v4697 = vpop.f32.mrb[0].mxu0
  %v4698 = vadd.f32 %v4206, %v4697
  %v4699 = vpop.f32.mrb[0].mxu0
  %4700 = vmatprep.mubr.bf16.mxu0 %v4266
  %4701 = vmatmul.mubr.bf16.gmra.mrb[0].mxu0 %v4265
  %v4702 = vpop.f32.mrb[0].mxu0
  %v4703 = vadd.f32 %v4206, %v4702
  %v4704 = vpop.f32.mrb[0].mxu0
  %v4705 = vpop.f32.mrb[0].mxu0
  %v4706 = vadd.f32 %v4206, %v4705
  %v4707 = vpop.f32.mrb[0].mxu0
  %4708 = vmatprep.mubr.bf16.mxu0 %v4269
  %4709 = vmatmul.mubr.bf16.gmra.mrb[0].mxu0 %v4268
  %v4710 = vpop.f32.mrb[0].mxu0
  %v4711 = vadd.f32 %v4206, %v4710
  %v4712 = vpop.f32.mrb[0].mxu0
  %v4713 = vpop.f32.mrb[0].mxu0
  %v4714 = vadd.f32 %v4206, %v4713
  %v4715 = vpop.f32.mrb[0].mxu0
  %4716 = vmatprep.mubr.bf16.mxu0 %v4272
  %4717 = vmatmul.mubr.bf16.gmra.mrb[0].mxu0 %v4271
  %v4718 = vpop.f32.mrb[0].mxu0
  %v4719 = vadd.f32 %v4206, %v4718
  %v4720 = vpop.f32.mrb[0].mxu0
  %v4721 = vpop.f32.mrb[0].mxu0
  %v4722 = vadd.f32 %v4206, %v4721
  %v4723 = vpop.f32.mrb[0].mxu0
  %4724 = vmatprep.mubr.bf16.mxu0 %v4275
  %4725 = vmatmul.mubr.bf16.gmra.mrb[0].mxu0 %v4274
  %v4726 = vpop.f32.mrb[0].mxu0
  %v4727 = vadd.f32 %v4206, %v4726
  %v4728 = vpop.f32.mrb[0].mxu0
  %v4729 = vpop.f32.mrb[0].mxu0
  %v4730 = vadd.f32 %v4206, %v4729
  %v4731 = vpop.f32.mrb[0].mxu0
  %4732 = vmatprep.mubr.bf16.mxu0 %v4278
  %4733 = vmatmul.mubr.bf16.gmra.mrb[0].mxu0 %v4277
  %v4734 = vpop.f32.mrb[0].mxu0
  %v4735 = vadd.f32 %v4206, %v4734
  %v4736 = vpop.f32.mrb[0].mxu0
  %v4737 = vpop.f32.mrb[0].mxu0
  %v4738 = vadd.f32 %v4206, %v4737
  %v4739 = vpop.f32.mrb[0].mxu0
  %4740 = vmatprep.mubr.bf16.mxu0 %v4281
  %4741 = vmatmul.mubr.bf16.gmra.mrb[0].mxu0 %v4280
  %v4742 = vpop.f32.mrb[0].mxu0
  %v4743 = vadd.f32 %v4206, %v4742
  %v4744 = vpop.f32.mrb[0].mxu0
  %v4745 = vpop.f32.mrb[0].mxu0
  %v4746 = vpop.f32.mrb[0].mxu0
  %4747 = vdwg.mxu0
  %4748 = vmatprep.subr.bf16.mxu0 0
  %4749 = vmatpush1.bf16.msra.mxu0 %v4421
  %4750 = vmatprep.subr.bf16.mxu0 0
  %4751 = vmatpush1.bf16.msra.mxu0 %v4422
  %4752 = vmatprep.subr.bf16.mxu0 0
  %4753 = vmatpush1.bf16.msra.mxu0 0
  %4754 = vmatprep.subr.bf16.mxu0 0
  %4755 = vmatpush1.bf16.msra.mxu0 0
  %4756 = vmatprep.subr.bf16.mxu0 0
  %4757 = vmatpush1.bf16.msra.mxu0 0
  %4758 = vmatprep.subr.bf16.mxu0 0
  %4759 = vmatpush1.bf16.msra.mxu0 0
  %4760 = vmatprep.subr.bf16.mxu0 0
  %4761 = vmatpush1.bf16.msra.mxu0 0
  %4762 = vmatprep.subr.bf16.mxu0 0
  %4763 = vmatpush1.bf16.msra.mxu0 0
  %4764 = vmatprep.subr.bf16.mxu0 0
  %4765 = vmatpush1.bf16.msra.mxu0 0
  %4766 = vmatprep.subr.bf16.mxu0 0
  %4767 = vmatpush1.bf16.msra.mxu0 0
  %4768 = vmatprep.subr.bf16.mxu0 0
  %4769 = vmatpush1.bf16.msra.mxu0 0
  %4770 = vmatprep.subr.bf16.mxu0 0
  %4771 = vmatpush1.bf16.msra.mxu0 0
  %4772 = vmatprep.subr.bf16.mxu0 0
  %4773 = vmatpush1.bf16.msra.mxu0 0
  %4774 = vmatprep.subr.bf16.mxu0 0
  %4775 = vmatpush1.bf16.msra.mxu0 0
  %4776 = vmatprep.subr.bf16.mxu0 0
  %4777 = vmatpush1.bf16.msra.mxu0 0
  %4778 = vmatprep.subr.bf16.mxu0 0
  %4779 = vmatpush1.bf16.msra.mxu0 0
  %4780 = vmatprep.mubr.bf16.mxu0 0
  %4781 = vmatmul.mubr.bf16.gmra.mrb[0].mxu0 %v4442
  %v4782 = vpop.f32.mrb[0].mxu0
  %v4783 = vadd.f32 %v4551, %v4782
  %v4784 = vpop.f32.mrb[0].mxu0
  %v4785 = vpop.f32.mrb[0].mxu0
  %v4786 = vadd.f32 %v4554, %v4785
  %v4787 = vpop.f32.mrb[0].mxu0
  %4788 = vmatprep.mubr.bf16.mxu0 0
  %4789 = vmatmul.mubr.bf16.gmra.mrb[0].mxu0 %v4445
  %v4790 = vpop.f32.mrb[0].mxu0
  %v4791 = vadd.f32 %v4559, %v4790
  %v4792 = vpop.f32.mrb[0].mxu0
  %v4793 = vpop.f32.mrb[0].mxu0
  %v4794 = vadd.f32 %v4562, %v4793
  %v4795 = vpop.f32.mrb[0].mxu0
  %4796 = vmatprep.mubr.bf16.mxu0 0
  %4797 = vmatmul.mubr.bf16.gmra.mrb[0].mxu0 %v4448
  %v4798 = vpop.f32.mrb[0].mxu0
  %v4799 = vadd.f32 %v4567, %v4798
  %v4800 = vpop.f32.mrb[0].mxu0
  %v4801 = vpop.f32.mrb[0].mxu0
  %v4802 = vadd.f32 %v4570, %v4801
  %v4803 = vpop.f32.mrb[0].mxu0
  %4804 = vmatprep.mubr.bf16.mxu0 0
  %4805 = vmatmul.mubr.bf16.gmra.mrb[0].mxu0 %v4451
  %v4806 = vpop.f32.mrb[0].mxu0
  %v4807 = vadd.f32 %v4575, %v4806
  %v4808 = vpop.f32.mrb[0].mxu0
  %v4809 = vpop.f32.mrb[0].mxu0
  %v4810 = vadd.f32 %v4578, %v4809
  %v4811 = vpop.f32.mrb[0].mxu0
  %4812 = vmatprep.mubr.bf16.mxu0 0
  %4813 = vmatmul.mubr.bf16.gmra.mrb[0].mxu0 %v4454
  %v4814 = vpop.f32.mrb[0].mxu0
  %v4815 = vadd.f32 %v4583, %v4814
  %v4816 = vpop.f32.mrb[0].mxu0
  %v4817 = vpop.f32.mrb[0].mxu0
  %v4818 = vadd.f32 %v4586, %v4817
  %v4819 = vpop.f32.mrb[0].mxu0
  %4820 = vmatprep.mubr.bf16.mxu0 0
  %4821 = vmatmul.mubr.bf16.gmra.mrb[0].mxu0 %v4457
  %v4822 = vpop.f32.mrb[0].mxu0
  %v4823 = vadd.f32 %v4591, %v4822
  %v4824 = vpop.f32.mrb[0].mxu0
  %v4825 = vpop.f32.mrb[0].mxu0
  %v4826 = vadd.f32 %v4594, %v4825
  %v4827 = vpop.f32.mrb[0].mxu0
  %4828 = vmatprep.mubr.bf16.mxu0 0
  %4829 = vmatmul.mubr.bf16.gmra.mrb[0].mxu0 %v4460
  %v4830 = vpop.f32.mrb[0].mxu0
  %v4831 = vadd.f32 %v4599, %v4830
  %v4832 = vpop.f32.mrb[0].mxu0
  %v4833 = vpop.f32.mrb[0].mxu0
  %v4834 = vadd.f32 %v4602, %v4833
  %v4835 = vpop.f32.mrb[0].mxu0
  %4836 = vmatprep.mubr.bf16.mxu0 0
  %4837 = vmatmul.mubr.bf16.gmra.mrb[0].mxu0 %v4463
  %v4838 = vpop.f32.mrb[0].mxu0
  %v4839 = vadd.f32 %v4607, %v4838
  %v4840 = vpop.f32.mrb[0].mxu0
  %v4841 = vpop.f32.mrb[0].mxu0
  %v4842 = vadd.f32 %v4610, %v4841
  %v4843 = vpop.f32.mrb[0].mxu0
  %4844 = vmatprep.mubr.bf16.mxu0 0
  %4845 = vmatmul.mubr.bf16.gmra.mrb[0].mxu0 %v4466
  %v4846 = vpop.f32.mrb[0].mxu0
  %v4847 = vadd.f32 %v4615, %v4846
  %v4848 = vpop.f32.mrb[0].mxu0
  %v4849 = vpop.f32.mrb[0].mxu0
  %v4850 = vadd.f32 %v4618, %v4849
  %v4851 = vpop.f32.mrb[0].mxu0
  %4852 = vmatprep.mubr.bf16.mxu0 0
  %4853 = vmatmul.mubr.bf16.gmra.mrb[0].mxu0 %v4469
  %v4854 = vpop.f32.mrb[0].mxu0
  %v4855 = vadd.f32 %v4623, %v4854
  %v4856 = vpop.f32.mrb[0].mxu0
  %v4857 = vpop.f32.mrb[0].mxu0
  %v4858 = vadd.f32 %v4626, %v4857
  %v4859 = vpop.f32.mrb[0].mxu0
  %4860 = vmatprep.mubr.bf16.mxu0 0
  %4861 = vmatmul.mubr.bf16.gmra.mrb[0].mxu0 %v4472
  %v4862 = vpop.f32.mrb[0].mxu0
  %v4863 = vadd.f32 %v4631, %v4862
  %v4864 = vpop.f32.mrb[0].mxu0
  %v4865 = vpop.f32.mrb[0].mxu0
  %v4866 = vadd.f32 %v4634, %v4865
  %v4867 = vpop.f32.mrb[0].mxu0
  %4868 = vmatprep.mubr.bf16.mxu0 0
  %4869 = vmatmul.mubr.bf16.gmra.mrb[0].mxu0 %v4475
  %v4870 = vpop.f32.mrb[0].mxu0
  %v4871 = vadd.f32 %v4639, %v4870
  %v4872 = vpop.f32.mrb[0].mxu0
  %v4873 = vpop.f32.mrb[0].mxu0
  %v4874 = vadd.f32 %v4642, %v4873
  %v4875 = vpop.f32.mrb[0].mxu0
  %4876 = vmatprep.mubr.bf16.mxu0 0
  %4877 = vmatmul.mubr.bf16.gmra.mrb[0].mxu0 %v4478
  %v4878 = vpop.f32.mrb[0].mxu0
  %v4879 = vadd.f32 %v4647, %v4878
  %v4880 = vpop.f32.mrb[0].mxu0
  %v4881 = vpop.f32.mrb[0].mxu0
  %v4882 = vadd.f32 %v4650, %v4881
  %v4883 = vpop.f32.mrb[0].mxu0
  %4884 = vmatprep.mubr.bf16.mxu0 0
  %4885 = vmatmul.mubr.bf16.gmra.mrb[0].mxu0 %v4481
  %v4886 = vpop.f32.mrb[0].mxu0
  %v4887 = vadd.f32 %v4655, %v4886
  %v4888 = vpop.f32.mrb[0].mxu0
  %v4889 = vpop.f32.mrb[0].mxu0
  %v4890 = vadd.f32 %v4658, %v4889
  %v4891 = vpop.f32.mrb[0].mxu0
  %4892 = vmatprep.mubr.bf16.mxu0 0
  %4893 = vmatmul.mubr.bf16.gmra.mrb[0].mxu0 %v4484
  %v4894 = vpop.f32.mrb[0].mxu0
  %v4895 = vadd.f32 %v4663, %v4894
  %v4896 = vpop.f32.mrb[0].mxu0
  %v4897 = vpop.f32.mrb[0].mxu0
  %v4898 = vadd.f32 %v4666, %v4897
  %v4899 = vpop.f32.mrb[0].mxu0
  %4900 = vmatprep.mubr.bf16.mxu0 0
  %4901 = vmatmul.mubr.bf16.gmra.mrb[0].mxu0 %v4487
  %v4902 = vpop.f32.mrb[0].mxu0
  %v4903 = vadd.f32 %v4671, %v4902
  %v4904 = vpop.f32.mrb[0].mxu0
  %v4905 = vpop.f32.mrb[0].mxu0
  %v4906 = vadd.f32 %v4674, %v4905
  %v4907 = vpop.f32.mrb[0].mxu0
  %4908 = vmatprep.mubr.bf16.mxu0 0
  %4909 = vmatmul.mubr.bf16.gmra.mrb[0].mxu0 %v4490
  %v4910 = vpop.f32.mrb[0].mxu0
  %v4911 = vadd.f32 %v4679, %v4910
  %v4912 = vpop.f32.mrb[0].mxu0
  %v4913 = vpop.f32.mrb[0].mxu0
  %v4914 = vadd.f32 %v4682, %v4913
  %v4915 = vpop.f32.mrb[0].mxu0
  %4916 = vmatprep.mubr.bf16.mxu0 0
  %4917 = vmatmul.mubr.bf16.gmra.mrb[0].mxu0 %v4493
  %v4918 = vpop.f32.mrb[0].mxu0
  %v4919 = vadd.f32 %v4687, %v4918
  %v4920 = vpop.f32.mrb[0].mxu0
  %v4921 = vpop.f32.mrb[0].mxu0
  %v4922 = vadd.f32 %v4690, %v4921
  %v4923 = vpop.f32.mrb[0].mxu0
  %4924 = vmatprep.mubr.bf16.mxu0 0
  %4925 = vmatmul.mubr.bf16.gmra.mrb[0].mxu0 %v4496
  %v4926 = vpop.f32.mrb[0].mxu0
  %v4927 = vadd.f32 %v4695, %v4926
  %v4928 = vpop.f32.mrb[0].mxu0
  %v4929 = vpop.f32.mrb[0].mxu0
  %v4930 = vadd.f32 %v4698, %v4929
  %v4931 = vpop.f32.mrb[0].mxu0
  %4932 = vmatprep.mubr.bf16.mxu0 0
  %4933 = vmatmul.mubr.bf16.gmra.mrb[0].mxu0 %v4499
  %v4934 = vpop.f32.mrb[0].mxu0
  %v4935 = vadd.f32 %v4703, %v4934
  %v4936 = vpop.f32.mrb[0].mxu0
  %v4937 = vpop.f32.mrb[0].mxu0
  %v4938 = vadd.f32 %v4706, %v4937
  %v4939 = vpop.f32.mrb[0].mxu0
  %4940 = vmatprep.mubr.bf16.mxu0 0
  %4941 = vmatmul.mubr.bf16.gmra.mrb[0].mxu0 %v4502
  %v4942 = vpop.f32.mrb[0].mxu0
  %v4943 = vadd.f32 %v4711, %v4942
  %v4944 = vpop.f32.mrb[0].mxu0
  %v4945 = vpop.f32.mrb[0].mxu0
  %v4946 = vadd.f32 %v4714, %v4945
  %v4947 = vpop.f32.mrb[0].mxu0
  %4948 = vmatprep.mubr.bf16.mxu0 0
  %4949 = vmatmul.mubr.bf16.gmra.mrb[0].mxu0 %v4505
  %v4950 = vpop.f32.mrb[0].mxu0
  %v4951 = vadd.f32 %v4719, %v4950
  %v4952 = vpop.f32.mrb[0].mxu0
  %v4953 = vpop.f32.mrb[0].mxu0
  %v4954 = vadd.f32 %v4722, %v4953
  %v4955 = vpop.f32.mrb[0].mxu0
  %4956 = vmatprep.mubr.bf16.mxu0 0
  %4957 = vmatmul.mubr.bf16.gmra.mrb[0].mxu0 %v4508
  %v4958 = vpop.f32.mrb[0].mxu0
  %v4959 = vadd.f32 %v4727, %v4958
  %v4960 = vpop.f32.mrb[0].mxu0
  %v4961 = vpop.f32.mrb[0].mxu0
  %v4962 = vadd.f32 %v4730, %v4961
  %v4963 = vpop.f32.mrb[0].mxu0
  %4964 = vmatprep.mubr.bf16.mxu0 0
  %4965 = vmatmul.mubr.bf16.gmra.mrb[0].mxu0 %v4511
  %v4966 = vpop.f32.mrb[0].mxu0
  %v4967 = vadd.f32 %v4735, %v4966
  %v4968 = vpop.f32.mrb[0].mxu0
  %v4969 = vpop.f32.mrb[0].mxu0
  %v4970 = vadd.f32 %v4738, %v4969
  %v4971 = vpop.f32.mrb[0].mxu0
  %4972 = vmatprep.mubr.bf16.mxu0 0
  %4973 = vmatmul.mubr.bf16.gmra.mrb[0].mxu0 %v4514
  %v4974 = vpop.f32.mrb[0].mxu0
  %v4975 = vadd.f32 %v4743, %v4974
  %v4976 = vpop.f32.mrb[0].mxu0
  %v4977 = vpop.f32.mrb[0].mxu0
  %v4978 = vpop.f32.mrb[0].mxu0
  %4979 = vdwg.mxu0
  %v4980 = vmax.f32 %v4783, 0.0
  %v4981 = vmax.f32 %v4786, 0.0
  %v4982 = vmax.f32 %v4791, 0.0
  %v4983 = vmax.f32 %v4794, 0.0
  %v4984 = vmax.f32 %v4799, 0.0
  %v4985 = vmax.f32 %v4802, 0.0
  %v4986 = vmax.f32 %v4807, 0.0
  %v4987 = vmax.f32 %v4810, 0.0
  %v4988 = vmax.f32 %v4815, 0.0
  %v4989 = vmax.f32 %v4818, 0.0
  %v4990 = vmax.f32 %v4823, 0.0
  %v4991 = vmax.f32 %v4826, 0.0
  %v4992 = vmax.f32 %v4831, 0.0
  %v4993 = vmax.f32 %v4834, 0.0
  %v4994 = vmax.f32 %v4839, 0.0
  %v4995 = vmax.f32 %v4842, 0.0
  %v4996 = vmax.f32 %v4847, 0.0
  %v4997 = vmax.f32 %v4850, 0.0
  %v4998 = vmax.f32 %v4855, 0.0
  %v4999 = vmax.f32 %v4858, 0.0
  %v5000 = vmax.f32 %v4863, 0.0
  %v5001 = vmax.f32 %v4866, 0.0
  %v5002 = vmax.f32 %v4871, 0.0
  %v5003 = vmax.f32 %v4874, 0.0
  %v5004 = vmax.f32 %v4879, 0.0
  %v5005 = vmax.f32 %v4882, 0.0
  %v5006 = vmax.f32 %v4887, 0.0
  %v5007 = vmax.f32 %v4890, 0.0
  %v5008 = vmax.f32 %v4895, 0.0
  %v5009 = vmax.f32 %v4898, 0.0
  %v5010 = vmax.f32 %v4903, 0.0
  %v5011 = vmax.f32 %v4906, 0.0
  %v5012 = vmax.f32 %v4911, 0.0
  %v5013 = vmax.f32 %v4914, 0.0
  %v5014 = vmax.f32 %v4919, 0.0
  %v5015 = vmax.f32 %v4922, 0.0
  %v5016 = vmax.f32 %v4927, 0.0
  %v5017 = vmax.f32 %v4930, 0.0
  %v5018 = vmax.f32 %v4935, 0.0
  %v5019 = vmax.f32 %v4938, 0.0
  %v5020 = vmax.f32 %v4943, 0.0
  %v5021 = vmax.f32 %v4946, 0.0
  %v5022 = vmax.f32 %v4951, 0.0
  %v5023 = vmax.f32 %v4954, 0.0
  %v5024 = vmax.f32 %v4959, 0.0
  %v5025 = vmax.f32 %v4962, 0.0
  %v5026 = vmax.f32 %v4967, 0.0
  %v5027 = vmax.f32 %v4970, 0.0
  %v5028 = vmax.f32 %v4975, 0.0
  %v5029 = vpack.c.bf16 %v4980, %v4980
  %v5030 = vpack.c.bf16 %v4981, %v4981
  %v5031 = vpack.c.bf16 %v4982, %v4982
  %v5032 = vpack.c.bf16 %v4983, %v4983
  %v5033 = vpack.c.bf16 %v4984, %v4984
  %v5034 = vpack.c.bf16 %v4985, %v4985
  %v5035 = vpack.c.bf16 %v4986, %v4986
  %v5036 = vpack.c.bf16 %v4987, %v4987
  %v5037 = vpack.c.bf16 %v4988, %v4988
  %v5038 = vpack.c.bf16 %v4989, %v4989
  %v5039 = vpack.c.bf16 %v4990, %v4990
  %v5040 = vpack.c.bf16 %v4991, %v4991
  %v5041 = vpack.c.bf16 %v4992, %v4992
  %v5042 = vpack.c.bf16 %v4993, %v4993
  %v5043 = vpack.c.bf16 %v4994, %v4994
  %v5044 = vpack.c.bf16 %v4995, %v4995
  %v5045 = vpack.c.bf16 %v4996, %v4996
  %v5046 = vpack.c.bf16 %v4997, %v4997
  %v5047 = vpack.c.bf16 %v4998, %v4998
  %v5048 = vpack.c.bf16 %v4999, %v4999
  %v5049 = vpack.c.bf16 %v5000, %v5000
  %v5050 = vpack.c.bf16 %v5001, %v5001
  %v5051 = vpack.c.bf16 %v5002, %v5002
  %v5052 = vpack.c.bf16 %v5003, %v5003
  %v5053 = vpack.c.bf16 %v5004, %v5004
  %v5054 = vpack.c.bf16 %v5005, %v5005
  %v5055 = vpack.c.bf16 %v5006, %v5006
  %v5056 = vpack.c.bf16 %v5007, %v5007
  %v5057 = vpack.c.bf16 %v5008, %v5008
  %v5058 = vpack.c.bf16 %v5009, %v5009
  %v5059 = vpack.c.bf16 %v5010, %v5010
  %v5060 = vpack.c.bf16 %v5011, %v5011
  %v5061 = vpack.c.bf16 %v5012, %v5012
  %v5062 = vpack.c.bf16 %v5013, %v5013
  %v5063 = vpack.c.bf16 %v5014, %v5014
  %v5064 = vpack.c.bf16 %v5015, %v5015
  %v5065 = vpack.c.bf16 %v5016, %v5016
  %v5066 = vpack.c.bf16 %v5017, %v5017
  %v5067 = vpack.c.bf16 %v5018, %v5018
  %v5068 = vpack.c.bf16 %v5019, %v5019
  %v5069 = vpack.c.bf16 %v5020, %v5020
  %v5070 = vpack.c.bf16 %v5021, %v5021
  %v5071 = vpack.c.bf16 %v5022, %v5022
  %v5072 = vpack.c.bf16 %v5023, %v5023
  %v5073 = vpack.c.bf16 %v5024, %v5024
  %v5074 = vpack.c.bf16 %v5025, %v5025
  %v5075 = vpack.c.bf16 %v5026, %v5026
  %v5076 = vpack.c.bf16 %v5027, %v5027
  %v5077 = vpack.c.bf16 %v5028, %v5028
  %5087 = vrot.lane.b32.xlu0 %v5030, 64
  %v5088 = vpop.permute.xlu0 %5087
  %5089 = vrot.lane.b32.xlu0 %v5032, 64
  %v5090 = vpop.permute.xlu0 %5089
  %5091 = vrot.lane.b32.xlu0 %v5034, 64
  %v5092 = vpop.permute.xlu0 %5091
  %5093 = vrot.lane.b32.xlu0 %v5044, 64
  %v5094 = vpop.permute.xlu0 %5093
  %5095 = vrot.lane.b32.xlu0 %v5046, 64
  %v5096 = vpop.permute.xlu0 %5095
  %5097 = vrot.lane.b32.xlu0 %v5048, 64
  %v5098 = vpop.permute.xlu0 %5097
  %5099 = vrot.lane.b32.xlu0 %v5058, 64
  %v5100 = vpop.permute.xlu0 %5099
  %5101 = vrot.lane.b32.xlu0 %v5060, 64
  %v5102 = vpop.permute.xlu0 %5101
  %5103 = vrot.lane.b32.xlu0 %v5062, 64
  %v5104 = vpop.permute.xlu0 %5103
  %5114 = vrot.lane.b32.xlu0 %v5036, 64
  %v5115 = vpop.permute.xlu0 %5114
  %5116 = vrot.lane.b32.xlu0 %v5038, 64
  %v5117 = vpop.permute.xlu0 %5116
  %5118 = vrot.lane.b32.xlu0 %v5040, 64
  %v5119 = vpop.permute.xlu0 %5118
  %5120 = vrot.lane.b32.xlu0 %v5050, 64
  %v5121 = vpop.permute.xlu0 %5120
  %5122 = vrot.lane.b32.xlu0 %v5052, 64
  %v5123 = vpop.permute.xlu0 %5122
  %5124 = vrot.lane.b32.xlu0 %v5054, 64
  %v5125 = vpop.permute.xlu0 %5124
  %5126 = vrot.lane.b32.xlu0 %v5064, 64
  %v5127 = vpop.permute.xlu0 %5126
  %5128 = vrot.lane.b32.xlu0 %v5066, 64
  %v5129 = vpop.permute.xlu0 %5128
  %5130 = vrot.lane.b32.xlu0 %v5068, 64
  %v5131 = vpop.permute.xlu0 %5130
  %5135 = vrot.lane.b32.xlu0 %v5042, 64
  %v5136 = vpop.permute.xlu0 %5135
  %5137 = vrot.lane.b32.xlu0 %v5056, 64
  %v5138 = vpop.permute.xlu0 %5137
  %5139 = vrot.lane.b32.xlu0 %v5070, 64
  %v5140 = vpop.permute.xlu0 %5139
  %5144 = vrot.lane.b32.xlu0 %v5072, 64
  %v5145 = vpop.permute.xlu0 %5144
  %5146 = vrot.lane.b32.xlu0 %v5074, 64
  %v5147 = vpop.permute.xlu0 %5146
  %5148 = vrot.lane.b32.xlu0 %v5076, 64
  %v5149 = vpop.permute.xlu0 %5148
  %v5152 = vsel %vm3414, %v5029, %v5088
  %v5155 = vsel %vm3414, %v5031, %v5090
  %v5158 = vsel %vm3414, %v5033, %v5092
  %v5161 = vsel %vm3414, %v5043, %v5094
  %v5164 = vsel %vm3414, %v5045, %v5096
  %v5167 = vsel %vm3414, %v5047, %v5098
  %v5170 = vsel %vm3414, %v5057, %v5100
  %v5173 = vsel %vm3414, %v5059, %v5102
  %v5176 = vsel %vm3414, %v5061, %v5104
  %v5178 = vsel %vm3414, %v5031, %v5115
  %v5180 = vsel %vm3414, %v5033, %v5117
  %v5183 = vsel %vm3414, %v5035, %v5119
  %v5185 = vsel %vm3414, %v5045, %v5121
  %v5187 = vsel %vm3414, %v5047, %v5123
  %v5190 = vsel %vm3414, %v5049, %v5125
  %v5192 = vsel %vm3414, %v5059, %v5127
  %v5194 = vsel %vm3414, %v5061, %v5129
  %v5197 = vsel %vm3414, %v5063, %v5131
  %v5199 = vsel %vm3414, %v5037, %v5117
  %v5201 = vsel %vm3414, %v5039, %v5119
  %v5204 = vsel %vm3414, %v5041, %v5136
  %v5206 = vsel %vm3414, %v5051, %v5123
  %v5208 = vsel %vm3414, %v5053, %v5125
  %v5211 = vsel %vm3414, %v5055, %v5138
  %v5213 = vsel %vm3414, %v5065, %v5129
  %v5215 = vsel %vm3414, %v5067, %v5131
  %v5218 = vsel %vm3414, %v5069, %v5140
  %v5221 = vsel %vm3414, %v5071, %v5145
  %v5224 = vsel %vm3414, %v5073, %v5147
  %v5227 = vsel %vm3414, %v5075, %v5149
  %v5267 = vunpack.c.l.b16 %v5152
  %v5268 = vunpack.c.l.b16 %v5178
  %v5269 = vunpack.c.l.b16 %v5199
  %v5270 = vunpack.c.l.b16 %v5161
  %v5271 = vunpack.c.l.b16 %v5045
  %v5272 = vunpack.c.l.b16 %v5155
  %v5273 = vunpack.c.l.b16 %v5180
  %v5274 = vunpack.c.l.b16 %v5201
  %v5275 = vunpack.c.l.b16 %v5164
  %v5276 = vunpack.c.l.b16 %v5047
  %v5277 = vunpack.c.l.b16 %v5158
  %v5278 = vunpack.c.l.b16 %v5183
  %v5279 = vunpack.c.l.b16 %v5204
  %v5280 = vunpack.c.l.b16 %v5167
  %v5281 = vunpack.c.l.b16 %v5049
  %v5282 = vunpack.c.l.b16 %v5185
  %v5283 = vunpack.c.l.b16 %v5206
  %v5284 = vunpack.c.l.b16 %v5170
  %v5285 = vunpack.c.l.b16 %v5059
  %v5286 = vunpack.c.l.b16 %v5187
  %v5287 = vunpack.c.l.b16 %v5208
  %v5288 = vunpack.c.l.b16 %v5173
  %v5289 = vunpack.c.l.b16 %v5061
  %v5290 = vunpack.c.l.b16 %v5190
  %v5291 = vunpack.c.l.b16 %v5211
  %v5292 = vunpack.c.l.b16 %v5176
  %v5293 = vunpack.c.l.b16 %v5063
  %v5294 = vunpack.c.l.b16 %v5192
  %v5295 = vunpack.c.l.b16 %v5213
  %v5296 = vunpack.c.l.b16 %v5221
  %v5297 = vunpack.c.l.b16 %v5073
  %v5298 = vunpack.c.l.b16 %v5194
  %v5299 = vunpack.c.l.b16 %v5215
  %v5300 = vunpack.c.l.b16 %v5224
  %v5301 = vunpack.c.l.b16 %v5075
  %v5302 = vunpack.c.l.b16 %v5197
  %v5303 = vunpack.c.l.b16 %v5218
  %v5304 = vunpack.c.l.b16 %v5227
  %v5305 = vunpack.c.l.b16 %v5077
  %v5306 = vld [vmem:[%s5] sm:$0xf]
  %v5307 = vld [vmem:[%s5 + $0x4] sm:$0xf]
  %v5308 = vld [vmem:[%s5 + $0x8] sm:$0xf]
  %v5309 = vld [vmem:[%s5 + $0xc] sm:$0xf]
  %v5310 = vld [vmem:[%s5 + $0x10] sm:$0xf]
  %v5311 = vld [vmem:[%s5 + $0x14] sm:$0xf]
  %v5312 = vld [vmem:[%s5 + $0x18] sm:$0xf]
  %v5313 = vld [vmem:[%s5 + $0x1c] sm:$0xf]
  %v5314 = vld [vmem:[%s5 + $0x20] sm:$0xf]
  %v5315 = vld [vmem:[%s5 + $0x24] sm:$0xf]
  %v5316 = vld [vmem:[%s5 + $0x28] sm:$0xf]
  %v5317 = vld [vmem:[%s5 + $0x2c] sm:$0xf]
  %v5318 = vld [vmem:[%s5 + $0x30] sm:$0xf]
  %v5319 = vld [vmem:[%s5 + $0x34] sm:$0xf]
  %v5320 = vld [vmem:[%s5 + $0x38] sm:$0xf]
  %v5321 = vld [vmem:[%s5 + $0x3c] sm:$0xf]
  %v5322 = vld [vmem:[%s5 + $0x40] sm:$0xf]
  %v5323 = vld [vmem:[%s5 + $0x44] sm:$0xf]
  %v5324 = vld [vmem:[%s5 + $0x48] sm:$0xf]
  %v5325 = vld [vmem:[%s5 + $0x4c] sm:$0xf]
  %v5326 = vld [vmem:[%s5 + $0x50] sm:$0xf]
  %v5327 = vld [vmem:[%s5 + $0x54] sm:$0xf]
  %v5328 = vld [vmem:[%s5 + $0x58] sm:$0xf]
  %v5329 = vld [vmem:[%s5 + $0x5c] sm:$0xf]
  %v5330 = vld [vmem:[%s5 + $0x60] sm:$0xf]
  %v5331 = vld [vmem:[%s5 + $0x64] sm:$0xf]
  %v5332 = vld [vmem:[%s5 + $0x68] sm:$0xf]
  %v5333 = vld [vmem:[%s5 + $0x6c] sm:$0xf]
  %v5334 = vld [vmem:[%s5 + $0x70] sm:$0xf]
  %v5335 = vld [vmem:[%s5 + $0x74] sm:$0xf]
  %v5336 = vld [vmem:[%s5 + $0x78] sm:$0xf]
  %v5337 = vld [vmem:[%s5 + $0x7c] sm:$0xf]
  %v5338 = vld [vmem:[%s5 + $0x80] sm:$0xf]
  %v5339 = vld [vmem:[%s5 + $0x84] sm:$0xf]
  %v5340 = vld [vmem:[%s5 + $0x88] sm:$0xf]
  %v5341 = vld [vmem:[%s5 + $0x8c] sm:$0xf]
  %v5342 = vld [vmem:[%s5 + $0x90] sm:$0xf]
  %v5343 = vld [vmem:[%s5 + $0x94] sm:$0xf]
  %v5344 = vld [vmem:[%s5 + $0x98] sm:$0xf]
  %v5345 = vld [vmem:[%s5 + $0x9c] sm:$0xf]
  %v5346 = vld [vmem:[%s5 + $0xa0] sm:$0xf]
  %v5347 = vld [vmem:[%s5 + $0xa4] sm:$0xf]
  %v5348 = vld [vmem:[%s5 + $0xa8] sm:$0xf]
  %v5349 = vld [vmem:[%s5 + $0xac] sm:$0xf]
  %v5350 = vld [vmem:[%s5 + $0xb0] sm:$0xf]
  %v5351 = vld [vmem:[%s5 + $0xb4] sm:$0xf]
  %v5352 = vld [vmem:[%s5 + $0xb8] sm:$0xf]
  %v5353 = vld [vmem:[%s5 + $0xbc] sm:$0xf]
  %v5354 = vld [vmem:[%s5 + $0xc0] sm:$0xf]
  %v5355 = vld [vmem:[%s5 + $0xc4] sm:$0xf]
  %v5356 = vld [vmem:[%s5 + $0xc8] sm:$0xf]
  %v5357 = vld [vmem:[%s5 + $0xcc] sm:$0xf]
  %v5358 = vld [vmem:[%s5 + $0xd0] sm:$0xf]
  %v5359 = vld [vmem:[%s5 + $0xd4] sm:$0xf]
  %v5360 = vld [vmem:[%s5 + $0xd8] sm:$0xf]
  %v5361 = vld [vmem:[%s5 + $0xdc] sm:$0xf]
  %v5362 = vld [vmem:[%s5 + $0xe0] sm:$0xf]
  %v5363 = vld [vmem:[%s5 + $0xe4] sm:$0xf]
  %v5364 = vld [vmem:[%s5 + $0xe8] sm:$0xf]
  %v5365 = vld [vmem:[%s5 + $0xec] sm:$0xf]
  %v5366 = vld [vmem:[%s5 + $0xf0] sm:$0xf]
  %v5367 = vld [vmem:[%s5 + $0xf4] sm:$0xf]
  %v5368 = vld [vmem:[%s5 + $0xf8] sm:$0xf]
  %v5369 = vld [vmem:[%s5 + $0xfc] sm:$0xf]
  %v5370 = vld [vmem:[%s5 + $0x100] sm:$0xf]
  %v5371 = vld [vmem:[%s5 + $0x104] sm:$0xf]
  %v5372 = vld [vmem:[%s5 + $0x108] sm:$0xf]
  %v5373 = vld [vmem:[%s5 + $0x10c] sm:$0xf]
  %v5374 = vld [vmem:[%s5 + $0x110] sm:$0xf]
  %v5375 = vld [vmem:[%s5 + $0x114] sm:$0xf]
  %v5376 = vld [vmem:[%s5 + $0x118] sm:$0xf]
  %v5377 = vld [vmem:[%s5 + $0x11c] sm:$0xf]
  %v5378 = vld [vmem:[%s6] sm:$0x1]
  %v5380 = vlaneseq
  %v5381 = vshrl.u32 %v5380, 7
  %v5382 = vsub.s32 0, %v5381
  %v5383 = vrot.slane %v5378, %v5382
  %v5385 = vpack.c.b16 %v5272, %v5267
  %v5386 = vpack.c.b16 %v5273, %v5268
  %v5387 = vpack.c.b16 %v5274, %v5269
  %v5388 = vpack.c.b16 %v5275, %v5270
  %v5389 = vpack.c.b16 %v5276, %v5271
  %v5390 = vpack.c.b16 %v5270, %v5277
  %v5391 = vpack.c.b16 %v5282, %v5278
  %v5392 = vpack.c.b16 %v5283, %v5279
  %v5393 = vpack.c.b16 %v5284, %v5280
  %v5394 = vpack.c.b16 %v5285, %v5281
  %v5395 = vpack.c.b16 %v5280, %v5275
  %v5396 = vpack.c.b16 %v5290, %v5286
  %v5397 = vpack.c.b16 %v5291, %v5287
  %v5398 = vpack.c.b16 %v5292, %v5288
  %v5399 = vpack.c.b16 %v5293, %v5289
  %v5400 = vpack.c.b16 %v5288, %v5284
  %v5401 = vpack.c.b16 %v5298, %v5294
  %v5402 = vpack.c.b16 %v5299, %v5295
  %v5403 = vpack.c.b16 %v5300, %v5296
  %v5404 = vpack.c.b16 %v5301, %v5297
  %v5405 = vpack.c.b16 %v5292, %v5292
  %v5406 = vpack.c.b16 %v5302, %v5302
  %v5407 = vpack.c.b16 %v5303, %v5303
  %v5408 = vpack.c.b16 %v5304, %v5304
  %v5409 = vpack.c.b16 %v5305, %v5305
  %v5502 = vunpack.c.l.b16 %v5306
  %v5503 = vunpack.c.l.b16 %v5307
  %v5504 = vunpack.c.l.b16 %v5308
  %v5505 = vunpack.c.l.b16 %v5309
  %v5506 = vunpack.c.l.b16 %v5310
  %v5507 = vunpack.c.l.b16 %v5311
  %v5508 = vunpack.c.l.b16 %v5312
  %v5509 = vunpack.c.l.b16 %v5313
  %v5510 = vunpack.c.l.b16 %v5314
  %v5511 = vunpack.c.l.b16 %v5315
  %v5512 = vunpack.c.l.b16 %v5316
  %v5513 = vunpack.c.l.b16 %v5317
  %v5514 = vunpack.c.l.b16 %v5318
  %v5515 = vunpack.c.l.b16 %v5319
  %v5516 = vunpack.c.l.b16 %v5320
  %v5517 = vunpack.c.l.b16 %v5321
  %v5518 = vunpack.c.l.b16 %v5322
  %v5519 = vunpack.c.l.b16 %v5323
  %v5520 = vunpack.c.l.b16 %v5324
  %v5521 = vunpack.c.l.b16 %v5325
  %v5522 = vunpack.c.l.b16 %v5326
  %v5523 = vunpack.c.l.b16 %v5327
  %v5524 = vunpack.c.l.b16 %v5328
  %v5525 = vunpack.c.l.b16 %v5329
  %v5526 = vunpack.c.l.b16 %v5330
  %v5527 = vunpack.c.l.b16 %v5331
  %v5528 = vunpack.c.l.b16 %v5332
  %v5529 = vunpack.c.l.b16 %v5333
  %v5530 = vunpack.c.l.b16 %v5334
  %v5531 = vunpack.c.l.b16 %v5335
  %v5532 = vunpack.c.l.b16 %v5336
  %v5533 = vunpack.c.l.b16 %v5337
  %v5534 = vunpack.c.l.b16 %v5338
  %v5535 = vunpack.c.l.b16 %v5339
  %v5536 = vunpack.c.l.b16 %v5340
  %v5537 = vunpack.c.l.b16 %v5341
  %v5538 = vunpack.c.l.b16 %v5342
  %v5539 = vunpack.c.l.b16 %v5343
  %v5540 = vunpack.c.l.b16 %v5344
  %v5541 = vunpack.c.l.b16 %v5345
  %v5542 = vunpack.c.l.b16 %v5346
  %v5543 = vunpack.c.l.b16 %v5347
  %v5544 = vunpack.c.l.b16 %v5348
  %v5545 = vunpack.c.l.b16 %v5349
  %v5546 = vunpack.c.l.b16 %v5350
  %v5547 = vunpack.c.l.b16 %v5351
  %v5548 = vunpack.c.l.b16 %v5352
  %v5549 = vunpack.c.l.b16 %v5353
  %v5550 = vunpack.c.l.b16 %v5354
  %v5551 = vunpack.c.l.b16 %v5355
  %v5552 = vunpack.c.l.b16 %v5356
  %v5553 = vunpack.c.l.b16 %v5357
  %v5554 = vunpack.c.l.b16 %v5358
  %v5555 = vunpack.c.l.b16 %v5359
  %v5556 = vunpack.c.l.b16 %v5360
  %v5557 = vunpack.c.l.b16 %v5361
  %v5558 = vunpack.c.l.b16 %v5362
  %v5559 = vunpack.c.l.b16 %v5363
  %v5560 = vunpack.c.l.b16 %v5364
  %v5561 = vunpack.c.l.b16 %v5365
  %v5562 = vunpack.c.l.b16 %v5366
  %v5563 = vunpack.c.l.b16 %v5367
  %v5564 = vunpack.c.l.b16 %v5368
  %v5565 = vunpack.c.l.b16 %v5369
  %v5566 = vunpack.c.l.b16 %v5370
  %v5567 = vunpack.c.l.b16 %v5371
  %v5568 = vunpack.c.l.b16 %v5372
  %v5569 = vunpack.c.l.b16 %v5373
  %v5570 = vunpack.c.l.b16 %v5374
  %v5571 = vunpack.c.l.b16 %v5375
  %v5572 = vunpack.c.l.b16 %v5376
  %v5573 = vunpack.c.l.b16 %v5377
  %v5574 = vpack.c.b16 %v5503, %v5502
  %v5575 = vpack.c.b16 %v5505, %v5504
  %v5576 = vpack.c.b16 %v5507, %v5506
  %v5577 = vpack.c.b16 %v5509, %v5508
  %v5578 = vpack.c.b16 %v5511, %v5510
  %v5579 = vpack.c.b16 %v5513, %v5512
  %v5580 = vpack.c.b16 %v5515, %v5514
  %v5581 = vpack.c.b16 %v5517, %v5516
  %v5582 = vpack.c.b16 %v5519, %v5518
  %v5583 = vpack.c.b16 %v5521, %v5520
  %v5584 = vpack.c.b16 %v5523, %v5522
  %v5585 = vpack.c.b16 %v5525, %v5524
  %v5586 = vpack.c.b16 %v5527, %v5526
  %v5587 = vpack.c.b16 %v5529, %v5528
  %v5588 = vpack.c.b16 %v5531, %v5530
  %v5589 = vpack.c.b16 %v5533, %v5532
  %v5590 = vpack.c.b16 %v5535, %v5534
  %v5591 = vpack.c.b16 %v5537, %v5536
  %v5592 = vpack.c.b16 %v5539, %v5538
  %v5593 = vpack.c.b16 %v5541, %v5540
  %v5594 = vpack.c.b16 %v5543, %v5542
  %v5595 = vpack.c.b16 %v5545, %v5544
  %v5596 = vpack.c.b16 %v5547, %v5546
  %v5597 = vpack.c.b16 %v5549, %v5548
  %v5598 = vpack.c.b16 %v5551, %v5550
  %v5599 = vpack.c.b16 %v5553, %v5552
  %v5600 = vpack.c.b16 %v5555, %v5554
  %v5601 = vpack.c.b16 %v5557, %v5556
  %v5602 = vpack.c.b16 %v5559, %v5558
  %v5603 = vpack.c.b16 %v5561, %v5560
  %v5604 = vpack.c.b16 %v5563, %v5562
  %v5605 = vpack.c.b16 %v5565, %v5564
  %v5606 = vpack.c.b16 %v5567, %v5566
  %v5607 = vpack.c.b16 %v5569, %v5568
  %v5608 = vpack.c.b16 %v5571, %v5570
  %v5609 = vpack.c.b16 %v5573, %v5572
  %v5647 = vsel %vm3414, %v5389, 0
  %v5650 = vsel %vm3414, %v5394, 0
  %v5653 = vsel %vm3414, %v5399, 0
  %v5656 = vsel %vm3414, %v5404, 0
  %v5659 = vsel %vm3414, %v5409, 0
  %5661 = vmatprep.subr.bf16.mxu0 0
  %5662 = vmatpush1.bf16.msra.mxu0 %v5574
  %5663 = vmatprep.subr.bf16.mxu0 0
  %5664 = vmatpush1.bf16.msra.mxu0 %v5575
  %5665 = vmatprep.subr.bf16.mxu0 0
  %5666 = vmatpush1.bf16.msra.mxu0 %v5576
  %5667 = vmatprep.subr.bf16.mxu0 0
  %5668 = vmatpush1.bf16.msra.mxu0 %v5577
  %5669 = vmatprep.subr.bf16.mxu0 0
  %5670 = vmatpush1.bf16.msra.mxu0 %v5578
  %5671 = vmatprep.subr.bf16.mxu0 0
  %5672 = vmatpush1.bf16.msra.mxu0 %v5579
  %5673 = vmatprep.subr.bf16.mxu0 0
  %5674 = vmatpush1.bf16.msra.mxu0 %v5580
  %5675 = vmatprep.subr.bf16.mxu0 0
  %5676 = vmatpush1.bf16.msra.mxu0 %v5581
  %5677 = vmatprep.subr.bf16.mxu0 0
  %5678 = vmatpush1.bf16.msra.mxu0 %v5582
  %5679 = vmatprep.subr.bf16.mxu0 0
  %5680 = vmatpush1.bf16.msra.mxu0 %v5583
  %5681 = vmatprep.subr.bf16.mxu0 0
  %5682 = vmatpush1.bf16.msra.mxu0 %v5584
  %5683 = vmatprep.subr.bf16.mxu0 0
  %5684 = vmatpush1.bf16.msra.mxu0 %v5585
  %5685 = vmatprep.subr.bf16.mxu0 0
  %5686 = vmatpush1.bf16.msra.mxu0 %v5586
  %5687 = vmatprep.subr.bf16.mxu0 0
  %5688 = vmatpush1.bf16.msra.mxu0 %v5587
  %5689 = vmatprep.subr.bf16.mxu0 0
  %5690 = vmatpush1.bf16.msra.mxu0 %v5588
  %5691 = vmatprep.subr.bf16.mxu0 0
  %5692 = vmatpush1.bf16.msra.mxu0 %v5589
  %5693 = vmatprep.mubr.bf16.mxu0 %v5386
  %5694 = vmatmul.mubr.bf16.gmra.mrb[0].mxu0 %v5385
  %v5695 = vpop.f32.mrb[0].mxu0
  %v5696 = vadd.f32 %v5383, %v5695
  %v5697 = vpop.f32.mrb[0].mxu0
  %v5698 = vpop.f32.mrb[0].mxu0
  %v5699 = vadd.f32 %v5383, %v5698
  %v5700 = vpop.f32.mrb[0].mxu0
  %5701 = vmatprep.mubr.bf16.mxu0 %v5391
  %5702 = vmatmul.mubr.bf16.gmra.mrb[0].mxu0 %v5390
  %v5703 = vpop.f32.mrb[0].mxu0
  %v5704 = vadd.f32 %v5383, %v5703
  %v5705 = vpop.f32.mrb[0].mxu0
  %v5706 = vpop.f32.mrb[0].mxu0
  %v5707 = vadd.f32 %v5383, %v5706
  %v5708 = vpop.f32.mrb[0].mxu0
  %5709 = vmatprep.mubr.bf16.mxu0 %v5396
  %5710 = vmatmul.mubr.bf16.gmra.mrb[0].mxu0 %v5395
  %v5711 = vpop.f32.mrb[0].mxu0
  %v5712 = vadd.f32 %v5383, %v5711
  %v5713 = vpop.f32.mrb[0].mxu0
  %v5714 = vpop.f32.mrb[0].mxu0
  %v5715 = vadd.f32 %v5383, %v5714
  %v5716 = vpop.f32.mrb[0].mxu0
  %5717 = vmatprep.mubr.bf16.mxu0 %v5401
  %5718 = vmatmul.mubr.bf16.gmra.mrb[0].mxu0 %v5400
  %v5719 = vpop.f32.mrb[0].mxu0
  %v5720 = vadd.f32 %v5383, %v5719
  %v5721 = vpop.f32.mrb[0].mxu0
  %v5722 = vpop.f32.mrb[0].mxu0
  %v5723 = vadd.f32 %v5383, %v5722
  %v5724 = vpop.f32.mrb[0].mxu0
  %5725 = vmatprep.mubr.bf16.mxu0 %v5406
  %5726 = vmatmul.mubr.bf16.gmra.mrb[0].mxu0 %v5405
  %v5727 = vpop.f32.mrb[0].mxu0
  %v5728 = vadd.f32 %v5383, %v5727
  %v5729 = vpop.f32.mrb[0].mxu0
  %v5730 = vpop.f32.mrb[0].mxu0
  %v5731 = vpop.f32.mrb[0].mxu0
  %5732 = vdwg.mxu0
  %5733 = vmatprep.subr.bf16.mxu0 0
  %5734 = vmatpush1.bf16.msra.mxu0 %v5590
  %5735 = vmatprep.subr.bf16.mxu0 0
  %5736 = vmatpush1.bf16.msra.mxu0 %v5591
  %5737 = vmatprep.subr.bf16.mxu0 0
  %5738 = vmatpush1.bf16.msra.mxu0 %v5592
  %5739 = vmatprep.subr.bf16.mxu0 0
  %5740 = vmatpush1.bf16.msra.mxu0 %v5593
  %5741 = vmatprep.subr.bf16.mxu0 0
  %5742 = vmatpush1.bf16.msra.mxu0 %v5594
  %5743 = vmatprep.subr.bf16.mxu0 0
  %5744 = vmatpush1.bf16.msra.mxu0 %v5595
  %5745 = vmatprep.subr.bf16.mxu0 0
  %5746 = vmatpush1.bf16.msra.mxu0 %v5596
  %5747 = vmatprep.subr.bf16.mxu0 0
  %5748 = vmatpush1.bf16.msra.mxu0 %v5597
  %5749 = vmatprep.subr.bf16.mxu0 0
  %5750 = vmatpush1.bf16.msra.mxu0 %v5598
  %5751 = vmatprep.subr.bf16.mxu0 0
  %5752 = vmatpush1.bf16.msra.mxu0 %v5599
  %5753 = vmatprep.subr.bf16.mxu0 0
  %5754 = vmatpush1.bf16.msra.mxu0 %v5600
  %5755 = vmatprep.subr.bf16.mxu0 0
  %5756 = vmatpush1.bf16.msra.mxu0 %v5601
  %5757 = vmatprep.subr.bf16.mxu0 0
  %5758 = vmatpush1.bf16.msra.mxu0 %v5602
  %5759 = vmatprep.subr.bf16.mxu0 0
  %5760 = vmatpush1.bf16.msra.mxu0 %v5603
  %5761 = vmatprep.subr.bf16.mxu0 0
  %5762 = vmatpush1.bf16.msra.mxu0 %v5604
  %5763 = vmatprep.subr.bf16.mxu0 0
  %5764 = vmatpush1.bf16.msra.mxu0 %v5605
  %5765 = vmatprep.mubr.bf16.mxu0 %v5388
  %5766 = vmatmul.mubr.bf16.gmra.mrb[0].mxu0 %v5387
  %v5767 = vpop.f32.mrb[0].mxu0
  %v5768 = vadd.f32 %v5696, %v5767
  %v5769 = vpop.f32.mrb[0].mxu0
  %v5770 = vpop.f32.mrb[0].mxu0
  %v5771 = vadd.f32 %v5699, %v5770
  %v5772 = vpop.f32.mrb[0].mxu0
  %5773 = vmatprep.mubr.bf16.mxu0 %v5393
  %5774 = vmatmul.mubr.bf16.gmra.mrb[0].mxu0 %v5392
  %v5775 = vpop.f32.mrb[0].mxu0
  %v5776 = vadd.f32 %v5704, %v5775
  %v5777 = vpop.f32.mrb[0].mxu0
  %v5778 = vpop.f32.mrb[0].mxu0
  %v5779 = vadd.f32 %v5707, %v5778
  %v5780 = vpop.f32.mrb[0].mxu0
  %5781 = vmatprep.mubr.bf16.mxu0 %v5398
  %5782 = vmatmul.mubr.bf16.gmra.mrb[0].mxu0 %v5397
  %v5783 = vpop.f32.mrb[0].mxu0
  %v5784 = vadd.f32 %v5712, %v5783
  %v5785 = vpop.f32.mrb[0].mxu0
  %v5786 = vpop.f32.mrb[0].mxu0
  %v5787 = vadd.f32 %v5715, %v5786
  %v5788 = vpop.f32.mrb[0].mxu0
  %5789 = vmatprep.mubr.bf16.mxu0 %v5403
  %5790 = vmatmul.mubr.bf16.gmra.mrb[0].mxu0 %v5402
  %v5791 = vpop.f32.mrb[0].mxu0
  %v5792 = vadd.f32 %v5720, %v5791
  %v5793 = vpop.f32.mrb[0].mxu0
  %v5794 = vpop.f32.mrb[0].mxu0
  %v5795 = vadd.f32 %v5723, %v5794
  %v5796 = vpop.f32.mrb[0].mxu0
  %5797 = vmatprep.mubr.bf16.mxu0 %v5408
  %5798 = vmatmul.mubr.bf16.gmra.mrb[0].mxu0 %v5407
  %v5799 = vpop.f32.mrb[0].mxu0
  %v5800 = vadd.f32 %v5728, %v5799
  %v5801 = vpop.f32.mrb[0].mxu0
  %v5802 = vpop.f32.mrb[0].mxu0
  %v5803 = vpop.f32.mrb[0].mxu0
  %5804 = vdwg.mxu0
  %5805 = vmatprep.subr.bf16.mxu0 0
  %5806 = vmatpush1.bf16.msra.mxu0 %v5606
  %5807 = vmatprep.subr.bf16.mxu0 0
  %5808 = vmatpush1.bf16.msra.mxu0 %v5607
  %5809 = vmatprep.subr.bf16.mxu0 0
  %5810 = vmatpush1.bf16.msra.mxu0 %v5608
  %5811 = vmatprep.subr.bf16.mxu0 0
  %5812 = vmatpush1.bf16.msra.mxu0 %v5609
  %5813 = vmatprep.subr.bf16.mxu0 0
  %5814 = vmatpush1.bf16.msra.mxu0 0
  %5815 = vmatprep.subr.bf16.mxu0 0
  %5816 = vmatpush1.bf16.msra.mxu0 0
  %5817 = vmatprep.subr.bf16.mxu0 0
  %5818 = vmatpush1.bf16.msra.mxu0 0
  %5819 = vmatprep.subr.bf16.mxu0 0
  %5820 = vmatpush1.bf16.msra.mxu0 0
  %5821 = vmatprep.subr.bf16.mxu0 0
  %5822 = vmatpush1.bf16.msra.mxu0 0
  %5823 = vmatprep.subr.bf16.mxu0 0
  %5824 = vmatpush1.bf16.msra.mxu0 0
  %5825 = vmatprep.subr.bf16.mxu0 0
  %5826 = vmatpush1.bf16.msra.mxu0 0
  %5827 = vmatprep.subr.bf16.mxu0 0
  %5828 = vmatpush1.bf16.msra.mxu0 0
  %5829 = vmatprep.subr.bf16.mxu0 0
  %5830 = vmatpush1.bf16.msra.mxu0 0
  %5831 = vmatprep.subr.bf16.mxu0 0
  %5832 = vmatpush1.bf16.msra.mxu0 0
  %5833 = vmatprep.subr.bf16.mxu0 0
  %5834 = vmatpush1.bf16.msra.mxu0 0
  %5835 = vmatprep.subr.bf16.mxu0 0
  %5836 = vmatpush1.bf16.msra.mxu0 0
  %5837 = vmatprep.mubr.bf16.mxu0 0
  %5838 = vmatmul.mubr.bf16.gmra.mrb[0].mxu0 %v5647
  %v5839 = vpop.f32.mrb[0].mxu0
  %v5840 = vadd.f32 %v5768, %v5839
  %v5841 = vpop.f32.mrb[0].mxu0
  %v5842 = vpop.f32.mrb[0].mxu0
  %v5843 = vadd.f32 %v5771, %v5842
  %v5844 = vpop.f32.mrb[0].mxu0
  %5845 = vmatprep.mubr.bf16.mxu0 0
  %5846 = vmatmul.mubr.bf16.gmra.mrb[0].mxu0 %v5650
  %v5847 = vpop.f32.mrb[0].mxu0
  %v5848 = vadd.f32 %v5776, %v5847
  %v5849 = vpop.f32.mrb[0].mxu0
  %v5850 = vpop.f32.mrb[0].mxu0
  %v5851 = vadd.f32 %v5779, %v5850
  %v5852 = vpop.f32.mrb[0].mxu0
  %5853 = vmatprep.mubr.bf16.mxu0 0
  %5854 = vmatmul.mubr.bf16.gmra.mrb[0].mxu0 %v5653
  %v5855 = vpop.f32.mrb[0].mxu0
  %v5856 = vadd.f32 %v5784, %v5855
  %v5857 = vpop.f32.mrb[0].mxu0
  %v5858 = vpop.f32.mrb[0].mxu0
  %v5859 = vadd.f32 %v5787, %v5858
  %v5860 = vpop.f32.mrb[0].mxu0
  %5861 = vmatprep.mubr.bf16.mxu0 0
  %5862 = vmatmul.mubr.bf16.gmra.mrb[0].mxu0 %v5656
  %v5863 = vpop.f32.mrb[0].mxu0
  %v5864 = vadd.f32 %v5792, %v5863
  %v5865 = vpop.f32.mrb[0].mxu0
  %v5866 = vpop.f32.mrb[0].mxu0
  %v5867 = vadd.f32 %v5795, %v5866
  %v5868 = vpop.f32.mrb[0].mxu0
  %5869 = vmatprep.mubr.bf16.mxu0 0
  %5870 = vmatmul.mubr.bf16.gmra.mrb[0].mxu0 %v5659
  %v5871 = vpop.f32.mrb[0].mxu0
  %v5872 = vadd.f32 %v5800, %v5871
  %v5873 = vpop.f32.mrb[0].mxu0
  %v5874 = vpop.f32.mrb[0].mxu0
  %v5875 = vpop.f32.mrb[0].mxu0
  %5876 = vdwg.mxu0
  %v5877 = vmax.f32 %v5840, 0.0
  %v5878 = vmax.f32 %v5843, 0.0
  %v5879 = vmax.f32 %v5848, 0.0
  %v5880 = vmax.f32 %v5851, 0.0
  %v5881 = vmax.f32 %v5856, 0.0
  %v5882 = vmax.f32 %v5859, 0.0
  %v5883 = vmax.f32 %v5864, 0.0
  %v5884 = vmax.f32 %v5867, 0.0
  %v5885 = vmax.f32 %v5872, 0.0
  %v5886 = vpack.c.bf16 %v5877, %v5877
  %v5887 = vpack.c.bf16 %v5878, %v5878
  %v5888 = vpack.c.bf16 %v5879, %v5879
  %v5889 = vpack.c.bf16 %v5880, %v5880
  %v5890 = vpack.c.bf16 %v5881, %v5881
  %v5891 = vpack.c.bf16 %v5882, %v5882
  %v5892 = vpack.c.bf16 %v5883, %v5883
  %v5893 = vpack.c.bf16 %v5884, %v5884
  %v5894 = vpack.c.bf16 %v5885, %v5885
  %v5895 = vld [vmem:[%s7] sm:$0xff]
  %v5896 = vld [vmem:[%s7 + $0x8] sm:$0xff]
  %v5897 = vld [vmem:[%s7 + $0x10] sm:$0xff]
  %v5898 = vld [vmem:[%s7 + $0x18] sm:$0xff]
  %v5899 = vld [vmem:[%s7 + $0x20] sm:$0xff]
  %v5900 = vld [vmem:[%s7 + $0x28] sm:$0xff]
  %v5901 = vld [vmem:[%s7 + $0x30] sm:$0xff]
  %v5902 = vld [vmem:[%s7 + $0x38] sm:$0xff]
  %v5903 = vld [vmem:[%s7 + $0x40] sm:$0xff]
  %v5904 = vld [vmem:[%s7 + $0x48] sm:$0xff]
  %v5905 = vld [vmem:[%s7 + $0x50] sm:$0xff]
  %v5906 = vld [vmem:[%s7 + $0x58] sm:$0xff]
  %v5907 = vld [vmem:[%s7 + $0x60] sm:$0xff]
  %v5908 = vld [vmem:[%s7 + $0x68] sm:$0xff]
  %v5909 = vld [vmem:[%s7 + $0x70] sm:$0xff]
  %v5910 = vld [vmem:[%s7 + $0x78] sm:$0xff]
  %v5911 = vld [vmem:[%s7 + $0x80] sm:$0xff]
  %v5912 = vld [vmem:[%s7 + $0x88] sm:$0xff]
  %v5913 = vld [vmem:[%s7 + $0x90] sm:$0xff]
  %v5914 = vld [vmem:[%s7 + $0x98] sm:$0xff]
  %v5915 = vld [vmem:[%s7 + $0xa0] sm:$0xff]
  %v5916 = vld [vmem:[%s7 + $0xa8] sm:$0xff]
  %v5917 = vld [vmem:[%s7 + $0xb0] sm:$0xff]
  %v5918 = vld [vmem:[%s7 + $0xb8] sm:$0xff]
  %v5919 = vld [vmem:[%s7 + $0xc0] sm:$0xff]
  %v5920 = vld [vmem:[%s7 + $0xc8] sm:$0xff]
  %v5921 = vld [vmem:[%s7 + $0xd0] sm:$0xff]
  %v5922 = vld [vmem:[%s7 + $0xd8] sm:$0xff]
  %v5923 = vld [vmem:[%s7 + $0xe0] sm:$0xff]
  %v5924 = vld [vmem:[%s7 + $0xe8] sm:$0xff]
  %v5925 = vld [vmem:[%s7 + $0xf0] sm:$0xff]
  %v5926 = vld [vmem:[%s7 + $0xf8] sm:$0xff]
  %v5927 = vld [vmem:[%s7 + $0x100] sm:$0xff]
  %v5928 = vld [vmem:[%s7 + $0x108] sm:$0xff]
  %v5929 = vld [vmem:[%s7 + $0x110] sm:$0xff]
  %v5930 = vld [vmem:[%s7 + $0x118] sm:$0xff]
  %v5931 = vld [vmem:[%s7 + $0x120] sm:$0xff]
  %v5932 = vld [vmem:[%s7 + $0x128] sm:$0xff]
  %v5933 = vld [vmem:[%s7 + $0x130] sm:$0xff]
  %v5934 = vld [vmem:[%s7 + $0x138] sm:$0xff]
  %v5935 = vld [vmem:[%s7 + $0x140] sm:$0xff]
  %v5936 = vld [vmem:[%s7 + $0x148] sm:$0xff]
  %v5937 = vld [vmem:[%s7 + $0x150] sm:$0xff]
  %v5938 = vld [vmem:[%s7 + $0x158] sm:$0xff]
  %v5939 = vld [vmem:[%s7 + $0x160] sm:$0xff]
  %v5940 = vld [vmem:[%s7 + $0x168] sm:$0xff]
  %v5941 = vld [vmem:[%s7 + $0x170] sm:$0xff]
  %v5942 = vld [vmem:[%s7 + $0x178] sm:$0xff]
  %v5943 = vld [vmem:[%s7 + $0x180] sm:$0xff]
  %v5944 = vld [vmem:[%s7 + $0x188] sm:$0xff]
  %v5945 = vld [vmem:[%s7 + $0x190] sm:$0xff]
  %v5946 = vld [vmem:[%s7 + $0x198] sm:$0xff]
  %v5947 = vld [vmem:[%s7 + $0x1a0] sm:$0xff]
  %v5948 = vld [vmem:[%s7 + $0x1a8] sm:$0xff]
  %v5949 = vld [vmem:[%s7 + $0x1b0] sm:$0xff]
  %v5950 = vld [vmem:[%s7 + $0x1b8] sm:$0xff]
  %v5951 = vld [vmem:[%s7 + $0x1c0] sm:$0xff]
  %v5952 = vld [vmem:[%s7 + $0x1c8] sm:$0xff]
  %v5953 = vld [vmem:[%s7 + $0x1d0] sm:$0xff]
  %v5954 = vld [vmem:[%s7 + $0x1d8] sm:$0xff]
  %v5955 = vld [vmem:[%s7 + $0x1e0] sm:$0xff]
  %v5956 = vld [vmem:[%s7 + $0x1e8] sm:$0xff]
  %v5957 = vld [vmem:[%s7 + $0x1f0] sm:$0xff]
  %v5958 = vld [vmem:[%s7 + $0x1f8] sm:$0xff]
  %v5959 = vld [vmem:[%s7 + $0x200] sm:$0xff]
  %v5960 = vld [vmem:[%s7 + $0x208] sm:$0xff]
  %v5961 = vld [vmem:[%s7 + $0x210] sm:$0xff]
  %v5962 = vld [vmem:[%s7 + $0x218] sm:$0xff]
  %v5963 = vld [vmem:[%s7 + $0x220] sm:$0xff]
  %v5964 = vld [vmem:[%s7 + $0x228] sm:$0xff]
  %v5965 = vld [vmem:[%s7 + $0x230] sm:$0xff]
  %v5966 = vld [vmem:[%s7 + $0x238] sm:$0xff]
  %v5967 = vld [vmem:[%s7 + $0x240] sm:$0xff]
  %v5968 = vld [vmem:[%s7 + $0x248] sm:$0xff]
  %v5969 = vld [vmem:[%s7 + $0x250] sm:$0xff]
  %v5970 = vld [vmem:[%s7 + $0x258] sm:$0xff]
  %v5971 = vld [vmem:[%s7 + $0x260] sm:$0xff]
  %v5972 = vld [vmem:[%s7 + $0x268] sm:$0xff]
  %v5973 = vld [vmem:[%s7 + $0x270] sm:$0xff]
  %v5974 = vld [vmem:[%s7 + $0x278] sm:$0xff]
  %v5975 = vld [vmem:[%s7 + $0x280] sm:$0xff]
  %v5976 = vld [vmem:[%s7 + $0x288] sm:$0xff]
  %v5977 = vld [vmem:[%s7 + $0x290] sm:$0xff]
  %v5978 = vld [vmem:[%s7 + $0x298] sm:$0xff]
  %v5979 = vld [vmem:[%s7 + $0x2a0] sm:$0xff]
  %v5980 = vld [vmem:[%s7 + $0x2a8] sm:$0xff]
  %v5981 = vld [vmem:[%s7 + $0x2b0] sm:$0xff]
  %v5982 = vld [vmem:[%s7 + $0x2b8] sm:$0xff]
  %v5983 = vld [vmem:[%s7 + $0x2c0] sm:$0xff]
  %v5984 = vld [vmem:[%s7 + $0x2c8] sm:$0xff]
  %v5985 = vld [vmem:[%s7 + $0x2d0] sm:$0xff]
  %v5986 = vld [vmem:[%s7 + $0x2d8] sm:$0xff]
  %v5987 = vld [vmem:[%s7 + $0x2e0] sm:$0xff]
  %v5988 = vld [vmem:[%s7 + $0x2e8] sm:$0xff]
  %v5989 = vld [vmem:[%s7 + $0x2f0] sm:$0xff]
  %v5990 = vld [vmem:[%s7 + $0x2f8] sm:$0xff]
  %v5991 = vld [vmem:[%s7 + $0x300] sm:$0xff]
  %v5992 = vld [vmem:[%s7 + $0x308] sm:$0xff]
  %v5993 = vld [vmem:[%s7 + $0x310] sm:$0xff]
  %v5994 = vld [vmem:[%s7 + $0x318] sm:$0xff]
  %v5995 = vld [vmem:[%s7 + $0x320] sm:$0xff]
  %v5996 = vld [vmem:[%s7 + $0x328] sm:$0xff]
  %v5997 = vld [vmem:[%s7 + $0x330] sm:$0xff]
  %v5998 = vld [vmem:[%s7 + $0x338] sm:$0xff]
  %v5999 = vld [vmem:[%s7 + $0x340] sm:$0xff]
  %v6000 = vld [vmem:[%s7 + $0x348] sm:$0xff]
  %v6001 = vld [vmem:[%s7 + $0x350] sm:$0xff]
  %v6002 = vld [vmem:[%s7 + $0x358] sm:$0xff]
  %v6003 = vld [vmem:[%s7 + $0x360] sm:$0xff]
  %v6004 = vld [vmem:[%s7 + $0x368] sm:$0xff]
  %v6005 = vld [vmem:[%s7 + $0x370] sm:$0xff]
  %v6006 = vld [vmem:[%s7 + $0x378] sm:$0xff]
  %v6007 = vld [vmem:[%s7 + $0x380] sm:$0xff]
  %v6008 = vld [vmem:[%s7 + $0x388] sm:$0xff]
  %v6009 = vld [vmem:[%s7 + $0x390] sm:$0xff]
  %v6010 = vld [vmem:[%s7 + $0x398] sm:$0xff]
  %v6011 = vld [vmem:[%s7 + $0x3a0] sm:$0xff]
  %v6012 = vld [vmem:[%s7 + $0x3a8] sm:$0xff]
  %v6013 = vld [vmem:[%s7 + $0x3b0] sm:$0xff]
  %v6014 = vld [vmem:[%s7 + $0x3b8] sm:$0xff]
  %v6015 = vld [vmem:[%s7 + $0x3c0] sm:$0xff]
  %v6016 = vld [vmem:[%s7 + $0x3c8] sm:$0xff]
  %v6017 = vld [vmem:[%s7 + $0x3d0] sm:$0xff]
  %v6018 = vld [vmem:[%s7 + $0x3d8] sm:$0xff]
  %v6019 = vld [vmem:[%s7 + $0x3e0] sm:$0xff]
  %v6020 = vld [vmem:[%s7 + $0x3e8] sm:$0xff]
  %v6021 = vld [vmem:[%s7 + $0x3f0] sm:$0xff]
  %v6022 = vld [vmem:[%s7 + $0x3f8] sm:$0xff]
  %v6023 = vld [vmem:[%s7 + $0x400] sm:$0xff]
  %v6024 = vld [vmem:[%s7 + $0x408] sm:$0xff]
  %v6025 = vld [vmem:[%s7 + $0x410] sm:$0xff]
  %v6026 = vld [vmem:[%s7 + $0x418] sm:$0xff]
  %v6027 = vld [vmem:[%s7 + $0x420] sm:$0xff]
  %v6028 = vld [vmem:[%s7 + $0x428] sm:$0xff]
  %v6029 = vld [vmem:[%s7 + $0x430] sm:$0xff]
  %v6030 = vld [vmem:[%s7 + $0x438] sm:$0xff]
  %v6031 = vld [vmem:[%s7 + $0x440] sm:$0xff]
  %v6032 = vld [vmem:[%s7 + $0x448] sm:$0xff]
  %v6033 = vld [vmem:[%s7 + $0x450] sm:$0xff]
  %v6034 = vld [vmem:[%s7 + $0x458] sm:$0xff]
  %v6035 = vld [vmem:[%s7 + $0x460] sm:$0xff]
  %v6036 = vld [vmem:[%s7 + $0x468] sm:$0xff]
  %v6037 = vld [vmem:[%s7 + $0x470] sm:$0xff]
  %v6038 = vld [vmem:[%s7 + $0x478] sm:$0xff]
  %v6039 = vld [vmem:[%s8] sm:$0x3]
  %v6041 = vlaneseq
  %v6042 = vshrl.u32 %v6041, 7
  %v6043 = vsub.s32 0, %v6042
  %v6044 = vrot.slane %v6039, %v6043
  %v6045 = vlaneseq
  %v6046 = vshrl.u32 %v6045, 7
  %v6047 = vsub.s32 1, %v6046
  %v6048 = vrot.slane %v6039, %v6047
  %v6195 = vunpack.c.l.b16 %v5895
  %v6196 = vunpack.c.h.b16 %v5895
  %v6197 = vunpack.c.l.b16 %v5896
  %v6198 = vunpack.c.h.b16 %v5896
  %v6199 = vunpack.c.l.b16 %v5897
  %v6200 = vunpack.c.h.b16 %v5897
  %v6201 = vunpack.c.l.b16 %v5898
  %v6202 = vunpack.c.h.b16 %v5898
  %v6203 = vunpack.c.l.b16 %v5899
  %v6204 = vunpack.c.h.b16 %v5899
  %v6205 = vunpack.c.l.b16 %v5900
  %v6206 = vunpack.c.h.b16 %v5900
  %v6207 = vunpack.c.l.b16 %v5901
  %v6208 = vunpack.c.h.b16 %v5901
  %v6209 = vunpack.c.l.b16 %v5902
  %v6210 = vunpack.c.h.b16 %v5902
  %v6211 = vunpack.c.l.b16 %v5903
  %v6212 = vunpack.c.h.b16 %v5903
  %v6213 = vunpack.c.l.b16 %v5904
  %v6214 = vunpack.c.h.b16 %v5904
  %v6215 = vunpack.c.l.b16 %v5905
  %v6216 = vunpack.c.h.b16 %v5905
  %v6217 = vunpack.c.l.b16 %v5906
  %v6218 = vunpack.c.h.b16 %v5906
  %v6219 = vunpack.c.l.b16 %v5907
  %v6220 = vunpack.c.h.b16 %v5907
  %v6221 = vunpack.c.l.b16 %v5908
  %v6222 = vunpack.c.h.b16 %v5908
  %v6223 = vunpack.c.l.b16 %v5909
  %v6224 = vunpack.c.h.b16 %v5909
  %v6225 = vunpack.c.l.b16 %v5910
  %v6226 = vunpack.c.h.b16 %v5910
  %v6227 = vunpack.c.l.b16 %v5911
  %v6228 = vunpack.c.h.b16 %v5911
  %v6229 = vunpack.c.l.b16 %v5912
  %v6230 = vunpack.c.h.b16 %v5912
  %v6231 = vunpack.c.l.b16 %v5913
  %v6232 = vunpack.c.h.b16 %v5913
  %v6233 = vunpack.c.l.b16 %v5914
  %v6234 = vunpack.c.h.b16 %v5914
  %v6235 = vunpack.c.l.b16 %v5915
  %v6236 = vunpack.c.h.b16 %v5915
  %v6237 = vunpack.c.l.b16 %v5916
  %v6238 = vunpack.c.h.b16 %v5916
  %v6239 = vunpack.c.l.b16 %v5917
  %v6240 = vunpack.c.h.b16 %v5917
  %v6241 = vunpack.c.l.b16 %v5918
  %v6242 = vunpack.c.h.b16 %v5918
  %v6243 = vunpack.c.l.b16 %v5919
  %v6244 = vunpack.c.h.b16 %v5919
  %v6245 = vunpack.c.l.b16 %v5920
  %v6246 = vunpack.c.h.b16 %v5920
  %v6247 = vunpack.c.l.b16 %v5921
  %v6248 = vunpack.c.h.b16 %v5921
  %v6249 = vunpack.c.l.b16 %v5922
  %v6250 = vunpack.c.h.b16 %v5922
  %v6251 = vunpack.c.l.b16 %v5923
  %v6252 = vunpack.c.h.b16 %v5923
  %v6253 = vunpack.c.l.b16 %v5924
  %v6254 = vunpack.c.h.b16 %v5924
  %v6255 = vunpack.c.l.b16 %v5925
  %v6256 = vunpack.c.h.b16 %v5925
  %v6257 = vunpack.c.l.b16 %v5926
  %v6258 = vunpack.c.h.b16 %v5926
  %v6259 = vunpack.c.l.b16 %v5927
  %v6260 = vunpack.c.h.b16 %v5927
  %v6261 = vunpack.c.l.b16 %v5928
  %v6262 = vunpack.c.h.b16 %v5928
  %v6263 = vunpack.c.l.b16 %v5929
  %v6264 = vunpack.c.h.b16 %v5929
  %v6265 = vunpack.c.l.b16 %v5930
  %v6266 = vunpack.c.h.b16 %v5930
  %v6267 = vunpack.c.l.b16 %v5931
  %v6268 = vunpack.c.h.b16 %v5931
  %v6269 = vunpack.c.l.b16 %v5932
  %v6270 = vunpack.c.h.b16 %v5932
  %v6271 = vunpack.c.l.b16 %v5933
  %v6272 = vunpack.c.h.b16 %v5933
  %v6273 = vunpack.c.l.b16 %v5934
  %v6274 = vunpack.c.h.b16 %v5934
  %v6275 = vunpack.c.l.b16 %v5935
  %v6276 = vunpack.c.h.b16 %v5935
  %v6277 = vunpack.c.l.b16 %v5936
  %v6278 = vunpack.c.h.b16 %v5936
  %v6279 = vunpack.c.l.b16 %v5937
  %v6280 = vunpack.c.h.b16 %v5937
  %v6281 = vunpack.c.l.b16 %v5938
  %v6282 = vunpack.c.h.b16 %v5938
  %v6283 = vunpack.c.l.b16 %v5939
  %v6284 = vunpack.c.h.b16 %v5939
  %v6285 = vunpack.c.l.b16 %v5940
  %v6286 = vunpack.c.h.b16 %v5940
  %v6287 = vunpack.c.l.b16 %v5941
  %v6288 = vunpack.c.h.b16 %v5941
  %v6289 = vunpack.c.l.b16 %v5942
  %v6290 = vunpack.c.h.b16 %v5942
  %v6291 = vunpack.c.l.b16 %v5943
  %v6292 = vunpack.c.h.b16 %v5943
  %v6293 = vunpack.c.l.b16 %v5944
  %v6294 = vunpack.c.h.b16 %v5944
  %v6295 = vunpack.c.l.b16 %v5945
  %v6296 = vunpack.c.h.b16 %v5945
  %v6297 = vunpack.c.l.b16 %v5946
  %v6298 = vunpack.c.h.b16 %v5946
  %v6299 = vunpack.c.l.b16 %v5947
  %v6300 = vunpack.c.h.b16 %v5947
  %v6301 = vunpack.c.l.b16 %v5948
  %v6302 = vunpack.c.h.b16 %v5948
  %v6303 = vunpack.c.l.b16 %v5949
  %v6304 = vunpack.c.h.b16 %v5949
  %v6305 = vunpack.c.l.b16 %v5950
  %v6306 = vunpack.c.h.b16 %v5950
  %v6307 = vunpack.c.l.b16 %v5951
  %v6308 = vunpack.c.h.b16 %v5951
  %v6309 = vunpack.c.l.b16 %v5952
  %v6310 = vunpack.c.h.b16 %v5952
  %v6311 = vunpack.c.l.b16 %v5953
  %v6312 = vunpack.c.h.b16 %v5953
  %v6313 = vunpack.c.l.b16 %v5954
  %v6314 = vunpack.c.h.b16 %v5954
  %v6315 = vunpack.c.l.b16 %v5955
  %v6316 = vunpack.c.h.b16 %v5955
  %v6317 = vunpack.c.l.b16 %v5956
  %v6318 = vunpack.c.h.b16 %v5956
  %v6319 = vunpack.c.l.b16 %v5957
  %v6320 = vunpack.c.h.b16 %v5957
  %v6321 = vunpack.c.l.b16 %v5958
  %v6322 = vunpack.c.h.b16 %v5958
  %v6323 = vunpack.c.l.b16 %v5959
  %v6324 = vunpack.c.h.b16 %v5959
  %v6325 = vunpack.c.l.b16 %v5960
  %v6326 = vunpack.c.h.b16 %v5960
  %v6327 = vunpack.c.l.b16 %v5961
  %v6328 = vunpack.c.h.b16 %v5961
  %v6329 = vunpack.c.l.b16 %v5962
  %v6330 = vunpack.c.h.b16 %v5962
  %v6331 = vunpack.c.l.b16 %v5963
  %v6332 = vunpack.c.h.b16 %v5963
  %v6333 = vunpack.c.l.b16 %v5964
  %v6334 = vunpack.c.h.b16 %v5964
  %v6335 = vunpack.c.l.b16 %v5965
  %v6336 = vunpack.c.h.b16 %v5965
  %v6337 = vunpack.c.l.b16 %v5966
  %v6338 = vunpack.c.h.b16 %v5966
  %v6339 = vunpack.c.l.b16 %v5967
  %v6340 = vunpack.c.h.b16 %v5967
  %v6341 = vunpack.c.l.b16 %v5968
  %v6342 = vunpack.c.h.b16 %v5968
  %v6343 = vunpack.c.l.b16 %v5969
  %v6344 = vunpack.c.h.b16 %v5969
  %v6345 = vunpack.c.l.b16 %v5970
  %v6346 = vunpack.c.h.b16 %v5970
  %v6347 = vunpack.c.l.b16 %v5971
  %v6348 = vunpack.c.h.b16 %v5971
  %v6349 = vunpack.c.l.b16 %v5972
  %v6350 = vunpack.c.h.b16 %v5972
  %v6351 = vunpack.c.l.b16 %v5973
  %v6352 = vunpack.c.h.b16 %v5973
  %v6353 = vunpack.c.l.b16 %v5974
  %v6354 = vunpack.c.h.b16 %v5974
  %v6355 = vunpack.c.l.b16 %v5975
  %v6356 = vunpack.c.h.b16 %v5975
  %v6357 = vunpack.c.l.b16 %v5976
  %v6358 = vunpack.c.h.b16 %v5976
  %v6359 = vunpack.c.l.b16 %v5977
  %v6360 = vunpack.c.h.b16 %v5977
  %v6361 = vunpack.c.l.b16 %v5978
  %v6362 = vunpack.c.h.b16 %v5978
  %v6363 = vunpack.c.l.b16 %v5979
  %v6364 = vunpack.c.h.b16 %v5979
  %v6365 = vunpack.c.l.b16 %v5980
  %v6366 = vunpack.c.h.b16 %v5980
  %v6367 = vunpack.c.l.b16 %v5981
  %v6368 = vunpack.c.h.b16 %v5981
  %v6369 = vunpack.c.l.b16 %v5982
  %v6370 = vunpack.c.h.b16 %v5982
  %v6371 = vunpack.c.l.b16 %v5983
  %v6372 = vunpack.c.h.b16 %v5983
  %v6373 = vunpack.c.l.b16 %v5984
  %v6374 = vunpack.c.h.b16 %v5984
  %v6375 = vunpack.c.l.b16 %v5985
  %v6376 = vunpack.c.h.b16 %v5985
  %v6377 = vunpack.c.l.b16 %v5986
  %v6378 = vunpack.c.h.b16 %v5986
  %v6379 = vunpack.c.l.b16 %v5987
  %v6380 = vunpack.c.h.b16 %v5987
  %v6381 = vunpack.c.l.b16 %v5988
  %v6382 = vunpack.c.h.b16 %v5988
  %v6383 = vunpack.c.l.b16 %v5989
  %v6384 = vunpack.c.h.b16 %v5989
  %v6385 = vunpack.c.l.b16 %v5990
  %v6386 = vunpack.c.h.b16 %v5990
  %v6387 = vunpack.c.l.b16 %v5991
  %v6388 = vunpack.c.h.b16 %v5991
  %v6389 = vunpack.c.l.b16 %v5992
  %v6390 = vunpack.c.h.b16 %v5992
  %v6391 = vunpack.c.l.b16 %v5993
  %v6392 = vunpack.c.h.b16 %v5993
  %v6393 = vunpack.c.l.b16 %v5994
  %v6394 = vunpack.c.h.b16 %v5994
  %v6395 = vunpack.c.l.b16 %v5995
  %v6396 = vunpack.c.h.b16 %v5995
  %v6397 = vunpack.c.l.b16 %v5996
  %v6398 = vunpack.c.h.b16 %v5996
  %v6399 = vunpack.c.l.b16 %v5997
  %v6400 = vunpack.c.h.b16 %v5997
  %v6401 = vunpack.c.l.b16 %v5998
  %v6402 = vunpack.c.h.b16 %v5998
  %v6403 = vunpack.c.l.b16 %v5999
  %v6404 = vunpack.c.h.b16 %v5999
  %v6405 = vunpack.c.l.b16 %v6000
  %v6406 = vunpack.c.h.b16 %v6000
  %v6407 = vunpack.c.l.b16 %v6001
  %v6408 = vunpack.c.h.b16 %v6001
  %v6409 = vunpack.c.l.b16 %v6002
  %v6410 = vunpack.c.h.b16 %v6002
  %v6411 = vunpack.c.l.b16 %v6003
  %v6412 = vunpack.c.h.b16 %v6003
  %v6413 = vunpack.c.l.b16 %v6004
  %v6414 = vunpack.c.h.b16 %v6004
  %v6415 = vunpack.c.l.b16 %v6005
  %v6416 = vunpack.c.h.b16 %v6005
  %v6417 = vunpack.c.l.b16 %v6006
  %v6418 = vunpack.c.h.b16 %v6006
  %v6419 = vunpack.c.l.b16 %v6007
  %v6420 = vunpack.c.h.b16 %v6007
  %v6421 = vunpack.c.l.b16 %v6008
  %v6422 = vunpack.c.h.b16 %v6008
  %v6423 = vunpack.c.l.b16 %v6009
  %v6424 = vunpack.c.h.b16 %v6009
  %v6425 = vunpack.c.l.b16 %v6010
  %v6426 = vunpack.c.h.b16 %v6010
  %v6427 = vunpack.c.l.b16 %v6011
  %v6428 = vunpack.c.h.b16 %v6011
  %v6429 = vunpack.c.l.b16 %v6012
  %v6430 = vunpack.c.h.b16 %v6012
  %v6431 = vunpack.c.l.b16 %v6013
  %v6432 = vunpack.c.h.b16 %v6013
  %v6433 = vunpack.c.l.b16 %v6014
  %v6434 = vunpack.c.h.b16 %v6014
  %v6435 = vunpack.c.l.b16 %v6015
  %v6436 = vunpack.c.h.b16 %v6015
  %v6437 = vunpack.c.l.b16 %v6016
  %v6438 = vunpack.c.h.b16 %v6016
  %v6439 = vunpack.c.l.b16 %v6017
  %v6440 = vunpack.c.h.b16 %v6017
  %v6441 = vunpack.c.l.b16 %v6018
  %v6442 = vunpack.c.h.b16 %v6018
  %v6443 = vunpack.c.l.b16 %v6019
  %v6444 = vunpack.c.h.b16 %v6019
  %v6445 = vunpack.c.l.b16 %v6020
  %v6446 = vunpack.c.h.b16 %v6020
  %v6447 = vunpack.c.l.b16 %v6021
  %v6448 = vunpack.c.h.b16 %v6021
  %v6449 = vunpack.c.l.b16 %v6022
  %v6450 = vunpack.c.h.b16 %v6022
  %v6451 = vunpack.c.l.b16 %v6023
  %v6452 = vunpack.c.h.b16 %v6023
  %v6453 = vunpack.c.l.b16 %v6024
  %v6454 = vunpack.c.h.b16 %v6024
  %v6455 = vunpack.c.l.b16 %v6025
  %v6456 = vunpack.c.h.b16 %v6025
  %v6457 = vunpack.c.l.b16 %v6026
  %v6458 = vunpack.c.h.b16 %v6026
  %v6459 = vunpack.c.l.b16 %v6027
  %v6460 = vunpack.c.h.b16 %v6027
  %v6461 = vunpack.c.l.b16 %v6028
  %v6462 = vunpack.c.h.b16 %v6028
  %v6463 = vunpack.c.l.b16 %v6029
  %v6464 = vunpack.c.h.b16 %v6029
  %v6465 = vunpack.c.l.b16 %v6030
  %v6466 = vunpack.c.h.b16 %v6030
  %v6467 = vunpack.c.l.b16 %v6031
  %v6468 = vunpack.c.h.b16 %v6031
  %v6469 = vunpack.c.l.b16 %v6032
  %v6470 = vunpack.c.h.b16 %v6032
  %v6471 = vunpack.c.l.b16 %v6033
  %v6472 = vunpack.c.h.b16 %v6033
  %v6473 = vunpack.c.l.b16 %v6034
  %v6474 = vunpack.c.h.b16 %v6034
  %v6475 = vunpack.c.l.b16 %v6035
  %v6476 = vunpack.c.h.b16 %v6035
  %v6477 = vunpack.c.l.b16 %v6036
  %v6478 = vunpack.c.h.b16 %v6036
  %v6479 = vunpack.c.l.b16 %v6037
  %v6480 = vunpack.c.h.b16 %v6037
  %v6481 = vunpack.c.l.b16 %v6038
  %v6482 = vunpack.c.h.b16 %v6038
  %v6483 = vpack.c.b16 %v6197, %v6195
  %v6484 = vpack.c.b16 %v6198, %v6196
  %v6485 = vpack.c.b16 %v6201, %v6199
  %v6486 = vpack.c.b16 %v6202, %v6200
  %v6487 = vpack.c.b16 %v6205, %v6203
  %v6488 = vpack.c.b16 %v6206, %v6204
  %v6489 = vpack.c.b16 %v6209, %v6207
  %v6490 = vpack.c.b16 %v6210, %v6208
  %v6491 = vpack.c.b16 %v6213, %v6211
  %v6492 = vpack.c.b16 %v6214, %v6212
  %v6493 = vpack.c.b16 %v6217, %v6215
  %v6494 = vpack.c.b16 %v6218, %v6216
  %v6495 = vpack.c.b16 %v6221, %v6219
  %v6496 = vpack.c.b16 %v6222, %v6220
  %v6497 = vpack.c.b16 %v6225, %v6223
  %v6498 = vpack.c.b16 %v6226, %v6224
  %v6499 = vpack.c.b16 %v6229, %v6227
  %v6500 = vpack.c.b16 %v6230, %v6228
  %v6501 = vpack.c.b16 %v6233, %v6231
  %v6502 = vpack.c.b16 %v6234, %v6232
  %v6503 = vpack.c.b16 %v6237, %v6235
  %v6504 = vpack.c.b16 %v6238, %v6236
  %v6505 = vpack.c.b16 %v6241, %v6239
  %v6506 = vpack.c.b16 %v6242, %v6240
  %v6507 = vpack.c.b16 %v6245, %v6243
  %v6508 = vpack.c.b16 %v6246, %v6244
  %v6509 = vpack.c.b16 %v6249, %v6247
  %v6510 = vpack.c.b16 %v6250, %v6248
  %v6511 = vpack.c.b16 %v6253, %v6251
  %v6512 = vpack.c.b16 %v6254, %v6252
  %v6513 = vpack.c.b16 %v6257, %v6255
  %v6514 = vpack.c.b16 %v6258, %v6256
  %v6515 = vpack.c.b16 %v6261, %v6259
  %v6516 = vpack.c.b16 %v6262, %v6260
  %v6517 = vpack.c.b16 %v6265, %v6263
  %v6518 = vpack.c.b16 %v6266, %v6264
  %v6519 = vpack.c.b16 %v6269, %v6267
  %v6520 = vpack.c.b16 %v6270, %v6268
  %v6521 = vpack.c.b16 %v6273, %v6271
  %v6522 = vpack.c.b16 %v6274, %v6272
  %v6523 = vpack.c.b16 %v6277, %v6275
  %v6524 = vpack.c.b16 %v6278, %v6276
  %v6525 = vpack.c.b16 %v6281, %v6279
  %v6526 = vpack.c.b16 %v6282, %v6280
  %v6527 = vpack.c.b16 %v6285, %v6283
  %v6528 = vpack.c.b16 %v6286, %v6284
  %v6529 = vpack.c.b16 %v6289, %v6287
  %v6530 = vpack.c.b16 %v6290, %v6288
  %v6531 = vpack.c.b16 %v6293, %v6291
  %v6532 = vpack.c.b16 %v6294, %v6292
  %v6533 = vpack.c.b16 %v6297, %v6295
  %v6534 = vpack.c.b16 %v6298, %v6296
  %v6535 = vpack.c.b16 %v6301, %v6299
  %v6536 = vpack.c.b16 %v6302, %v6300
  %v6537 = vpack.c.b16 %v6305, %v6303
  %v6538 = vpack.c.b16 %v6306, %v6304
  %v6539 = vpack.c.b16 %v6309, %v6307
  %v6540 = vpack.c.b16 %v6310, %v6308
  %v6541 = vpack.c.b16 %v6313, %v6311
  %v6542 = vpack.c.b16 %v6314, %v6312
  %v6543 = vpack.c.b16 %v6317, %v6315
  %v6544 = vpack.c.b16 %v6318, %v6316
  %v6545 = vpack.c.b16 %v6321, %v6319
  %v6546 = vpack.c.b16 %v6322, %v6320
  %v6547 = vpack.c.b16 %v6325, %v6323
  %v6548 = vpack.c.b16 %v6326, %v6324
  %v6549 = vpack.c.b16 %v6329, %v6327
  %v6550 = vpack.c.b16 %v6330, %v6328
  %v6551 = vpack.c.b16 %v6333, %v6331
  %v6552 = vpack.c.b16 %v6334, %v6332
  %v6553 = vpack.c.b16 %v6337, %v6335
  %v6554 = vpack.c.b16 %v6338, %v6336
  %v6555 = vpack.c.b16 %v6341, %v6339
  %v6556 = vpack.c.b16 %v6342, %v6340
  %v6557 = vpack.c.b16 %v6345, %v6343
  %v6558 = vpack.c.b16 %v6346, %v6344
  %v6559 = vpack.c.b16 %v6349, %v6347
  %v6560 = vpack.c.b16 %v6350, %v6348
  %v6561 = vpack.c.b16 %v6353, %v6351
  %v6562 = vpack.c.b16 %v6354, %v6352
  %v6563 = vpack.c.b16 %v6357, %v6355
  %v6564 = vpack.c.b16 %v6358, %v6356
  %v6565 = vpack.c.b16 %v6361, %v6359
  %v6566 = vpack.c.b16 %v6362, %v6360
  %v6567 = vpack.c.b16 %v6365, %v6363
  %v6568 = vpack.c.b16 %v6366, %v6364
  %v6569 = vpack.c.b16 %v6369, %v6367
  %v6570 = vpack.c.b16 %v6370, %v6368
  %v6571 = vpack.c.b16 %v6373, %v6371
  %v6572 = vpack.c.b16 %v6374, %v6372
  %v6573 = vpack.c.b16 %v6377, %v6375
  %v6574 = vpack.c.b16 %v6378, %v6376
  %v6575 = vpack.c.b16 %v6381, %v6379
  %v6576 = vpack.c.b16 %v6382, %v6380
  %v6577 = vpack.c.b16 %v6385, %v6383
  %v6578 = vpack.c.b16 %v6386, %v6384
  %v6579 = vpack.c.b16 %v6389, %v6387
  %v6580 = vpack.c.b16 %v6390, %v6388
  %v6581 = vpack.c.b16 %v6393, %v6391
  %v6582 = vpack.c.b16 %v6394, %v6392
  %v6583 = vpack.c.b16 %v6397, %v6395
  %v6584 = vpack.c.b16 %v6398, %v6396
  %v6585 = vpack.c.b16 %v6401, %v6399
  %v6586 = vpack.c.b16 %v6402, %v6400
  %v6587 = vpack.c.b16 %v6405, %v6403
  %v6588 = vpack.c.b16 %v6406, %v6404
  %v6589 = vpack.c.b16 %v6409, %v6407
  %v6590 = vpack.c.b16 %v6410, %v6408
  %v6591 = vpack.c.b16 %v6413, %v6411
  %v6592 = vpack.c.b16 %v6414, %v6412
  %v6593 = vpack.c.b16 %v6417, %v6415
  %v6594 = vpack.c.b16 %v6418, %v6416
  %v6595 = vpack.c.b16 %v6421, %v6419
  %v6596 = vpack.c.b16 %v6422, %v6420
  %v6597 = vpack.c.b16 %v6425, %v6423
  %v6598 = vpack.c.b16 %v6426, %v6424
  %v6599 = vpack.c.b16 %v6429, %v6427
  %v6600 = vpack.c.b16 %v6430, %v6428
  %v6601 = vpack.c.b16 %v6433, %v6431
  %v6602 = vpack.c.b16 %v6434, %v6432
  %v6603 = vpack.c.b16 %v6437, %v6435
  %v6604 = vpack.c.b16 %v6438, %v6436
  %v6605 = vpack.c.b16 %v6441, %v6439
  %v6606 = vpack.c.b16 %v6442, %v6440
  %v6607 = vpack.c.b16 %v6445, %v6443
  %v6608 = vpack.c.b16 %v6446, %v6444
  %v6609 = vpack.c.b16 %v6449, %v6447
  %v6610 = vpack.c.b16 %v6450, %v6448
  %v6611 = vpack.c.b16 %v6453, %v6451
  %v6612 = vpack.c.b16 %v6454, %v6452
  %v6613 = vpack.c.b16 %v6457, %v6455
  %v6614 = vpack.c.b16 %v6458, %v6456
  %v6615 = vpack.c.b16 %v6461, %v6459
  %v6616 = vpack.c.b16 %v6462, %v6460
  %v6617 = vpack.c.b16 %v6465, %v6463
  %v6618 = vpack.c.b16 %v6466, %v6464
  %v6619 = vpack.c.b16 %v6469, %v6467
  %v6620 = vpack.c.b16 %v6470, %v6468
  %v6621 = vpack.c.b16 %v6473, %v6471
  %v6622 = vpack.c.b16 %v6474, %v6472
  %v6623 = vpack.c.b16 %v6477, %v6475
  %v6624 = vpack.c.b16 %v6478, %v6476
  %v6625 = vpack.c.b16 %v6481, %v6479
  %v6626 = vpack.c.b16 %v6482, %v6480
  %6771 = vmatprep.subr.bf16.mxu0 %v6484
  %6772 = vmatpush1.bf16.msra.mxu0 %v6483
  %6773 = vmatprep.subr.bf16.mxu0 %v6486
  %6774 = vmatpush1.bf16.msra.mxu0 %v6485
  %6775 = vmatprep.subr.bf16.mxu0 %v6488
  %6776 = vmatpush1.bf16.msra.mxu0 %v6487
  %6777 = vmatprep.subr.bf16.mxu0 %v6490
  %6778 = vmatpush1.bf16.msra.mxu0 %v6489
  %6779 = vmatprep.subr.bf16.mxu0 %v6492
  %6780 = vmatpush1.bf16.msra.mxu0 %v6491
  %6781 = vmatprep.subr.bf16.mxu0 %v6494
  %6782 = vmatpush1.bf16.msra.mxu0 %v6493
  %6783 = vmatprep.subr.bf16.mxu0 %v6496
  %6784 = vmatpush1.bf16.msra.mxu0 %v6495
  %6785 = vmatprep.subr.bf16.mxu0 %v6498
  %6786 = vmatpush1.bf16.msra.mxu0 %v6497
  %6787 = vmatprep.subr.bf16.mxu0 %v6500
  %6788 = vmatpush1.bf16.msra.mxu0 %v6499
  %6789 = vmatprep.subr.bf16.mxu0 %v6502
  %6790 = vmatpush1.bf16.msra.mxu0 %v6501
  %6791 = vmatprep.subr.bf16.mxu0 %v6504
  %6792 = vmatpush1.bf16.msra.mxu0 %v6503
  %6793 = vmatprep.subr.bf16.mxu0 %v6506
  %6794 = vmatpush1.bf16.msra.mxu0 %v6505
  %6795 = vmatprep.subr.bf16.mxu0 %v6508
  %6796 = vmatpush1.bf16.msra.mxu0 %v6507
  %6797 = vmatprep.subr.bf16.mxu0 %v6510
  %6798 = vmatpush1.bf16.msra.mxu0 %v6509
  %6799 = vmatprep.subr.bf16.mxu0 %v6512
  %6800 = vmatpush1.bf16.msra.mxu0 %v6511
  %6801 = vmatprep.subr.bf16.mxu0 %v6514
  %6802 = vmatpush1.bf16.msra.mxu0 %v6513
  %6803 = vmatprep.mubr.bf16.mxu0 %v5887
  %6804 = vmatmul.mubr.bf16.gmra.mrb[0].mxu0 %v5886
  %v6805 = vpop.f32.mrb[0].mxu0
  %v6806 = vadd.f32 %v6044, %v6805
  %v6807 = vpop.f32.mrb[0].mxu0
  %v6808 = vadd.f32 %v6048, %v6807
  %v6809 = vpop.f32.mrb[0].mxu0
  %v6810 = vpop.f32.mrb[0].mxu0
  %6811 = vdwg.mxu0
  %6812 = vmatprep.subr.bf16.mxu0 %v6516
  %6813 = vmatpush1.bf16.msra.mxu0 %v6515
  %6814 = vmatprep.subr.bf16.mxu0 %v6518
  %6815 = vmatpush1.bf16.msra.mxu0 %v6517
  %6816 = vmatprep.subr.bf16.mxu0 %v6520
  %6817 = vmatpush1.bf16.msra.mxu0 %v6519
  %6818 = vmatprep.subr.bf16.mxu0 %v6522
  %6819 = vmatpush1.bf16.msra.mxu0 %v6521
  %6820 = vmatprep.subr.bf16.mxu0 %v6524
  %6821 = vmatpush1.bf16.msra.mxu0 %v6523
  %6822 = vmatprep.subr.bf16.mxu0 %v6526
  %6823 = vmatpush1.bf16.msra.mxu0 %v6525
  %6824 = vmatprep.subr.bf16.mxu0 %v6528
  %6825 = vmatpush1.bf16.msra.mxu0 %v6527
  %6826 = vmatprep.subr.bf16.mxu0 %v6530
  %6827 = vmatpush1.bf16.msra.mxu0 %v6529
  %6828 = vmatprep.subr.bf16.mxu0 %v6532
  %6829 = vmatpush1.bf16.msra.mxu0 %v6531
  %6830 = vmatprep.subr.bf16.mxu0 %v6534
  %6831 = vmatpush1.bf16.msra.mxu0 %v6533
  %6832 = vmatprep.subr.bf16.mxu0 %v6536
  %6833 = vmatpush1.bf16.msra.mxu0 %v6535
  %6834 = vmatprep.subr.bf16.mxu0 %v6538
  %6835 = vmatpush1.bf16.msra.mxu0 %v6537
  %6836 = vmatprep.subr.bf16.mxu0 %v6540
  %6837 = vmatpush1.bf16.msra.mxu0 %v6539
  %6838 = vmatprep.subr.bf16.mxu0 %v6542
  %6839 = vmatpush1.bf16.msra.mxu0 %v6541
  %6840 = vmatprep.subr.bf16.mxu0 %v6544
  %6841 = vmatpush1.bf16.msra.mxu0 %v6543
  %6842 = vmatprep.subr.bf16.mxu0 %v6546
  %6843 = vmatpush1.bf16.msra.mxu0 %v6545
  %6844 = vmatprep.mubr.bf16.mxu0 %v5889
  %6845 = vmatmul.mubr.bf16.gmra.mrb[0].mxu0 %v5888
  %v6846 = vpop.f32.mrb[0].mxu0
  %v6847 = vadd.f32 %v6806, %v6846
  %v6848 = vpop.f32.mrb[0].mxu0
  %v6849 = vadd.f32 %v6808, %v6848
  %v6850 = vpop.f32.mrb[0].mxu0
  %v6851 = vpop.f32.mrb[0].mxu0
  %6852 = vdwg.mxu0
  %6853 = vmatprep.subr.bf16.mxu0 %v6548
  %6854 = vmatpush1.bf16.msra.mxu0 %v6547
  %6855 = vmatprep.subr.bf16.mxu0 %v6550
  %6856 = vmatpush1.bf16.msra.mxu0 %v6549
  %6857 = vmatprep.subr.bf16.mxu0 %v6552
  %6858 = vmatpush1.bf16.msra.mxu0 %v6551
  %6859 = vmatprep.subr.bf16.mxu0 %v6554
  %6860 = vmatpush1.bf16.msra.mxu0 %v6553
  %6861 = vmatprep.subr.bf16.mxu0 %v6556
  %6862 = vmatpush1.bf16.msra.mxu0 %v6555
  %6863 = vmatprep.subr.bf16.mxu0 %v6558
  %6864 = vmatpush1.bf16.msra.mxu0 %v6557
  %6865 = vmatprep.subr.bf16.mxu0 %v6560
  %6866 = vmatpush1.bf16.msra.mxu0 %v6559
  %6867 = vmatprep.subr.bf16.mxu0 %v6562
  %6868 = vmatpush1.bf16.msra.mxu0 %v6561
  %6869 = vmatprep.subr.bf16.mxu0 %v6564
  %6870 = vmatpush1.bf16.msra.mxu0 %v6563
  %6871 = vmatprep.subr.bf16.mxu0 %v6566
  %6872 = vmatpush1.bf16.msra.mxu0 %v6565
  %6873 = vmatprep.subr.bf16.mxu0 %v6568
  %6874 = vmatpush1.bf16.msra.mxu0 %v6567
  %6875 = vmatprep.subr.bf16.mxu0 %v6570
  %6876 = vmatpush1.bf16.msra.mxu0 %v6569
  %6877 = vmatprep.subr.bf16.mxu0 %v6572
  %6878 = vmatpush1.bf16.msra.mxu0 %v6571
  %6879 = vmatprep.subr.bf16.mxu0 %v6574
  %6880 = vmatpush1.bf16.msra.mxu0 %v6573
  %6881 = vmatprep.subr.bf16.mxu0 %v6576
  %6882 = vmatpush1.bf16.msra.mxu0 %v6575
  %6883 = vmatprep.subr.bf16.mxu0 %v6578
  %6884 = vmatpush1.bf16.msra.mxu0 %v6577
  %6885 = vmatprep.mubr.bf16.mxu0 %v5891
  %6886 = vmatmul.mubr.bf16.gmra.mrb[0].mxu0 %v5890
  %v6887 = vpop.f32.mrb[0].mxu0
  %v6888 = vadd.f32 %v6847, %v6887
  %v6889 = vpop.f32.mrb[0].mxu0
  %v6890 = vadd.f32 %v6849, %v6889
  %v6891 = vpop.f32.mrb[0].mxu0
  %v6892 = vpop.f32.mrb[0].mxu0
  %6893 = vdwg.mxu0
  %6894 = vmatprep.subr.bf16.mxu0 %v6580
  %6895 = vmatpush1.bf16.msra.mxu0 %v6579
  %6896 = vmatprep.subr.bf16.mxu0 %v6582
  %6897 = vmatpush1.bf16.msra.mxu0 %v6581
  %6898 = vmatprep.subr.bf16.mxu0 %v6584
  %6899 = vmatpush1.bf16.msra.mxu0 %v6583
  %6900 = vmatprep.subr.bf16.mxu0 %v6586
  %6901 = vmatpush1.bf16.msra.mxu0 %v6585
  %6902 = vmatprep.subr.bf16.mxu0 %v6588
  %6903 = vmatpush1.bf16.msra.mxu0 %v6587
  %6904 = vmatprep.subr.bf16.mxu0 %v6590
  %6905 = vmatpush1.bf16.msra.mxu0 %v6589
  %6906 = vmatprep.subr.bf16.mxu0 %v6592
  %6907 = vmatpush1.bf16.msra.mxu0 %v6591
  %6908 = vmatprep.subr.bf16.mxu0 %v6594
  %6909 = vmatpush1.bf16.msra.mxu0 %v6593
  %6910 = vmatprep.subr.bf16.mxu0 %v6596
  %6911 = vmatpush1.bf16.msra.mxu0 %v6595
  %6912 = vmatprep.subr.bf16.mxu0 %v6598
  %6913 = vmatpush1.bf16.msra.mxu0 %v6597
  %6914 = vmatprep.subr.bf16.mxu0 %v6600
  %6915 = vmatpush1.bf16.msra.mxu0 %v6599
  %6916 = vmatprep.subr.bf16.mxu0 %v6602
  %6917 = vmatpush1.bf16.msra.mxu0 %v6601
  %6918 = vmatprep.subr.bf16.mxu0 %v6604
  %6919 = vmatpush1.bf16.msra.mxu0 %v6603
  %6920 = vmatprep.subr.bf16.mxu0 %v6606
  %6921 = vmatpush1.bf16.msra.mxu0 %v6605
  %6922 = vmatprep.subr.bf16.mxu0 %v6608
  %6923 = vmatpush1.bf16.msra.mxu0 %v6607
  %6924 = vmatprep.subr.bf16.mxu0 %v6610
  %6925 = vmatpush1.bf16.msra.mxu0 %v6609
  %6926 = vmatprep.mubr.bf16.mxu0 %v5893
  %6927 = vmatmul.mubr.bf16.gmra.mrb[0].mxu0 %v5892
  %v6928 = vpop.f32.mrb[0].mxu0
  %v6929 = vadd.f32 %v6888, %v6928
  %v6930 = vpop.f32.mrb[0].mxu0
  %v6931 = vadd.f32 %v6890, %v6930
  %v6932 = vpop.f32.mrb[0].mxu0
  %v6933 = vpop.f32.mrb[0].mxu0
  %6934 = vdwg.mxu0
  %6935 = vmatprep.subr.bf16.mxu0 %v6612
  %6936 = vmatpush1.bf16.msra.mxu0 %v6611
  %6937 = vmatprep.subr.bf16.mxu0 %v6614
  %6938 = vmatpush1.bf16.msra.mxu0 %v6613
  %6939 = vmatprep.subr.bf16.mxu0 %v6616
  %6940 = vmatpush1.bf16.msra.mxu0 %v6615
  %6941 = vmatprep.subr.bf16.mxu0 %v6618
  %6942 = vmatpush1.bf16.msra.mxu0 %v6617
  %6943 = vmatprep.subr.bf16.mxu0 %v6620
  %6944 = vmatpush1.bf16.msra.mxu0 %v6619
  %6945 = vmatprep.subr.bf16.mxu0 %v6622
  %6946 = vmatpush1.bf16.msra.mxu0 %v6621
  %6947 = vmatprep.subr.bf16.mxu0 %v6624
  %6948 = vmatpush1.bf16.msra.mxu0 %v6623
  %6949 = vmatprep.subr.bf16.mxu0 %v6626
  %6950 = vmatpush1.bf16.msra.mxu0 %v6625
  %6951 = vmatprep.subr.bf16.mxu0 0
  %6952 = vmatpush1.bf16.msra.mxu0 0
  %6953 = vmatprep.subr.bf16.mxu0 0
  %6954 = vmatpush1.bf16.msra.mxu0 0
  %6955 = vmatprep.subr.bf16.mxu0 0
  %6956 = vmatpush1.bf16.msra.mxu0 0
  %6957 = vmatprep.subr.bf16.mxu0 0
  %6958 = vmatpush1.bf16.msra.mxu0 0
  %6959 = vmatprep.subr.bf16.mxu0 0
  %6960 = vmatpush1.bf16.msra.mxu0 0
  %6961 = vmatprep.subr.bf16.mxu0 0
  %6962 = vmatpush1.bf16.msra.mxu0 0
  %6963 = vmatprep.subr.bf16.mxu0 0
  %6964 = vmatpush1.bf16.msra.mxu0 0
  %6965 = vmatprep.subr.bf16.mxu0 0
  %6966 = vmatpush1.bf16.msra.mxu0 0
  %6967 = vmatprep.mubr.bf16.mxu0 0
  %6968 = vmatmul.mubr.bf16.gmra.mrb[0].mxu0 %v5894
  %v6969 = vpop.f32.mrb[0].mxu0
  %v6970 = vadd.f32 %v6929, %v6969
  %v6971 = vpop.f32.mrb[0].mxu0
  %v6972 = vadd.f32 %v6931, %v6971
  %v6973 = vpop.f32.mrb[0].mxu0
  %v6974 = vpop.f32.mrb[0].mxu0
  %6975 = vdwg.mxu0
  %v6976 = vmax.f32 %v6970, 0.0
  %v6977 = vmax.f32 %v6972, 0.0
  %6978 = vst [vmem:[%s9] sm:$0xff] %v6976
  %6979 = vst [vmem:[%s9 + $0x8] sm:$0xff] %v6977
  // Predicated region
  $region38: #{encoder_forward.1} parent=0 // pred_check
    _
  $region39: #{encoder_forward.1} parent=0 // pred_check_branch
    %6981 = sbr.rel (0) target = $region41
  $region40: #{encoder_forward.1} parent=0 // pred_region
    _
  $region41: #{encoder_forward.1} parent=0 // pred_fallthru
    _
  // Predicated region
  $region42: #{encoder_forward.1} parent=0 // pred_check
    _
  $region43: #{encoder_forward.1} parent=0 // pred_check_branch
    %6983 = sbr.rel (0) target = $region45
  $region44: #{encoder_forward.1} parent=0 // pred_region
    _
  $region45: #{encoder_forward.1} parent=0 // pred_fallthru
    _

</llo_original>
